<compile_context>
chip_gen: v7x
topology: tpu7x:2x2x1
jax: 0.10.0
libtpu: 0.0.40
codegen_flags: <defaults>
</compile_context>

<pallas_src>
import functools
import math

import jax
import jax.numpy as jnp
from jax import lax
from jax.experimental import pallas as pl
from jax.experimental.pallas import tpu as pltpu

EPS = 1e-8   # matches the module's custom LayerNorm (eps=1e-08)


def _round_up(x, m):
    return (x + m - 1) // m * m


def _vmem_capacity_bytes():
    try:
        return int(pltpu.get_tpu_info().vmem_capacity_bytes)
    except Exception:
        return 64 * 2**20        # conservative: v7x per-TensorCore VMEM


def _step_vmem_bytes(bb, L, Dp, bt):
    """Rough per-grid-step VMEM footprint (bytes)."""
    f32, bf16 = 4, 2
    acts = 4 * bb * L * Dp * f32                       # x_ib, x_pb, resid, out
    bs_bytes = bb * L * 128 * 4 + bb * 8 * L * 4       # int32 blocks (padded VMEM layout)
    streamed = 2 * (acts + bs_bytes)                   # double-buffered per-step operands
    consts = L * L * f32 + 7 * Dp * Dp * bf16 + 16 * Dp * f32   # single-buffered
    temps = f32 * (14 * bb * L * Dp + 8 * L * L)       # in-kernel temporaries
    return streamed + consts + temps


def _choose_block_b(B, L, Dp, bt, vmem_cap):
    budget = int(0.55 * vmem_cap)
    for bb in range(min(B, 16), 0, -1):
        if B % bb == 0 and _step_vmem_bytes(bb, L, Dp, bt) <= budget:
            return bb
    return 1   # TODO(synk): L-tiled path needed if even bb=1 overflows VMEM.


# ---------------------------------------------------------------------------
# Kernel
# ---------------------------------------------------------------------------
# Parameter packing (all padded to Dp lanes):
#   W_all : (Dp, 7*Dp) bf16, cols = [Wq_ib*s | Wk_ib | Wv_ib | Wq_pb*s | Wk_pb |
#                                    Wv_pb | W_fcl]   (s = 1/sqrt(D) folded in)
#   P     : (13, Dp)  f32, rows = [bq_ib*s, bk_ib, bv_ib, bq_pb*s, bk_pb, bv_pb,
#                                  b_fcl, ln_qib_w, ln_qib_b, ln_qpb_w, ln_qpb_b,
#                                  ln_final_w, ln_final_b]
#   tab   : (B*(behavior_types+1),) f32 in SMEM, per-user hamming transition row.

def dcba_kernel(tab_ref, x_ib_ref, x_pb_ref, resid_ref, bs_ref, bst_ref,
                mask_ref, w_ref, p_ref, out_ref, *, hidden_dims, behavior_types):
    Bb, L, Dp = x_ib_ref.shape
    bt = bs_ref.shape[-1]
    D = hidden_dims
    scale = 1.0 / math.sqrt(D)
    inv_d = 1.0 / D
    bf16 = jnp.bfloat16

    params = p_ref[...]                                  # (13, Dp) f32

    def row(i):                                          # (1, Dp); broadcasts over rows
        return params[i:i + 1, :]

    # Validity mask over the zero-padded hidden dim (keeps LN stats exact).
    lane_valid = (lax.broadcasted_iota(jnp.int32, (1, Dp), 1) < D).astype(jnp.float32)

    def layer_norm(x, w, b):                             # f32 throughout
        u = jnp.sum(x * lane_valid, axis=-1, keepdims=True) * inv_d
        d = (x - u) * lane_valid
        s = jnp.sum(d * d, axis=-1, keepdims=True) * inv_d
        return d * lax.rsqrt(s + EPS) * w + b

    def softmax(s):                                      # exact divide (EUP, off critical path)
        m = jnp.max(s, axis=-1, keepdims=True)
        e = jnp.exp(s - m)
        return e / jnp.sum(e, axis=-1, keepdims=True)

    def mm(a_f32, c0, c1):                               # bf16 MXU, f32 accumulate
        return jnp.dot(a_f32.astype(bf16), w_ref[:, c0:c1],
                       preferred_element_type=jnp.float32)

    mask = mask_ref[...]                                 # (L, L) additive mask (batch-invariant)

    # ---- projections on the flattened (Bb*L, Dp) slab (big MXU M) ----------
    x_ib = x_ib_ref[...].reshape(Bb * L, Dp)
    x_pb = x_pb_ref[...].reshape(Bb * L, Dp)

    q_ib = mm(layer_norm(x_ib, row(7), row(8)), 0 * Dp, 1 * Dp) + row(0)
    kv_ib = mm(x_ib, 1 * Dp, 3 * Dp)                     # fused K|V projection
    k_ib = kv_ib[:, :Dp] + row(1)
    v_ib = kv_ib[:, Dp:] + row(2)

    q_pb = mm(layer_norm(x_pb, row(9), row(10)), 3 * Dp, 4 * Dp) + row(3)
    kv_pb = mm(x_pb, 4 * Dp, 6 * Dp)
    k_pb = kv_pb[:, :Dp] + row(4)
    v_pb = kv_pb[:, Dp:] + row(5)

    # ---- per-batch-element attention (scores / softmax / attn@v) -----------
    outs = []
    for b in range(Bb):                                  # static unroll, Bb is small
        b_glob = pl.program_id(0) * Bb + b

        # Behavior-hamming attention built in-kernel (no (B,L,L) HBM stream).
        bs = bs_ref[b]                                   # (L, bt) int32
        bst = bst_ref[b]                                 # (bt, L) int32
        diff = jnp.zeros((L, L), jnp.int32)
        for t in range(bt):
            diff = diff + (bs[:, t:t + 1] != bst[t:t + 1, :]).astype(jnp.int32)
        # dist_idx = floor(diff * behavior_types / bt) realized with integer
        # range tests (no vector int-div on the VPU).
        prod = diff * behavior_types
        base = b_glob * (behavior_types + 1)
        ham = jnp.zeros((L, L), jnp.float32)
        for kk in range(behavior_types + 1):
            sel = (prod >= kk * bt) & (prod < (kk + 1) * bt)
            ham = jnp.where(sel, tab_ref[base + kk], ham)
        ham_attn = softmax(ham * scale + mask)

        def attend(q, k, v):
            qb = q[b * L:(b + 1) * L]
            kb = k[b * L:(b + 1) * L]
            vb = v[b * L:(b + 1) * L]
            # q.k^T: NT-form dot_general (contract last dims), no materialized
            # transpose of k.  1/sqrt(D) is already folded into Wq / bq.
            s = lax.dot_general(qb.astype(bf16), kb.astype(bf16),
                                (((1,), (1,)), ((), ())),
                                preferred_element_type=jnp.float32)
            # TODO(synk): attn_dropout_layer treated as identity (eval mode).
            a = softmax(s + mask) + ham_attn
            return jnp.dot(a.astype(bf16), vb.astype(bf16),
                           preferred_element_type=jnp.float32)

        outs.append(attend(q_ib, k_ib, v_ib) + attend(q_pb, k_pb, v_pb))

    attn_out = outs[0] if Bb == 1 else jnp.concatenate(outs, axis=0)  # (Bb*L, Dp)

    mha = mm(attn_out, 6 * Dp, 7 * Dp) + row(6)
    # TODO(synk): dropout_layer treated as identity (eval mode).
    y = layer_norm(mha + resid_ref[...].reshape(Bb * L, Dp), row(11), row(12))
    out_ref[...] = y.reshape(Bb, L, Dp)


# ---------------------------------------------------------------------------
# pallas_call wrapper
# ---------------------------------------------------------------------------
def dcba_pallas(tab, x_ib, x_pb, resid, bs, bst, attn_mask, W_all, P, *,
                hidden_dims, behavior_types, block_b, vmem_limit,
                single_buffer_consts=True):
    B, L, Dp = x_ib.shape
    bt = bs.shape[-1]
    assert W_all.shape == (Dp, 7 * Dp) and P.shape == (13, Dp)
    assert B % block_b == 0
    nb = B // block_b

    kernel = functools.partial(dcba_kernel, hidden_dims=hidden_dims,
                               behavior_types=behavior_types)

    def const_spec(shape):
        idx = lambda i: (0,) * len(shape)
        if single_buffer_consts:
            # Fetched once; no second VMEM buffer.
            return pl.BlockSpec(shape, idx, pipeline_mode=pl.Buffered(1))
        return pl.BlockSpec(shape, idx)

    grid_spec = pltpu.PrefetchScalarGridSpec(
        num_scalar_prefetch=0,
        grid=(nb,),
        in_specs=[
            pl.BlockSpec(memory_space=pltpu.MemorySpace.SMEM),      # per-user table (flat f32)
            pl.BlockSpec((block_b, L, Dp), lambda i: (i, 0, 0)),    # item_emb + bs_emb
            pl.BlockSpec((block_b, L, Dp), lambda i: (i, 0, 0)),    # pos_emb  + bs_emb
            pl.BlockSpec((block_b, L, Dp), lambda i: (i, 0, 0)),    # seq_logits + bs_emb
            pl.BlockSpec((block_b, L, bt), lambda i: (i, 0, 0)),    # bs_seq  (int32)
            pl.BlockSpec((block_b, bt, L), lambda i: (i, 0, 0)),    # bs_seq^T (int32)
            const_spec((L, L)),                                     # additive mask (batch-invariant)
            const_spec((Dp, 7 * Dp)),                               # packed weights (bf16)
            const_spec((13, Dp)),                                   # biases / LN params (f32)
        ],
        out_specs=pl.BlockSpec((block_b, L, Dp), lambda i: (i, 0, 0)),
    )

    f32b, bf16b = 4, 2
    flops = 2 * B * L * Dp * (7 * Dp + 4 * L)
    transcendentals = 3 * B * L * L
    bytes_accessed = (f32b * (4 * B * L * Dp + L * L + 13 * Dp)
                      + bf16b * 7 * Dp * Dp
                      + 4 * 2 * B * L * bt
                      + f32b * B * (behavior_types + 1))

    return pl.pallas_call(
        kernel,
        out_shape=jax.ShapeDtypeStruct((B, L, Dp), jnp.float32),
        grid_spec=grid_spec,
        compiler_params=pltpu.CompilerParams(
            dimension_semantics=("parallel",),
            vmem_limit_bytes=vmem_limit),
        cost_estimate=pl.CostEstimate(
            flops=flops,
            transcendentals=transcendentals,
            bytes_accessed=bytes_accessed),
    )(tab, x_ib, x_pb, resid, bs, bst, attn_mask, W_all, P)


# ---------------------------------------------------------------------------
# Full forward: XLA glue (input fusion, padding, packing) + Pallas kernel
# ---------------------------------------------------------------------------
def dcba_forward(u, seq_logits, item_emb, pos_emb, bs_seq, bs_emb,
                 attn_mask, user_tables, behavior_types,
                 W, lin_b, ln_qib, ln_qpb, ln_fin):
    """attn_mask is the batch-invariant (L, L) additive mask (the module gets
    (B,1,L,L) and squeezes dim 1); W is (7, D, D) in (in, out) layout; lin_b
    (7, D); ln_* (2, D)."""
    B, L, D = item_emb.shape
    bt = bs_seq.shape[-1]
    Dp = max(128, _round_up(D, 128))
    scale = 1.0 / math.sqrt(D)
    assert attn_mask.shape == (L, L), "kernel assumes batch-invariant mask"

    # Cheap XLA glue: fuse the elementwise input sums, pad hidden to Dp lanes.
    x_ib = item_emb + bs_emb
    x_pb = pos_emb + bs_emb
    resid = seq_logits + bs_emb
    pad3 = [(0, 0), (0, 0), (0, Dp - D)]
    x_ib = jnp.pad(x_ib, pad3)
    x_pb = jnp.pad(x_pb, pad3)
    resid = jnp.pad(resid, pad3)

    bs = bs_seq.astype(jnp.int32)                        # (B, L, bt)
    bst = jnp.transpose(bs, (0, 2, 1))                   # (B, bt, L)
    # Per-user hamming transition rows, flattened 1-D for compact SMEM padding.
    tab = user_tables[u].astype(jnp.float32).reshape(-1)  # (B*(behavior_types+1),)

    # Fold 1/sqrt(D) into the Q projections (weight + bias); pack all weights
    # into one lane-dense bf16 slab.
    Wf = W.astype(jnp.float32)
    Wf = Wf.at[0].multiply(scale).at[3].multiply(scale)
    bf = lin_b.astype(jnp.float32)
    bf = bf.at[0].multiply(scale).at[3].multiply(scale)

    W_pad = jnp.pad(Wf, [(0, 0), (0, Dp - D), (0, Dp - D)])          # (7, Dp, Dp)
    W_all = jnp.concatenate([W_pad[i] for i in range(7)], axis=1)    # (Dp, 7*Dp)
    W_all = W_all.astype(jnp.bfloat16)

    P = jnp.concatenate([bf, ln_qib, ln_qpb, ln_fin], axis=0)        # (13, D)
    P = jnp.pad(P, [(0, 0), (0, Dp - D)]).astype(jnp.float32)        # (13, Dp)

    vmem_cap = _vmem_capacity_bytes()
    block_b = _choose_block_b(B, L, Dp, bt, vmem_cap)
    est = _step_vmem_bytes(block_b, L, Dp, bt)
    vmem_limit = min(int(0.75 * vmem_cap), max(32 * 2**20, int(1.25 * est)))

    kwargs = dict(hidden_dims=D, behavior_types=behavior_types,
                  block_b=block_b, vmem_limit=vmem_limit)
    try:
        out = dcba_pallas(tab, x_ib, x_pb, resid, bs, bst, attn_mask, W_all, P,
                          single_buffer_consts=True, **kwargs)
    except Exception:
        # Fallback for jax versions without BlockSpec(pipeline_mode=pl.Buffered(1)).
        out = dcba_pallas(tab, x_ib, x_pb, resid, bs, bst, attn_mask, W_all, P,
                          single_buffer_consts=False, **kwargs)
    return out[:, :, :D]


# ---------------------------------------------------------------------------
# Plain-JAX reference (matches the PyTorch forward, eval mode, f32 exact)
# ---------------------------------------------------------------------------
def hamming_scores_glue(u, bs_seq, user_tables, behavior_types):
    """Replicates _generate_bs_hamming_dist_mat's raw (pre-softmax) scores."""
    B, L, bt = bs_seq.shape
    diff = jnp.sum(bs_seq[:, :, None, :] != bs_seq[:, None, :, :], axis=-1)  # (B, L, L)
    frac = diff.astype(jnp.float32) / bt
    dist_idx = (frac * behavior_types).astype(jnp.int32)
    tabs = user_tables[u]                                                    # (B, bt+1)
    return jax.vmap(lambda tab, idx: tab[idx])(tabs, dist_idx)               # (B, L, L)


def reference_forward(item_emb, pos_emb, bs_emb, seq_logits, attn_mask, ham, W, P, D):
    scale = 1.0 / math.sqrt(D)

    def layer_norm(x, w, b):
        u = jnp.mean(x, -1, keepdims=True)
        s = jnp.mean((x - u) ** 2, -1, keepdims=True)
        return (x - u) / jnp.sqrt(s + EPS) * w + b

    softmax = lambda x: jax.nn.softmax(x, axis=-1)
    ham_attn = softmax(ham * scale + attn_mask[None])

    def branch(x, wq_i, lnw_i, lnb_i):
        q = layer_norm(x, P[lnw_i], P[lnb_i]) @ W[wq_i] + P[wq_i]
        k = x @ W[wq_i + 1] + P[wq_i + 1]
        v = x @ W[wq_i + 2] + P[wq_i + 2]
        scores = jnp.einsum("bld,bmd->blm", q, k) * scale
        attn = softmax(scores + attn_mask[None]) + ham_attn
        return jnp.einsum("blm,bmd->bld", attn, v)

    ib_out = branch(item_emb + bs_emb, 0, 7, 8)
    pb_out = branch(pos_emb + bs_emb, 3, 9, 10)
    mha = (ib_out + pb_out) @ W[6] + P[6]
    return layer_norm(mha + seq_logits + bs_emb, P[11], P[12])


if __name__ == "__main__":
    B, L, D = 2, 8, 32
    bt = 4                 # width of bs_seq feature dim
    behavior_types = 4
    user_num = 5

    key = jax.random.PRNGKey(0)
    ks = jax.random.split(key, 12)

    # Module inputs: [u, seq_logits, item_emb, pos_emb, bs_seq, bs_emb], attn_mask
    seq_logits = jax.random.normal(ks[0], (B, L, D), jnp.float32)
    item_emb = jax.random.normal(ks[1], (B, L, D), jnp.float32)
    pos_emb = jax.random.normal(ks[2], (B, L, D), jnp.float32)
    bs_emb = jax.random.normal(ks[3], (B, L, D), jnp.float32)
    bs_seq = jax.random.randint(ks[4], (B, L, bt), 0, 2)
    u = jax.random.randint(ks[5], (B,), 0, user_num + 1)

    # Additive causal mask (module receives (B,1,L,L), squeezes dim 1; batch-invariant).
    causal = jnp.tril(jnp.ones((L, L), jnp.float32))
    attn_mask = jnp.where(causal > 0.0, 0.0, -1e9)          # (L, L)

    # Deterministic synthetic parameters, (in, out) layout.
    W = jax.random.normal(ks[6], (7, D, D), jnp.float32) * 0.05
    lin_b = jax.random.normal(ks[7], (7, D), jnp.float32) * 0.01
    ln_qib = jnp.stack([jnp.ones((D,)), jnp.zeros((D,))]).astype(jnp.float32)
    ln_qpb = jnp.stack([jnp.ones((D,)), jnp.zeros((D,))]).astype(jnp.float32)
    ln_fin = jnp.stack([jnp.ones((D,)), jnp.zeros((D,))]).astype(jnp.float32)

    # user_bt_transition: one Embedding(behavior_types+1, 1) per user -> stacked table.
    user_tables = jax.random.normal(
        ks[8], (user_num + 1, behavior_types + 1), jnp.float32) * 0.1

    out = dcba_forward(u, seq_logits, item_emb, pos_emb, bs_seq, bs_emb,
                       attn_mask, user_tables, behavior_types,
                       W, lin_b, ln_qib, ln_qpb, ln_fin)
    out = jax.block_until_ready(out)

    # Plain-JAX f32 reference.
    ham = hamming_scores_glue(u, bs_seq, user_tables, behavior_types)
    P_ref = jnp.concatenate([lin_b, ln_qib, ln_qpb, ln_fin], axis=0)
    ref = reference_forward(item_emb, pos_emb, bs_emb, seq_logits, attn_mask,
                            ham, W, P_ref, D)

    assert out.shape == (B, L, D)
    # Tolerance covers the bf16 MXU operands inside the kernel (LN/softmax stay f32).
    err = float(jnp.max(jnp.abs(out - ref)))
    assert jnp.allclose(out, ref, atol=2e-2, rtol=2e-2), err

    print("KERNEL_OK")
</pallas_src>

<mosaic_0001>
module attributes {stable_mosaic.version = 11 : i64} {
  func.func @dcba_kernel(%arg0: i32, %arg1: memref<10xf32, #tpu.memory_space<smem>>, %arg2: memref<2x8x128xf32, #tpu.memory_space<vmem>>, %arg3: memref<2x8x128xf32, #tpu.memory_space<vmem>>, %arg4: memref<2x8x128xf32, #tpu.memory_space<vmem>>, %arg5: memref<2x8x4xi32, #tpu.memory_space<vmem>>, %arg6: memref<2x4x8xi32, #tpu.memory_space<vmem>>, %arg7: memref<8x8xf32, #tpu.memory_space<vmem>>, %arg8: memref<128x896xbf16, #tpu.memory_space<vmem>>, %arg9: memref<13x128xf32, #tpu.memory_space<vmem>>, %arg10: memref<2x8x128xf32, #tpu.memory_space<vmem>>) attributes {dimension_semantics = [#tpu.dimension_semantics<parallel>], iteration_bounds = array<i64: 1>, scalar_prefetch = 0 : i64, scratch_operands = 0 : i64, tpu.core_type = #tpu.core_type<tc>, window_params = [{transform_indices = @transform_0, window_bounds = array<i64: 10>}, {transform_indices = @transform_1, window_bounds = array<i64: 2, 8, 128>}, {transform_indices = @transform_2, window_bounds = array<i64: 2, 8, 128>}, {transform_indices = @transform_3, window_bounds = array<i64: 2, 8, 128>}, {transform_indices = @transform_4, window_bounds = array<i64: 2, 8, 4>}, {transform_indices = @transform_5, window_bounds = array<i64: 2, 4, 8>}, {pipeline_mode = #tpu.pipeline_mode<synchronous>, transform_indices = @transform_6, window_bounds = array<i64: 8, 8>}, {pipeline_mode = #tpu.pipeline_mode<synchronous>, transform_indices = @transform_7, window_bounds = array<i64: 128, 896>}, {pipeline_mode = #tpu.pipeline_mode<synchronous>, transform_indices = @transform_8, window_bounds = array<i64: 13, 128>}, {transform_indices = @transform_9, window_bounds = array<i64: 2, 8, 128>}]} {
    %c0 = arith.constant 0 : index
    %c0_0 = arith.constant 0 : index
    %0 = vector.load %arg9[%c0, %c0_0] : memref<13x128xf32, #tpu.memory_space<vmem>>, vector<13x128xf32>
    %1 = tpu.iota {dimensions = array<i32: 1>} : vector<1x128xi32>
    %c32_i32 = arith.constant 32 : i32
    %2 = vector.broadcast %c32_i32 : i32 to vector<1x128xi32>
    %3 = arith.cmpi slt, %1, %2 : vector<1x128xi32>
    %4 = arith.extui %3 : vector<1x128xi1> to vector<1x128xi32>
    %5 = arith.sitofp %4 : vector<1x128xi32> to vector<1x128xf32>
    %c0_1 = arith.constant 0 : index
    %c0_2 = arith.constant 0 : index
    %6 = vector.load %arg7[%c0_1, %c0_2] : memref<8x8xf32, #tpu.memory_space<vmem>>, vector<8x8xf32>
    %c0_3 = arith.constant 0 : index
    %c0_4 = arith.constant 0 : index
    %c0_5 = arith.constant 0 : index
    %7 = vector.load %arg2[%c0_3, %c0_4, %c0_5] : memref<2x8x128xf32, #tpu.memory_space<vmem>>, vector<2x8x128xf32>
    %8 = vector.shape_cast %7 : vector<2x8x128xf32> to vector<16x128xf32>
    %c0_6 = arith.constant 0 : index
    %c0_7 = arith.constant 0 : index
    %c0_8 = arith.constant 0 : index
    %9 = vector.load %arg3[%c0_6, %c0_7, %c0_8] : memref<2x8x128xf32, #tpu.memory_space<vmem>>, vector<2x8x128xf32>
    %10 = vector.shape_cast %9 : vector<2x8x128xf32> to vector<16x128xf32>
    %11 = vector.extract_strided_slice %0 {offsets = [7, 0], sizes = [1, 128], strides = [1, 1]} : vector<13x128xf32> to vector<1x128xf32>
    %12 = vector.extract_strided_slice %0 {offsets = [8, 0], sizes = [1, 128], strides = [1, 1]} : vector<13x128xf32> to vector<1x128xf32>
    %13 = vector.broadcast %5 : vector<1x128xf32> to vector<16x128xf32>
    %14 = arith.mulf %8, %13 : vector<16x128xf32>
    %cst = arith.constant dense<0.000000e+00> : vector<16xf32>
    %15 = vector.multi_reduction <add>, %14, %cst [1] : vector<16x128xf32> to vector<16xf32>
    %16 = vector.shape_cast %15 : vector<16xf32> to vector<16x1xf32>
    %cst_9 = arith.constant 3.125000e-02 : f32
    %17 = vector.broadcast %cst_9 : f32 to vector<16x1xf32>
    %18 = arith.mulf %16, %17 : vector<16x1xf32>
    %19 = vector.broadcast %18 : vector<16x1xf32> to vector<16x128xf32>
    %20 = arith.subf %8, %19 : vector<16x128xf32>
    %21 = vector.broadcast %5 : vector<1x128xf32> to vector<16x128xf32>
    %22 = arith.mulf %20, %21 : vector<16x128xf32>
    %23 = arith.mulf %22, %22 : vector<16x128xf32>
    %cst_10 = arith.constant dense<0.000000e+00> : vector<16xf32>
    %24 = vector.multi_reduction <add>, %23, %cst_10 [1] : vector<16x128xf32> to vector<16xf32>
    %25 = vector.shape_cast %24 : vector<16xf32> to vector<16x1xf32>
    %cst_11 = arith.constant 3.125000e-02 : f32
    %26 = vector.broadcast %cst_11 : f32 to vector<16x1xf32>
    %27 = arith.mulf %25, %26 : vector<16x1xf32>
    %cst_12 = arith.constant 9.99999993E-9 : f32
    %28 = vector.broadcast %cst_12 : f32 to vector<16x1xf32>
    %29 = arith.addf %27, %28 : vector<16x1xf32>
    %30 = math.rsqrt %29 : vector<16x1xf32>
    %31 = vector.broadcast %30 : vector<16x1xf32> to vector<16x128xf32>
    %32 = arith.mulf %22, %31 : vector<16x128xf32>
    %33 = vector.broadcast %11 : vector<1x128xf32> to vector<16x128xf32>
    %34 = arith.mulf %32, %33 : vector<16x128xf32>
    %35 = vector.broadcast %12 : vector<1x128xf32> to vector<16x128xf32>
    %36 = arith.addf %34, %35 : vector<16x128xf32>
    %37 = arith.truncf %36 : vector<16x128xf32> to vector<16x128xbf16>
    %c0_13 = arith.constant 0 : index
    %c0_14 = arith.constant 0 : index
    %38 = vector.load %arg8[%c0_13, %c0_14] : memref<128x896xbf16, #tpu.memory_space<vmem>>, vector<128x128xbf16>
    %cst_15 = arith.constant dense<0.000000e+00> : vector<16x128xf32>
    %39 = tpu.matmul %37, %38, %cst_15 {dimension_numbers = #tpu.dot_dimension_numbers<[1], [0], [0], [1], [0, 0, 1, 1], [], []>} : vector<16x128xbf16>, vector<128x128xbf16>, vector<16x128xf32> -> vector<16x128xf32>
    %40 = vector.extract_strided_slice %0 {offsets = [0, 0], sizes = [1, 128], strides = [1, 1]} : vector<13x128xf32> to vector<1x128xf32>
    %41 = vector.broadcast %40 : vector<1x128xf32> to vector<16x128xf32>
    %42 = arith.addf %39, %41 : vector<16x128xf32>
    %43 = arith.truncf %8 : vector<16x128xf32> to vector<16x128xbf16>
    %c0_16 = arith.constant 0 : index
    %c128 = arith.constant 128 : index
    %44 = vector.load %arg8[%c0_16, %c128] : memref<128x896xbf16, #tpu.memory_space<vmem>>, vector<128x256xbf16>
    %cst_17 = arith.constant dense<0.000000e+00> : vector<16x256xf32>
    %45 = tpu.matmul %43, %44, %cst_17 {dimension_numbers = #tpu.dot_dimension_numbers<[1], [0], [0], [1], [0, 0, 1, 1], [], []>} : vector<16x128xbf16>, vector<128x256xbf16>, vector<16x256xf32> -> vector<16x256xf32>
    %46 = vector.extract_strided_slice %45 {offsets = [0, 0], sizes = [16, 128], strides = [1, 1]} : vector<16x256xf32> to vector<16x128xf32>
    %47 = vector.extract_strided_slice %0 {offsets = [1, 0], sizes = [1, 128], strides = [1, 1]} : vector<13x128xf32> to vector<1x128xf32>
    %48 = vector.broadcast %47 : vector<1x128xf32> to vector<16x128xf32>
    %49 = arith.addf %46, %48 : vector<16x128xf32>
    %50 = vector.extract_strided_slice %45 {offsets = [0, 128], sizes = [16, 128], strides = [1, 1]} : vector<16x256xf32> to vector<16x128xf32>
    %51 = vector.extract_strided_slice %0 {offsets = [2, 0], sizes = [1, 128], strides = [1, 1]} : vector<13x128xf32> to vector<1x128xf32>
    %52 = vector.broadcast %51 : vector<1x128xf32> to vector<16x128xf32>
    %53 = arith.addf %50, %52 : vector<16x128xf32>
    %54 = vector.extract_strided_slice %0 {offsets = [9, 0], sizes = [1, 128], strides = [1, 1]} : vector<13x128xf32> to vector<1x128xf32>
    %55 = vector.extract_strided_slice %0 {offsets = [10, 0], sizes = [1, 128], strides = [1, 1]} : vector<13x128xf32> to vector<1x128xf32>
    %56 = vector.broadcast %5 : vector<1x128xf32> to vector<16x128xf32>
    %57 = arith.mulf %10, %56 : vector<16x128xf32>
    %cst_18 = arith.constant dense<0.000000e+00> : vector<16xf32>
    %58 = vector.multi_reduction <add>, %57, %cst_18 [1] : vector<16x128xf32> to vector<16xf32>
    %59 = vector.shape_cast %58 : vector<16xf32> to vector<16x1xf32>
    %cst_19 = arith.constant 3.125000e-02 : f32
    %60 = vector.broadcast %cst_19 : f32 to vector<16x1xf32>
    %61 = arith.mulf %59, %60 : vector<16x1xf32>
    %62 = vector.broadcast %61 : vector<16x1xf32> to vector<16x128xf32>
    %63 = arith.subf %10, %62 : vector<16x128xf32>
    %64 = vector.broadcast %5 : vector<1x128xf32> to vector<16x128xf32>
    %65 = arith.mulf %63, %64 : vector<16x128xf32>
    %66 = arith.mulf %65, %65 : vector<16x128xf32>
    %cst_20 = arith.constant dense<0.000000e+00> : vector<16xf32>
    %67 = vector.multi_reduction <add>, %66, %cst_20 [1] : vector<16x128xf32> to vector<16xf32>
    %68 = vector.shape_cast %67 : vector<16xf32> to vector<16x1xf32>
    %cst_21 = arith.constant 3.125000e-02 : f32
    %69 = vector.broadcast %cst_21 : f32 to vector<16x1xf32>
    %70 = arith.mulf %68, %69 : vector<16x1xf32>
    %cst_22 = arith.constant 9.99999993E-9 : f32
    %71 = vector.broadcast %cst_22 : f32 to vector<16x1xf32>
    %72 = arith.addf %70, %71 : vector<16x1xf32>
    %73 = math.rsqrt %72 : vector<16x1xf32>
    %74 = vector.broadcast %73 : vector<16x1xf32> to vector<16x128xf32>
    %75 = arith.mulf %65, %74 : vector<16x128xf32>
    %76 = vector.broadcast %54 : vector<1x128xf32> to vector<16x128xf32>
    %77 = arith.mulf %75, %76 : vector<16x128xf32>
    %78 = vector.broadcast %55 : vector<1x128xf32> to vector<16x128xf32>
    %79 = arith.addf %77, %78 : vector<16x128xf32>
    %80 = arith.truncf %79 : vector<16x128xf32> to vector<16x128xbf16>
    %c0_23 = arith.constant 0 : index
    %c384 = arith.constant 384 : index
    %81 = vector.load %arg8[%c0_23, %c384] : memref<128x896xbf16, #tpu.memory_space<vmem>>, vector<128x128xbf16>
    %cst_24 = arith.constant dense<0.000000e+00> : vector<16x128xf32>
    %82 = tpu.matmul %80, %81, %cst_24 {dimension_numbers = #tpu.dot_dimension_numbers<[1], [0], [0], [1], [0, 0, 1, 1], [], []>} : vector<16x128xbf16>, vector<128x128xbf16>, vector<16x128xf32> -> vector<16x128xf32>
    %83 = vector.extract_strided_slice %0 {offsets = [3, 0], sizes = [1, 128], strides = [1, 1]} : vector<13x128xf32> to vector<1x128xf32>
    %84 = vector.broadcast %83 : vector<1x128xf32> to vector<16x128xf32>
    %85 = arith.addf %82, %84 : vector<16x128xf32>
    %86 = arith.truncf %10 : vector<16x128xf32> to vector<16x128xbf16>
    %c0_25 = arith.constant 0 : index
    %c512 = arith.constant 512 : index
    %87 = vector.load %arg8[%c0_25, %c512] : memref<128x896xbf16, #tpu.memory_space<vmem>>, vector<128x256xbf16>
    %cst_26 = arith.constant dense<0.000000e+00> : vector<16x256xf32>
    %88 = tpu.matmul %86, %87, %cst_26 {dimension_numbers = #tpu.dot_dimension_numbers<[1], [0], [0], [1], [0, 0, 1, 1], [], []>} : vector<16x128xbf16>, vector<128x256xbf16>, vector<16x256xf32> -> vector<16x256xf32>
    %89 = vector.extract_strided_slice %88 {offsets = [0, 0], sizes = [16, 128], strides = [1, 1]} : vector<16x256xf32> to vector<16x128xf32>
    %90 = vector.extract_strided_slice %0 {offsets = [4, 0], sizes = [1, 128], strides = [1, 1]} : vector<13x128xf32> to vector<1x128xf32>
    %91 = vector.broadcast %90 : vector<1x128xf32> to vector<16x128xf32>
    %92 = arith.addf %89, %91 : vector<16x128xf32>
    %93 = vector.extract_strided_slice %88 {offsets = [0, 128], sizes = [16, 128], strides = [1, 1]} : vector<16x256xf32> to vector<16x128xf32>
    %94 = vector.extract_strided_slice %0 {offsets = [5, 0], sizes = [1, 128], strides = [1, 1]} : vector<13x128xf32> to vector<1x128xf32>
    %95 = vector.broadcast %94 : vector<1x128xf32> to vector<16x128xf32>
    %96 = arith.addf %93, %95 : vector<16x128xf32>
    %c2_i32 = arith.constant 2 : i32
    %97 = arith.muli %arg0, %c2_i32 : i32
    %c0_i32 = arith.constant 0 : i32
    %98 = arith.addi %97, %c0_i32 : i32
    %c0_27 = arith.constant 0 : index
    %c0_28 = arith.constant 0 : index
    %c0_29 = arith.constant 0 : index
    %99 = vector.load %arg5[%c0_27, %c0_28, %c0_29] : memref<2x8x4xi32, #tpu.memory_space<vmem>>, vector<1x8x4xi32>
    %100 = vector.shape_cast %99 : vector<1x8x4xi32> to vector<8x4xi32>
    %c0_30 = arith.constant 0 : index
    %c0_31 = arith.constant 0 : index
    %c0_32 = arith.constant 0 : index
    %101 = vector.load %arg6[%c0_30, %c0_31, %c0_32] : memref<2x4x8xi32, #tpu.memory_space<vmem>>, vector<1x4x8xi32>
    %102 = vector.shape_cast %101 : vector<1x4x8xi32> to vector<4x8xi32>
    %c0_i32_33 = arith.constant 0 : i32
    %103 = vector.broadcast %c0_i32_33 : i32 to vector<8x8xi32>
    %104 = vector.extract_strided_slice %100 {offsets = [0, 0], sizes = [8, 1], strides = [1, 1]} : vector<8x4xi32> to vector<8x1xi32>
    %105 = vector.extract_strided_slice %102 {offsets = [0, 0], sizes = [1, 8], strides = [1, 1]} : vector<4x8xi32> to vector<1x8xi32>
    %106 = vector.broadcast %104 : vector<8x1xi32> to vector<8x8xi32>
    %107 = vector.broadcast %105 : vector<1x8xi32> to vector<8x8xi32>
    %108 = arith.cmpi ne, %106, %107 : vector<8x8xi32>
    %109 = arith.extui %108 : vector<8x8xi1> to vector<8x8xi32>
    %110 = arith.addi %103, %109 : vector<8x8xi32>
    %111 = vector.extract_strided_slice %100 {offsets = [0, 1], sizes = [8, 1], strides = [1, 1]} : vector<8x4xi32> to vector<8x1xi32>
    %112 = vector.extract_strided_slice %102 {offsets = [1, 0], sizes = [1, 8], strides = [1, 1]} : vector<4x8xi32> to vector<1x8xi32>
    %113 = vector.broadcast %111 : vector<8x1xi32> to vector<8x8xi32>
    %114 = vector.broadcast %112 : vector<1x8xi32> to vector<8x8xi32>
    %115 = arith.cmpi ne, %113, %114 : vector<8x8xi32>
    %116 = arith.extui %115 : vector<8x8xi1> to vector<8x8xi32>
    %117 = arith.addi %110, %116 : vector<8x8xi32>
    %118 = vector.extract_strided_slice %100 {offsets = [0, 2], sizes = [8, 1], strides = [1, 1]} : vector<8x4xi32> to vector<8x1xi32>
    %119 = vector.extract_strided_slice %102 {offsets = [2, 0], sizes = [1, 8], strides = [1, 1]} : vector<4x8xi32> to vector<1x8xi32>
    %120 = vector.broadcast %118 : vector<8x1xi32> to vector<8x8xi32>
    %121 = vector.broadcast %119 : vector<1x8xi32> to vector<8x8xi32>
    %122 = arith.cmpi ne, %120, %121 : vector<8x8xi32>
    %123 = arith.extui %122 : vector<8x8xi1> to vector<8x8xi32>
    %124 = arith.addi %117, %123 : vector<8x8xi32>
    %125 = vector.extract_strided_slice %100 {offsets = [0, 3], sizes = [8, 1], strides = [1, 1]} : vector<8x4xi32> to vector<8x1xi32>
    %126 = vector.extract_strided_slice %102 {offsets = [3, 0], sizes = [1, 8], strides = [1, 1]} : vector<4x8xi32> to vector<1x8xi32>
    %127 = vector.broadcast %125 : vector<8x1xi32> to vector<8x8xi32>
    %128 = vector.broadcast %126 : vector<1x8xi32> to vector<8x8xi32>
    %129 = arith.cmpi ne, %127, %128 : vector<8x8xi32>
    %130 = arith.extui %129 : vector<8x8xi1> to vector<8x8xi32>
    %131 = arith.addi %124, %130 : vector<8x8xi32>
    %c4_i32 = arith.constant 4 : i32
    %132 = vector.broadcast %c4_i32 : i32 to vector<8x8xi32>
    %133 = arith.muli %131, %132 : vector<8x8xi32>
    %c5_i32 = arith.constant 5 : i32
    %134 = arith.muli %98, %c5_i32 : i32
    %cst_34 = arith.constant 0.000000e+00 : f32
    %135 = vector.broadcast %cst_34 : f32 to vector<8x8xf32>
    %c0_i32_35 = arith.constant 0 : i32
    %136 = vector.broadcast %c0_i32_35 : i32 to vector<8x8xi32>
    %137 = arith.cmpi sge, %133, %136 : vector<8x8xi32>
    %c4_i32_36 = arith.constant 4 : i32
    %138 = vector.broadcast %c4_i32_36 : i32 to vector<8x8xi32>
    %139 = arith.cmpi slt, %133, %138 : vector<8x8xi32>
    %140 = arith.andi %137, %139 : vector<8x8xi1>
    %c0_i32_37 = arith.constant 0 : i32
    %141 = arith.addi %134, %c0_i32_37 : i32
    %142 = arith.index_cast %141 : i32 to index
    %143 = memref.load %arg1[%142] : memref<10xf32, #tpu.memory_space<smem>>
    %144 = vector.broadcast %143 : f32 to vector<8x8xf32>
    %145 = arith.select %140, %144, %135 : vector<8x8xi1>, vector<8x8xf32>
    %c4_i32_38 = arith.constant 4 : i32
    %146 = vector.broadcast %c4_i32_38 : i32 to vector<8x8xi32>
    %147 = arith.cmpi sge, %133, %146 : vector<8x8xi32>
    %c8_i32 = arith.constant 8 : i32
    %148 = vector.broadcast %c8_i32 : i32 to vector<8x8xi32>
    %149 = arith.cmpi slt, %133, %148 : vector<8x8xi32>
    %150 = arith.andi %147, %149 : vector<8x8xi1>
    %c1_i32 = arith.constant 1 : i32
    %151 = arith.addi %134, %c1_i32 : i32
    %152 = arith.index_cast %151 : i32 to index
    %153 = memref.load %arg1[%152] : memref<10xf32, #tpu.memory_space<smem>>
    %154 = vector.broadcast %153 : f32 to vector<8x8xf32>
    %155 = arith.select %150, %154, %145 : vector<8x8xi1>, vector<8x8xf32>
    %c8_i32_39 = arith.constant 8 : i32
    %156 = vector.broadcast %c8_i32_39 : i32 to vector<8x8xi32>
    %157 = arith.cmpi sge, %133, %156 : vector<8x8xi32>
    %c12_i32 = arith.constant 12 : i32
    %158 = vector.broadcast %c12_i32 : i32 to vector<8x8xi32>
    %159 = arith.cmpi slt, %133, %158 : vector<8x8xi32>
    %160 = arith.andi %157, %159 : vector<8x8xi1>
    %c2_i32_40 = arith.constant 2 : i32
    %161 = arith.addi %134, %c2_i32_40 : i32
    %162 = arith.index_cast %161 : i32 to index
    %163 = memref.load %arg1[%162] : memref<10xf32, #tpu.memory_space<smem>>
    %164 = vector.broadcast %163 : f32 to vector<8x8xf32>
    %165 = arith.select %160, %164, %155 : vector<8x8xi1>, vector<8x8xf32>
    %c12_i32_41 = arith.constant 12 : i32
    %166 = vector.broadcast %c12_i32_41 : i32 to vector<8x8xi32>
    %167 = arith.cmpi sge, %133, %166 : vector<8x8xi32>
    %c16_i32 = arith.constant 16 : i32
    %168 = vector.broadcast %c16_i32 : i32 to vector<8x8xi32>
    %169 = arith.cmpi slt, %133, %168 : vector<8x8xi32>
    %170 = arith.andi %167, %169 : vector<8x8xi1>
    %c3_i32 = arith.constant 3 : i32
    %171 = arith.addi %134, %c3_i32 : i32
    %172 = arith.index_cast %171 : i32 to index
    %173 = memref.load %arg1[%172] : memref<10xf32, #tpu.memory_space<smem>>
    %174 = vector.broadcast %173 : f32 to vector<8x8xf32>
    %175 = arith.select %170, %174, %165 : vector<8x8xi1>, vector<8x8xf32>
    %c16_i32_42 = arith.constant 16 : i32
    %176 = vector.broadcast %c16_i32_42 : i32 to vector<8x8xi32>
    %177 = arith.cmpi sge, %133, %176 : vector<8x8xi32>
    %c20_i32 = arith.constant 20 : i32
    %178 = vector.broadcast %c20_i32 : i32 to vector<8x8xi32>
    %179 = arith.cmpi slt, %133, %178 : vector<8x8xi32>
    %180 = arith.andi %177, %179 : vector<8x8xi1>
    %c4_i32_43 = arith.constant 4 : i32
    %181 = arith.addi %134, %c4_i32_43 : i32
    %182 = arith.index_cast %181 : i32 to index
    %183 = memref.load %arg1[%182] : memref<10xf32, #tpu.memory_space<smem>>
    %184 = vector.broadcast %183 : f32 to vector<8x8xf32>
    %185 = arith.select %180, %184, %175 : vector<8x8xi1>, vector<8x8xf32>
    %cst_44 = arith.constant 0.176776692 : f32
    %186 = vector.broadcast %cst_44 : f32 to vector<8x8xf32>
    %187 = arith.mulf %185, %186 : vector<8x8xf32>
    %188 = arith.addf %187, %6 : vector<8x8xf32>
    %cst_45 = arith.constant dense<0xFF800000> : vector<8xf32>
    %189 = vector.multi_reduction <maximumf>, %188, %cst_45 [1] : vector<8x8xf32> to vector<8xf32>
    %190 = vector.shape_cast %189 : vector<8xf32> to vector<8x1xf32>
    %191 = vector.broadcast %190 : vector<8x1xf32> to vector<8x8xf32>
    %192 = arith.subf %188, %191 : vector<8x8xf32>
    %193 = math.exp %192 : vector<8x8xf32>
    %cst_46 = arith.constant dense<0.000000e+00> : vector<8xf32>
    %194 = vector.multi_reduction <add>, %193, %cst_46 [1] : vector<8x8xf32> to vector<8xf32>
    %195 = vector.shape_cast %194 : vector<8xf32> to vector<8x1xf32>
    %196 = vector.broadcast %195 : vector<8x1xf32> to vector<8x8xf32>
    %197 = arith.divf %193, %196 : vector<8x8xf32>
    %198 = vector.extract_strided_slice %42 {offsets = [0, 0], sizes = [8, 128], strides = [1, 1]} : vector<16x128xf32> to vector<8x128xf32>
    %199 = vector.extract_strided_slice %49 {offsets = [0, 0], sizes = [8, 128], strides = [1, 1]} : vector<16x128xf32> to vector<8x128xf32>
    %200 = vector.extract_strided_slice %53 {offsets = [0, 0], sizes = [8, 128], strides = [1, 1]} : vector<16x128xf32> to vector<8x128xf32>
    %201 = arith.truncf %198 : vector<8x128xf32> to vector<8x128xbf16>
    %202 = arith.truncf %199 : vector<8x128xf32> to vector<8x128xbf16>
    %cst_47 = arith.constant dense<0.000000e+00> : vector<8x8xf32>
    %203 = tpu.matmul %201, %202, %cst_47 {dimension_numbers = #tpu.dot_dimension_numbers<[1], [1], [0], [0], [0, 0, 1, 0], [], []>} : vector<8x128xbf16>, vector<8x128xbf16>, vector<8x8xf32> -> vector<8x8xf32>
    %204 = arith.addf %203, %6 : vector<8x8xf32>
    %cst_48 = arith.constant dense<0xFF800000> : vector<8xf32>
    %205 = vector.multi_reduction <maximumf>, %204, %cst_48 [1] : vector<8x8xf32> to vector<8xf32>
    %206 = vector.shape_cast %205 : vector<8xf32> to vector<8x1xf32>
    %207 = vector.broadcast %206 : vector<8x1xf32> to vector<8x8xf32>
    %208 = arith.subf %204, %207 : vector<8x8xf32>
    %209 = math.exp %208 : vector<8x8xf32>
    %cst_49 = arith.constant dense<0.000000e+00> : vector<8xf32>
    %210 = vector.multi_reduction <add>, %209, %cst_49 [1] : vector<8x8xf32> to vector<8xf32>
    %211 = vector.shape_cast %210 : vector<8xf32> to vector<8x1xf32>
    %212 = vector.broadcast %211 : vector<8x1xf32> to vector<8x8xf32>
    %213 = arith.divf %209, %212 : vector<8x8xf32>
    %214 = arith.addf %213, %197 : vector<8x8xf32>
    %215 = arith.truncf %214 : vector<8x8xf32> to vector<8x8xbf16>
    %216 = arith.truncf %200 : vector<8x128xf32> to vector<8x128xbf16>
    %cst_50 = arith.constant dense<0.000000e+00> : vector<8x128xf32>
    %217 = tpu.matmul %215, %216, %cst_50 {dimension_numbers = #tpu.dot_dimension_numbers<[1], [0], [0], [1], [0, 0, 1, 1], [], []>} : vector<8x8xbf16>, vector<8x128xbf16>, vector<8x128xf32> -> vector<8x128xf32>
    %218 = vector.extract_strided_slice %85 {offsets = [0, 0], sizes = [8, 128], strides = [1, 1]} : vector<16x128xf32> to vector<8x128xf32>
    %219 = vector.extract_strided_slice %92 {offsets = [0, 0], sizes = [8, 128], strides = [1, 1]} : vector<16x128xf32> to vector<8x128xf32>
    %220 = vector.extract_strided_slice %96 {offsets = [0, 0], sizes = [8, 128], strides = [1, 1]} : vector<16x128xf32> to vector<8x128xf32>
    %221 = arith.truncf %218 : vector<8x128xf32> to vector<8x128xbf16>
    %222 = arith.truncf %219 : vector<8x128xf32> to vector<8x128xbf16>
    %cst_51 = arith.constant dense<0.000000e+00> : vector<8x8xf32>
    %223 = tpu.matmul %221, %222, %cst_51 {dimension_numbers = #tpu.dot_dimension_numbers<[1], [1], [0], [0], [0, 0, 1, 0], [], []>} : vector<8x128xbf16>, vector<8x128xbf16>, vector<8x8xf32> -> vector<8x8xf32>
    %224 = arith.addf %223, %6 : vector<8x8xf32>
    %cst_52 = arith.constant dense<0xFF800000> : vector<8xf32>
    %225 = vector.multi_reduction <maximumf>, %224, %cst_52 [1] : vector<8x8xf32> to vector<8xf32>
    %226 = vector.shape_cast %225 : vector<8xf32> to vector<8x1xf32>
    %227 = vector.broadcast %226 : vector<8x1xf32> to vector<8x8xf32>
    %228 = arith.subf %224, %227 : vector<8x8xf32>
    %229 = math.exp %228 : vector<8x8xf32>
    %cst_53 = arith.constant dense<0.000000e+00> : vector<8xf32>
    %230 = vector.multi_reduction <add>, %229, %cst_53 [1] : vector<8x8xf32> to vector<8xf32>
    %231 = vector.shape_cast %230 : vector<8xf32> to vector<8x1xf32>
    %232 = vector.broadcast %231 : vector<8x1xf32> to vector<8x8xf32>
    %233 = arith.divf %229, %232 : vector<8x8xf32>
    %234 = arith.addf %233, %197 : vector<8x8xf32>
    %235 = arith.truncf %234 : vector<8x8xf32> to vector<8x8xbf16>
    %236 = arith.truncf %220 : vector<8x128xf32> to vector<8x128xbf16>
    %cst_54 = arith.constant dense<0.000000e+00> : vector<8x128xf32>
    %237 = tpu.matmul %235, %236, %cst_54 {dimension_numbers = #tpu.dot_dimension_numbers<[1], [0], [0], [1], [0, 0, 1, 1], [], []>} : vector<8x8xbf16>, vector<8x128xbf16>, vector<8x128xf32> -> vector<8x128xf32>
    %238 = arith.addf %217, %237 : vector<8x128xf32>
    %c2_i32_55 = arith.constant 2 : i32
    %239 = arith.muli %arg0, %c2_i32_55 : i32
    %c1_i32_56 = arith.constant 1 : i32
    %240 = arith.addi %239, %c1_i32_56 : i32
    %c1 = arith.constant 1 : index
    %c0_57 = arith.constant 0 : index
    %c0_58 = arith.constant 0 : index
    %241 = vector.load %arg5[%c1, %c0_57, %c0_58] : memref<2x8x4xi32, #tpu.memory_space<vmem>>, vector<1x8x4xi32>
    %242 = vector.shape_cast %241 : vector<1x8x4xi32> to vector<8x4xi32>
    %c1_59 = arith.constant 1 : index
    %c0_60 = arith.constant 0 : index
    %c0_61 = arith.constant 0 : index
    %243 = vector.load %arg6[%c1_59, %c0_60, %c0_61] : memref<2x4x8xi32, #tpu.memory_space<vmem>>, vector<1x4x8xi32>
    %244 = vector.shape_cast %243 : vector<1x4x8xi32> to vector<4x8xi32>
    %c0_i32_62 = arith.constant 0 : i32
    %245 = vector.broadcast %c0_i32_62 : i32 to vector<8x8xi32>
    %246 = vector.extract_strided_slice %242 {offsets = [0, 0], sizes = [8, 1], strides = [1, 1]} : vector<8x4xi32> to vector<8x1xi32>
    %247 = vector.extract_strided_slice %244 {offsets = [0, 0], sizes = [1, 8], strides = [1, 1]} : vector<4x8xi32> to vector<1x8xi32>
    %248 = vector.broadcast %246 : vector<8x1xi32> to vector<8x8xi32>
    %249 = vector.broadcast %247 : vector<1x8xi32> to vector<8x8xi32>
    %250 = arith.cmpi ne, %248, %249 : vector<8x8xi32>
    %251 = arith.extui %250 : vector<8x8xi1> to vector<8x8xi32>
    %252 = arith.addi %245, %251 : vector<8x8xi32>
    %253 = vector.extract_strided_slice %242 {offsets = [0, 1], sizes = [8, 1], strides = [1, 1]} : vector<8x4xi32> to vector<8x1xi32>
    %254 = vector.extract_strided_slice %244 {offsets = [1, 0], sizes = [1, 8], strides = [1, 1]} : vector<4x8xi32> to vector<1x8xi32>
    %255 = vector.broadcast %253 : vector<8x1xi32> to vector<8x8xi32>
    %256 = vector.broadcast %254 : vector<1x8xi32> to vector<8x8xi32>
    %257 = arith.cmpi ne, %255, %256 : vector<8x8xi32>
    %258 = arith.extui %257 : vector<8x8xi1> to vector<8x8xi32>
    %259 = arith.addi %252, %258 : vector<8x8xi32>
    %260 = vector.extract_strided_slice %242 {offsets = [0, 2], sizes = [8, 1], strides = [1, 1]} : vector<8x4xi32> to vector<8x1xi32>
    %261 = vector.extract_strided_slice %244 {offsets = [2, 0], sizes = [1, 8], strides = [1, 1]} : vector<4x8xi32> to vector<1x8xi32>
    %262 = vector.broadcast %260 : vector<8x1xi32> to vector<8x8xi32>
    %263 = vector.broadcast %261 : vector<1x8xi32> to vector<8x8xi32>
    %264 = arith.cmpi ne, %262, %263 : vector<8x8xi32>
    %265 = arith.extui %264 : vector<8x8xi1> to vector<8x8xi32>
    %266 = arith.addi %259, %265 : vector<8x8xi32>
    %267 = vector.extract_strided_slice %242 {offsets = [0, 3], sizes = [8, 1], strides = [1, 1]} : vector<8x4xi32> to vector<8x1xi32>
    %268 = vector.extract_strided_slice %244 {offsets = [3, 0], sizes = [1, 8], strides = [1, 1]} : vector<4x8xi32> to vector<1x8xi32>
    %269 = vector.broadcast %267 : vector<8x1xi32> to vector<8x8xi32>
    %270 = vector.broadcast %268 : vector<1x8xi32> to vector<8x8xi32>
    %271 = arith.cmpi ne, %269, %270 : vector<8x8xi32>
    %272 = arith.extui %271 : vector<8x8xi1> to vector<8x8xi32>
    %273 = arith.addi %266, %272 : vector<8x8xi32>
    %c4_i32_63 = arith.constant 4 : i32
    %274 = vector.broadcast %c4_i32_63 : i32 to vector<8x8xi32>
    %275 = arith.muli %273, %274 : vector<8x8xi32>
    %c5_i32_64 = arith.constant 5 : i32
    %276 = arith.muli %240, %c5_i32_64 : i32
    %cst_65 = arith.constant 0.000000e+00 : f32
    %277 = vector.broadcast %cst_65 : f32 to vector<8x8xf32>
    %c0_i32_66 = arith.constant 0 : i32
    %278 = vector.broadcast %c0_i32_66 : i32 to vector<8x8xi32>
    %279 = arith.cmpi sge, %275, %278 : vector<8x8xi32>
    %c4_i32_67 = arith.constant 4 : i32
    %280 = vector.broadcast %c4_i32_67 : i32 to vector<8x8xi32>
    %281 = arith.cmpi slt, %275, %280 : vector<8x8xi32>
    %282 = arith.andi %279, %281 : vector<8x8xi1>
    %c0_i32_68 = arith.constant 0 : i32
    %283 = arith.addi %276, %c0_i32_68 : i32
    %284 = arith.index_cast %283 : i32 to index
    %285 = memref.load %arg1[%284] : memref<10xf32, #tpu.memory_space<smem>>
    %286 = vector.broadcast %285 : f32 to vector<8x8xf32>
    %287 = arith.select %282, %286, %277 : vector<8x8xi1>, vector<8x8xf32>
    %c4_i32_69 = arith.constant 4 : i32
    %288 = vector.broadcast %c4_i32_69 : i32 to vector<8x8xi32>
    %289 = arith.cmpi sge, %275, %288 : vector<8x8xi32>
    %c8_i32_70 = arith.constant 8 : i32
    %290 = vector.broadcast %c8_i32_70 : i32 to vector<8x8xi32>
    %291 = arith.cmpi slt, %275, %290 : vector<8x8xi32>
    %292 = arith.andi %289, %291 : vector<8x8xi1>
    %c1_i32_71 = arith.constant 1 : i32
    %293 = arith.addi %276, %c1_i32_71 : i32
    %294 = arith.index_cast %293 : i32 to index
    %295 = memref.load %arg1[%294] : memref<10xf32, #tpu.memory_space<smem>>
    %296 = vector.broadcast %295 : f32 to vector<8x8xf32>
    %297 = arith.select %292, %296, %287 : vector<8x8xi1>, vector<8x8xf32>
    %c8_i32_72 = arith.constant 8 : i32
    %298 = vector.broadcast %c8_i32_72 : i32 to vector<8x8xi32>
    %299 = arith.cmpi sge, %275, %298 : vector<8x8xi32>
    %c12_i32_73 = arith.constant 12 : i32
    %300 = vector.broadcast %c12_i32_73 : i32 to vector<8x8xi32>
    %301 = arith.cmpi slt, %275, %300 : vector<8x8xi32>
    %302 = arith.andi %299, %301 : vector<8x8xi1>
    %c2_i32_74 = arith.constant 2 : i32
    %303 = arith.addi %276, %c2_i32_74 : i32
    %304 = arith.index_cast %303 : i32 to index
    %305 = memref.load %arg1[%304] : memref<10xf32, #tpu.memory_space<smem>>
    %306 = vector.broadcast %305 : f32 to vector<8x8xf32>
    %307 = arith.select %302, %306, %297 : vector<8x8xi1>, vector<8x8xf32>
    %c12_i32_75 = arith.constant 12 : i32
    %308 = vector.broadcast %c12_i32_75 : i32 to vector<8x8xi32>
    %309 = arith.cmpi sge, %275, %308 : vector<8x8xi32>
    %c16_i32_76 = arith.constant 16 : i32
    %310 = vector.broadcast %c16_i32_76 : i32 to vector<8x8xi32>
    %311 = arith.cmpi slt, %275, %310 : vector<8x8xi32>
    %312 = arith.andi %309, %311 : vector<8x8xi1>
    %c3_i32_77 = arith.constant 3 : i32
    %313 = arith.addi %276, %c3_i32_77 : i32
    %314 = arith.index_cast %313 : i32 to index
    %315 = memref.load %arg1[%314] : memref<10xf32, #tpu.memory_space<smem>>
    %316 = vector.broadcast %315 : f32 to vector<8x8xf32>
    %317 = arith.select %312, %316, %307 : vector<8x8xi1>, vector<8x8xf32>
    %c16_i32_78 = arith.constant 16 : i32
    %318 = vector.broadcast %c16_i32_78 : i32 to vector<8x8xi32>
    %319 = arith.cmpi sge, %275, %318 : vector<8x8xi32>
    %c20_i32_79 = arith.constant 20 : i32
    %320 = vector.broadcast %c20_i32_79 : i32 to vector<8x8xi32>
    %321 = arith.cmpi slt, %275, %320 : vector<8x8xi32>
    %322 = arith.andi %319, %321 : vector<8x8xi1>
    %c4_i32_80 = arith.constant 4 : i32
    %323 = arith.addi %276, %c4_i32_80 : i32
    %324 = arith.index_cast %323 : i32 to index
    %325 = memref.load %arg1[%324] : memref<10xf32, #tpu.memory_space<smem>>
    %326 = vector.broadcast %325 : f32 to vector<8x8xf32>
    %327 = arith.select %322, %326, %317 : vector<8x8xi1>, vector<8x8xf32>
    %cst_81 = arith.constant 0.176776692 : f32
    %328 = vector.broadcast %cst_81 : f32 to vector<8x8xf32>
    %329 = arith.mulf %327, %328 : vector<8x8xf32>
    %330 = arith.addf %329, %6 : vector<8x8xf32>
    %cst_82 = arith.constant dense<0xFF800000> : vector<8xf32>
    %331 = vector.multi_reduction <maximumf>, %330, %cst_82 [1] : vector<8x8xf32> to vector<8xf32>
    %332 = vector.shape_cast %331 : vector<8xf32> to vector<8x1xf32>
    %333 = vector.broadcast %332 : vector<8x1xf32> to vector<8x8xf32>
    %334 = arith.subf %330, %333 : vector<8x8xf32>
    %335 = math.exp %334 : vector<8x8xf32>
    %cst_83 = arith.constant dense<0.000000e+00> : vector<8xf32>
    %336 = vector.multi_reduction <add>, %335, %cst_83 [1] : vector<8x8xf32> to vector<8xf32>
    %337 = vector.shape_cast %336 : vector<8xf32> to vector<8x1xf32>
    %338 = vector.broadcast %337 : vector<8x1xf32> to vector<8x8xf32>
    %339 = arith.divf %335, %338 : vector<8x8xf32>
    %340 = vector.extract_strided_slice %42 {offsets = [8, 0], sizes = [8, 128], strides = [1, 1]} : vector<16x128xf32> to vector<8x128xf32>
    %341 = vector.extract_strided_slice %49 {offsets = [8, 0], sizes = [8, 128], strides = [1, 1]} : vector<16x128xf32> to vector<8x128xf32>
    %342 = vector.extract_strided_slice %53 {offsets = [8, 0], sizes = [8, 128], strides = [1, 1]} : vector<16x128xf32> to vector<8x128xf32>
    %343 = arith.truncf %340 : vector<8x128xf32> to vector<8x128xbf16>
    %344 = arith.truncf %341 : vector<8x128xf32> to vector<8x128xbf16>
    %cst_84 = arith.constant dense<0.000000e+00> : vector<8x8xf32>
    %345 = tpu.matmul %343, %344, %cst_84 {dimension_numbers = #tpu.dot_dimension_numbers<[1], [1], [0], [0], [0, 0, 1, 0], [], []>} : vector<8x128xbf16>, vector<8x128xbf16>, vector<8x8xf32> -> vector<8x8xf32>
    %346 = arith.addf %345, %6 : vector<8x8xf32>
    %cst_85 = arith.constant dense<0xFF800000> : vector<8xf32>
    %347 = vector.multi_reduction <maximumf>, %346, %cst_85 [1] : vector<8x8xf32> to vector<8xf32>
    %348 = vector.shape_cast %347 : vector<8xf32> to vector<8x1xf32>
    %349 = vector.broadcast %348 : vector<8x1xf32> to vector<8x8xf32>
    %350 = arith.subf %346, %349 : vector<8x8xf32>
    %351 = math.exp %350 : vector<8x8xf32>
    %cst_86 = arith.constant dense<0.000000e+00> : vector<8xf32>
    %352 = vector.multi_reduction <add>, %351, %cst_86 [1] : vector<8x8xf32> to vector<8xf32>
    %353 = vector.shape_cast %352 : vector<8xf32> to vector<8x1xf32>
    %354 = vector.broadcast %353 : vector<8x1xf32> to vector<8x8xf32>
    %355 = arith.divf %351, %354 : vector<8x8xf32>
    %356 = arith.addf %355, %339 : vector<8x8xf32>
    %357 = arith.truncf %356 : vector<8x8xf32> to vector<8x8xbf16>
    %358 = arith.truncf %342 : vector<8x128xf32> to vector<8x128xbf16>
    %cst_87 = arith.constant dense<0.000000e+00> : vector<8x128xf32>
    %359 = tpu.matmul %357, %358, %cst_87 {dimension_numbers = #tpu.dot_dimension_numbers<[1], [0], [0], [1], [0, 0, 1, 1], [], []>} : vector<8x8xbf16>, vector<8x128xbf16>, vector<8x128xf32> -> vector<8x128xf32>
    %360 = vector.extract_strided_slice %85 {offsets = [8, 0], sizes = [8, 128], strides = [1, 1]} : vector<16x128xf32> to vector<8x128xf32>
    %361 = vector.extract_strided_slice %92 {offsets = [8, 0], sizes = [8, 128], strides = [1, 1]} : vector<16x128xf32> to vector<8x128xf32>
    %362 = vector.extract_strided_slice %96 {offsets = [8, 0], sizes = [8, 128], strides = [1, 1]} : vector<16x128xf32> to vector<8x128xf32>
    %363 = arith.truncf %360 : vector<8x128xf32> to vector<8x128xbf16>
    %364 = arith.truncf %361 : vector<8x128xf32> to vector<8x128xbf16>
    %cst_88 = arith.constant dense<0.000000e+00> : vector<8x8xf32>
    %365 = tpu.matmul %363, %364, %cst_88 {dimension_numbers = #tpu.dot_dimension_numbers<[1], [1], [0], [0], [0, 0, 1, 0], [], []>} : vector<8x128xbf16>, vector<8x128xbf16>, vector<8x8xf32> -> vector<8x8xf32>
    %366 = arith.addf %365, %6 : vector<8x8xf32>
    %cst_89 = arith.constant dense<0xFF800000> : vector<8xf32>
    %367 = vector.multi_reduction <maximumf>, %366, %cst_89 [1] : vector<8x8xf32> to vector<8xf32>
    %368 = vector.shape_cast %367 : vector<8xf32> to vector<8x1xf32>
    %369 = vector.broadcast %368 : vector<8x1xf32> to vector<8x8xf32>
    %370 = arith.subf %366, %369 : vector<8x8xf32>
    %371 = math.exp %370 : vector<8x8xf32>
    %cst_90 = arith.constant dense<0.000000e+00> : vector<8xf32>
    %372 = vector.multi_reduction <add>, %371, %cst_90 [1] : vector<8x8xf32> to vector<8xf32>
    %373 = vector.shape_cast %372 : vector<8xf32> to vector<8x1xf32>
    %374 = vector.broadcast %373 : vector<8x1xf32> to vector<8x8xf32>
    %375 = arith.divf %371, %374 : vector<8x8xf32>
    %376 = arith.addf %375, %339 : vector<8x8xf32>
    %377 = arith.truncf %376 : vector<8x8xf32> to vector<8x8xbf16>
    %378 = arith.truncf %362 : vector<8x128xf32> to vector<8x128xbf16>
    %cst_91 = arith.constant dense<0.000000e+00> : vector<8x128xf32>
    %379 = tpu.matmul %377, %378, %cst_91 {dimension_numbers = #tpu.dot_dimension_numbers<[1], [0], [0], [1], [0, 0, 1, 1], [], []>} : vector<8x8xbf16>, vector<8x128xbf16>, vector<8x128xf32> -> vector<8x128xf32>
    %380 = arith.addf %359, %379 : vector<8x128xf32>
    %381 = tpu.concatenate %238, %380 in 0 : vector<8x128xf32>, vector<8x128xf32> -> vector<16x128xf32>
    %382 = arith.truncf %381 : vector<16x128xf32> to vector<16x128xbf16>
    %c0_92 = arith.constant 0 : index
    %c768 = arith.constant 768 : index
    %383 = vector.load %arg8[%c0_92, %c768] : memref<128x896xbf16, #tpu.memory_space<vmem>>, vector<128x128xbf16>
    %cst_93 = arith.constant dense<0.000000e+00> : vector<16x128xf32>
    %384 = tpu.matmul %382, %383, %cst_93 {dimension_numbers = #tpu.dot_dimension_numbers<[1], [0], [0], [1], [0, 0, 1, 1], [], []>} : vector<16x128xbf16>, vector<128x128xbf16>, vector<16x128xf32> -> vector<16x128xf32>
    %385 = vector.extract_strided_slice %0 {offsets = [6, 0], sizes = [1, 128], strides = [1, 1]} : vector<13x128xf32> to vector<1x128xf32>
    %386 = vector.broadcast %385 : vector<1x128xf32> to vector<16x128xf32>
    %387 = arith.addf %384, %386 : vector<16x128xf32>
    %c0_94 = arith.constant 0 : index
    %c0_95 = arith.constant 0 : index
    %c0_96 = arith.constant 0 : index
    %388 = vector.load %arg4[%c0_94, %c0_95, %c0_96] : memref<2x8x128xf32, #tpu.memory_space<vmem>>, vector<2x8x128xf32>
    %389 = vector.shape_cast %388 : vector<2x8x128xf32> to vector<16x128xf32>
    %390 = arith.addf %387, %389 : vector<16x128xf32>
    %391 = vector.extract_strided_slice %0 {offsets = [11, 0], sizes = [1, 128], strides = [1, 1]} : vector<13x128xf32> to vector<1x128xf32>
    %392 = vector.extract_strided_slice %0 {offsets = [12, 0], sizes = [1, 128], strides = [1, 1]} : vector<13x128xf32> to vector<1x128xf32>
    %393 = vector.broadcast %5 : vector<1x128xf32> to vector<16x128xf32>
    %394 = arith.mulf %390, %393 : vector<16x128xf32>
    %cst_97 = arith.constant dense<0.000000e+00> : vector<16xf32>
    %395 = vector.multi_reduction <add>, %394, %cst_97 [1] : vector<16x128xf32> to vector<16xf32>
    %396 = vector.shape_cast %395 : vector<16xf32> to vector<16x1xf32>
    %cst_98 = arith.constant 3.125000e-02 : f32
    %397 = vector.broadcast %cst_98 : f32 to vector<16x1xf32>
    %398 = arith.mulf %396, %397 : vector<16x1xf32>
    %399 = vector.broadcast %398 : vector<16x1xf32> to vector<16x128xf32>
    %400 = arith.subf %390, %399 : vector<16x128xf32>
    %401 = vector.broadcast %5 : vector<1x128xf32> to vector<16x128xf32>
    %402 = arith.mulf %400, %401 : vector<16x128xf32>
    %403 = arith.mulf %402, %402 : vector<16x128xf32>
    %cst_99 = arith.constant dense<0.000000e+00> : vector<16xf32>
    %404 = vector.multi_reduction <add>, %403, %cst_99 [1] : vector<16x128xf32> to vector<16xf32>
    %405 = vector.shape_cast %404 : vector<16xf32> to vector<16x1xf32>
    %cst_100 = arith.constant 3.125000e-02 : f32
    %406 = vector.broadcast %cst_100 : f32 to vector<16x1xf32>
    %407 = arith.mulf %405, %406 : vector<16x1xf32>
    %cst_101 = arith.constant 9.99999993E-9 : f32
    %408 = vector.broadcast %cst_101 : f32 to vector<16x1xf32>
    %409 = arith.addf %407, %408 : vector<16x1xf32>
    %410 = math.rsqrt %409 : vector<16x1xf32>
    %411 = vector.broadcast %410 : vector<16x1xf32> to vector<16x128xf32>
    %412 = arith.mulf %402, %411 : vector<16x128xf32>
    %413 = vector.broadcast %391 : vector<1x128xf32> to vector<16x128xf32>
    %414 = arith.mulf %412, %413 : vector<16x128xf32>
    %415 = vector.broadcast %392 : vector<1x128xf32> to vector<16x128xf32>
    %416 = arith.addf %414, %415 : vector<16x128xf32>
    %417 = vector.shape_cast %416 : vector<16x128xf32> to vector<2x8x128xf32>
    %c0_102 = arith.constant 0 : index
    %c0_103 = arith.constant 0 : index
    %c0_104 = arith.constant 0 : index
    %418 = vector.load %arg10[%c0_102, %c0_103, %c0_104] : memref<2x8x128xf32, #tpu.memory_space<vmem>>, vector<2x8x128xf32>
    tpu.vector_store %arg10[%c0_102, %c0_103, %c0_104], %417 {strides = array<i32>} : memref<2x8x128xf32, #tpu.memory_space<vmem>>, vector<2x8x128xf32>,
    return
  }
  func.func @transform_0(%arg0: i32) -> i32 {
    %c0_i32 = arith.constant 0 : i32
    %c0_i32_0 = arith.constant 0 : i32
    return %c0_i32 : i32
  }
  func.func @transform_1(%arg0: i32) -> (i32, i32, i32) {
    %c0_i32 = arith.constant 0 : i32
    %c0_i32_0 = arith.constant 0 : i32
    %c0_i32_1 = arith.constant 0 : i32
    return %arg0, %c0_i32, %c0_i32_0 : i32, i32, i32
  }
  func.func @transform_2(%arg0: i32) -> (i32, i32, i32) {
    %c0_i32 = arith.constant 0 : i32
    %c0_i32_0 = arith.constant 0 : i32
    %c0_i32_1 = arith.constant 0 : i32
    return %arg0, %c0_i32, %c0_i32_0 : i32, i32, i32
  }
  func.func @transform_3(%arg0: i32) -> (i32, i32, i32) {
    %c0_i32 = arith.constant 0 : i32
    %c0_i32_0 = arith.constant 0 : i32
    %c0_i32_1 = arith.constant 0 : i32
    return %arg0, %c0_i32, %c0_i32_0 : i32, i32, i32
  }
  func.func @transform_4(%arg0: i32) -> (i32, i32, i32) {
    %c0_i32 = arith.constant 0 : i32
    %c0_i32_0 = arith.constant 0 : i32
    %c0_i32_1 = arith.constant 0 : i32
    return %arg0, %c0_i32, %c0_i32_0 : i32, i32, i32
  }
  func.func @transform_5(%arg0: i32) -> (i32, i32, i32) {
    %c0_i32 = arith.constant 0 : i32
    %c0_i32_0 = arith.constant 0 : i32
    %c0_i32_1 = arith.constant 0 : i32
    return %arg0, %c0_i32, %c0_i32_0 : i32, i32, i32
  }
  func.func @transform_6(%arg0: i32) -> (i32, i32) {
    %c0_i32 = arith.constant 0 : i32
    %c0_i32_0 = arith.constant 0 : i32
    %c0_i32_1 = arith.constant 0 : i32
    return %c0_i32, %c0_i32_0 : i32, i32
  }
  func.func @transform_7(%arg0: i32) -> (i32, i32) {
    %c0_i32 = arith.constant 0 : i32
    %c0_i32_0 = arith.constant 0 : i32
    %c0_i32_1 = arith.constant 0 : i32
    return %c0_i32, %c0_i32_0 : i32, i32
  }
  func.func @transform_8(%arg0: i32) -> (i32, i32) {
    %c0_i32 = arith.constant 0 : i32
    %c0_i32_0 = arith.constant 0 : i32
    %c0_i32_1 = arith.constant 0 : i32
    return %c0_i32, %c0_i32_0 : i32, i32
  }
  func.func @transform_9(%arg0: i32) -> (i32, i32, i32) {
    %c0_i32 = arith.constant 0 : i32
    %c0_i32_0 = arith.constant 0 : i32
    %c0_i32_1 = arith.constant 0 : i32
    return %arg0, %c0_i32, %c0_i32_0 : i32, i32, i32
  }
}

module attributes {stable_mosaic.version = 11 : i64} {
  func.func @dcba_kernel(%arg0: i32, %arg1: memref<10xf32, #tpu.memory_space<smem>>, %arg2: memref<2x8x128xf32, #tpu.memory_space<vmem>>, %arg3: memref<2x8x128xf32, #tpu.memory_space<vmem>>, %arg4: memref<2x8x128xf32, #tpu.memory_space<vmem>>, %arg5: memref<2x8x4xi32, #tpu.memory_space<vmem>>, %arg6: memref<2x4x8xi32, #tpu.memory_space<vmem>>, %arg7: memref<8x8xf32, #tpu.memory_space<vmem>>, %arg8: memref<128x896xbf16, #tpu.memory_space<vmem>>, %arg9: memref<13x128xf32, #tpu.memory_space<vmem>>, %arg10: memref<2x8x128xf32, #tpu.memory_space<vmem>>) attributes {dimension_semantics = [#tpu.dimension_semantics<parallel>], iteration_bounds = array<i64: 1>, scalar_prefetch = 0 : i64, scratch_operands = 0 : i64, tpu.core_type = #tpu.core_type<tc>, window_params = [{transform_indices = @transform_0, window_bounds = array<i64: 10>}, {transform_indices = @transform_1, window_bounds = array<i64: 2, 8, 128>}, {transform_indices = @transform_2, window_bounds = array<i64: 2, 8, 128>}, {transform_indices = @transform_3, window_bounds = array<i64: 2, 8, 128>}, {transform_indices = @transform_4, window_bounds = array<i64: 2, 8, 4>}, {transform_indices = @transform_5, window_bounds = array<i64: 2, 4, 8>}, {pipeline_mode = #tpu.pipeline_mode<synchronous>, transform_indices = @transform_6, window_bounds = array<i64: 8, 8>}, {pipeline_mode = #tpu.pipeline_mode<synchronous>, transform_indices = @transform_7, window_bounds = array<i64: 128, 896>}, {pipeline_mode = #tpu.pipeline_mode<synchronous>, transform_indices = @transform_8, window_bounds = array<i64: 13, 128>}, {transform_indices = @transform_9, window_bounds = array<i64: 2, 8, 128>}]} {
    %c0 = arith.constant 0 : index
    %c0_0 = arith.constant 0 : index
    %0 = vector.load %arg9[%c0, %c0_0] : memref<13x128xf32, #tpu.memory_space<vmem>>, vector<13x128xf32>
    %1 = tpu.iota {dimensions = array<i32: 1>} : vector<1x128xi32>
    %c32_i32 = arith.constant 32 : i32
    %2 = vector.broadcast %c32_i32 : i32 to vector<1x128xi32>
    %3 = arith.cmpi slt, %1, %2 : vector<1x128xi32>
    %4 = arith.extui %3 : vector<1x128xi1> to vector<1x128xi32>
    %5 = arith.sitofp %4 : vector<1x128xi32> to vector<1x128xf32>
    %c0_1 = arith.constant 0 : index
    %c0_2 = arith.constant 0 : index
    %6 = vector.load %arg7[%c0_1, %c0_2] : memref<8x8xf32, #tpu.memory_space<vmem>>, vector<8x8xf32>
    %c0_3 = arith.constant 0 : index
    %c0_4 = arith.constant 0 : index
    %c0_5 = arith.constant 0 : index
    %7 = vector.load %arg2[%c0_3, %c0_4, %c0_5] : memref<2x8x128xf32, #tpu.memory_space<vmem>>, vector<2x8x128xf32>
    %8 = vector.shape_cast %7 : vector<2x8x128xf32> to vector<16x128xf32>
    %c0_6 = arith.constant 0 : index
    %c0_7 = arith.constant 0 : index
    %c0_8 = arith.constant 0 : index
    %9 = vector.load %arg3[%c0_6, %c0_7, %c0_8] : memref<2x8x128xf32, #tpu.memory_space<vmem>>, vector<2x8x128xf32>
    %10 = vector.shape_cast %9 : vector<2x8x128xf32> to vector<16x128xf32>
    %11 = vector.extract_strided_slice %0 {offsets = [7, 0], sizes = [1, 128], strides = [1, 1]} : vector<13x128xf32> to vector<1x128xf32>
    %12 = vector.extract_strided_slice %0 {offsets = [8, 0], sizes = [1, 128], strides = [1, 1]} : vector<13x128xf32> to vector<1x128xf32>
    %13 = vector.broadcast %5 : vector<1x128xf32> to vector<16x128xf32>
    %14 = arith.mulf %8, %13 : vector<16x128xf32>
    %cst = arith.constant dense<0.000000e+00> : vector<16xf32>
    %15 = vector.multi_reduction <add>, %14, %cst [1] : vector<16x128xf32> to vector<16xf32>
    %16 = vector.shape_cast %15 : vector<16xf32> to vector<16x1xf32>
    %cst_9 = arith.constant 3.125000e-02 : f32
    %17 = vector.broadcast %cst_9 : f32 to vector<16x1xf32>
    %18 = arith.mulf %16, %17 : vector<16x1xf32>
    %19 = vector.broadcast %18 : vector<16x1xf32> to vector<16x128xf32>
    %20 = arith.subf %8, %19 : vector<16x128xf32>
    %21 = vector.broadcast %5 : vector<1x128xf32> to vector<16x128xf32>
    %22 = arith.mulf %20, %21 : vector<16x128xf32>
    %23 = arith.mulf %22, %22 : vector<16x128xf32>
    %cst_10 = arith.constant dense<0.000000e+00> : vector<16xf32>
    %24 = vector.multi_reduction <add>, %23, %cst_10 [1] : vector<16x128xf32> to vector<16xf32>
    %25 = vector.shape_cast %24 : vector<16xf32> to vector<16x1xf32>
    %cst_11 = arith.constant 3.125000e-02 : f32
    %26 = vector.broadcast %cst_11 : f32 to vector<16x1xf32>
    %27 = arith.mulf %25, %26 : vector<16x1xf32>
    %cst_12 = arith.constant 9.99999993E-9 : f32
    %28 = vector.broadcast %cst_12 : f32 to vector<16x1xf32>
    %29 = arith.addf %27, %28 : vector<16x1xf32>
    %30 = math.rsqrt %29 : vector<16x1xf32>
    %31 = vector.broadcast %30 : vector<16x1xf32> to vector<16x128xf32>
    %32 = arith.mulf %22, %31 : vector<16x128xf32>
    %33 = vector.broadcast %11 : vector<1x128xf32> to vector<16x128xf32>
    %34 = arith.mulf %32, %33 : vector<16x128xf32>
    %35 = vector.broadcast %12 : vector<1x128xf32> to vector<16x128xf32>
    %36 = arith.addf %34, %35 : vector<16x128xf32>
    %37 = arith.truncf %36 : vector<16x128xf32> to vector<16x128xbf16>
    %c0_13 = arith.constant 0 : index
    %c0_14 = arith.constant 0 : index
    %38 = vector.load %arg8[%c0_13, %c0_14] : memref<128x896xbf16, #tpu.memory_space<vmem>>, vector<128x128xbf16>
    %cst_15 = arith.constant dense<0.000000e+00> : vector<16x128xf32>
    %39 = tpu.matmul %37, %38, %cst_15 {dimension_numbers = #tpu.dot_dimension_numbers<[1], [0], [0], [1], [0, 0, 1, 1], [], []>} : vector<16x128xbf16>, vector<128x128xbf16>, vector<16x128xf32> -> vector<16x128xf32>
    %40 = vector.extract_strided_slice %0 {offsets = [0, 0], sizes = [1, 128], strides = [1, 1]} : vector<13x128xf32> to vector<1x128xf32>
    %41 = vector.broadcast %40 : vector<1x128xf32> to vector<16x128xf32>
    %42 = arith.addf %39, %41 : vector<16x128xf32>
    %43 = arith.truncf %8 : vector<16x128xf32> to vector<16x128xbf16>
    %c0_16 = arith.constant 0 : index
    %c128 = arith.constant 128 : index
    %44 = vector.load %arg8[%c0_16, %c128] : memref<128x896xbf16, #tpu.memory_space<vmem>>, vector<128x256xbf16>
    %cst_17 = arith.constant dense<0.000000e+00> : vector<16x256xf32>
    %45 = tpu.matmul %43, %44, %cst_17 {dimension_numbers = #tpu.dot_dimension_numbers<[1], [0], [0], [1], [0, 0, 1, 1], [], []>} : vector<16x128xbf16>, vector<128x256xbf16>, vector<16x256xf32> -> vector<16x256xf32>
    %46 = vector.extract_strided_slice %45 {offsets = [0, 0], sizes = [16, 128], strides = [1, 1]} : vector<16x256xf32> to vector<16x128xf32>
    %47 = vector.extract_strided_slice %0 {offsets = [1, 0], sizes = [1, 128], strides = [1, 1]} : vector<13x128xf32> to vector<1x128xf32>
    %48 = vector.broadcast %47 : vector<1x128xf32> to vector<16x128xf32>
    %49 = arith.addf %46, %48 : vector<16x128xf32>
    %50 = vector.extract_strided_slice %45 {offsets = [0, 128], sizes = [16, 128], strides = [1, 1]} : vector<16x256xf32> to vector<16x128xf32>
    %51 = vector.extract_strided_slice %0 {offsets = [2, 0], sizes = [1, 128], strides = [1, 1]} : vector<13x128xf32> to vector<1x128xf32>
    %52 = vector.broadcast %51 : vector<1x128xf32> to vector<16x128xf32>
    %53 = arith.addf %50, %52 : vector<16x128xf32>
    %54 = vector.extract_strided_slice %0 {offsets = [9, 0], sizes = [1, 128], strides = [1, 1]} : vector<13x128xf32> to vector<1x128xf32>
    %55 = vector.extract_strided_slice %0 {offsets = [10, 0], sizes = [1, 128], strides = [1, 1]} : vector<13x128xf32> to vector<1x128xf32>
    %56 = vector.broadcast %5 : vector<1x128xf32> to vector<16x128xf32>
    %57 = arith.mulf %10, %56 : vector<16x128xf32>
    %cst_18 = arith.constant dense<0.000000e+00> : vector<16xf32>
    %58 = vector.multi_reduction <add>, %57, %cst_18 [1] : vector<16x128xf32> to vector<16xf32>
    %59 = vector.shape_cast %58 : vector<16xf32> to vector<16x1xf32>
    %cst_19 = arith.constant 3.125000e-02 : f32
    %60 = vector.broadcast %cst_19 : f32 to vector<16x1xf32>
    %61 = arith.mulf %59, %60 : vector<16x1xf32>
    %62 = vector.broadcast %61 : vector<16x1xf32> to vector<16x128xf32>
    %63 = arith.subf %10, %62 : vector<16x128xf32>
    %64 = vector.broadcast %5 : vector<1x128xf32> to vector<16x128xf32>
    %65 = arith.mulf %63, %64 : vector<16x128xf32>
    %66 = arith.mulf %65, %65 : vector<16x128xf32>
    %cst_20 = arith.constant dense<0.000000e+00> : vector<16xf32>
    %67 = vector.multi_reduction <add>, %66, %cst_20 [1] : vector<16x128xf32> to vector<16xf32>
    %68 = vector.shape_cast %67 : vector<16xf32> to vector<16x1xf32>
    %cst_21 = arith.constant 3.125000e-02 : f32
    %69 = vector.broadcast %cst_21 : f32 to vector<16x1xf32>
    %70 = arith.mulf %68, %69 : vector<16x1xf32>
    %cst_22 = arith.constant 9.99999993E-9 : f32
    %71 = vector.broadcast %cst_22 : f32 to vector<16x1xf32>
    %72 = arith.addf %70, %71 : vector<16x1xf32>
    %73 = math.rsqrt %72 : vector<16x1xf32>
    %74 = vector.broadcast %73 : vector<16x1xf32> to vector<16x128xf32>
    %75 = arith.mulf %65, %74 : vector<16x128xf32>
    %76 = vector.broadcast %54 : vector<1x128xf32> to vector<16x128xf32>
    %77 = arith.mulf %75, %76 : vector<16x128xf32>
    %78 = vector.broadcast %55 : vector<1x128xf32> to vector<16x128xf32>
    %79 = arith.addf %77, %78 : vector<16x128xf32>
    %80 = arith.truncf %79 : vector<16x128xf32> to vector<16x128xbf16>
    %c0_23 = arith.constant 0 : index
    %c384 = arith.constant 384 : index
    %81 = vector.load %arg8[%c0_23, %c384] : memref<128x896xbf16, #tpu.memory_space<vmem>>, vector<128x128xbf16>
    %cst_24 = arith.constant dense<0.000000e+00> : vector<16x128xf32>
    %82 = tpu.matmul %80, %81, %cst_24 {dimension_numbers = #tpu.dot_dimension_numbers<[1], [0], [0], [1], [0, 0, 1, 1], [], []>} : vector<16x128xbf16>, vector<128x128xbf16>, vector<16x128xf32> -> vector<16x128xf32>
    %83 = vector.extract_strided_slice %0 {offsets = [3, 0], sizes = [1, 128], strides = [1, 1]} : vector<13x128xf32> to vector<1x128xf32>
    %84 = vector.broadcast %83 : vector<1x128xf32> to vector<16x128xf32>
    %85 = arith.addf %82, %84 : vector<16x128xf32>
    %86 = arith.truncf %10 : vector<16x128xf32> to vector<16x128xbf16>
    %c0_25 = arith.constant 0 : index
    %c512 = arith.constant 512 : index
    %87 = vector.load %arg8[%c0_25, %c512] : memref<128x896xbf16, #tpu.memory_space<vmem>>, vector<128x256xbf16>
    %cst_26 = arith.constant dense<0.000000e+00> : vector<16x256xf32>
    %88 = tpu.matmul %86, %87, %cst_26 {dimension_numbers = #tpu.dot_dimension_numbers<[1], [0], [0], [1], [0, 0, 1, 1], [], []>} : vector<16x128xbf16>, vector<128x256xbf16>, vector<16x256xf32> -> vector<16x256xf32>
    %89 = vector.extract_strided_slice %88 {offsets = [0, 0], sizes = [16, 128], strides = [1, 1]} : vector<16x256xf32> to vector<16x128xf32>
    %90 = vector.extract_strided_slice %0 {offsets = [4, 0], sizes = [1, 128], strides = [1, 1]} : vector<13x128xf32> to vector<1x128xf32>
    %91 = vector.broadcast %90 : vector<1x128xf32> to vector<16x128xf32>
    %92 = arith.addf %89, %91 : vector<16x128xf32>
    %93 = vector.extract_strided_slice %88 {offsets = [0, 128], sizes = [16, 128], strides = [1, 1]} : vector<16x256xf32> to vector<16x128xf32>
    %94 = vector.extract_strided_slice %0 {offsets = [5, 0], sizes = [1, 128], strides = [1, 1]} : vector<13x128xf32> to vector<1x128xf32>
    %95 = vector.broadcast %94 : vector<1x128xf32> to vector<16x128xf32>
    %96 = arith.addf %93, %95 : vector<16x128xf32>
    %c2_i32 = arith.constant 2 : i32
    %97 = arith.muli %arg0, %c2_i32 : i32
    %c0_i32 = arith.constant 0 : i32
    %98 = arith.addi %97, %c0_i32 : i32
    %c0_27 = arith.constant 0 : index
    %c0_28 = arith.constant 0 : index
    %c0_29 = arith.constant 0 : index
    %99 = vector.load %arg5[%c0_27, %c0_28, %c0_29] : memref<2x8x4xi32, #tpu.memory_space<vmem>>, vector<1x8x4xi32>
    %100 = vector.shape_cast %99 : vector<1x8x4xi32> to vector<8x4xi32>
    %c0_30 = arith.constant 0 : index
    %c0_31 = arith.constant 0 : index
    %c0_32 = arith.constant 0 : index
    %101 = vector.load %arg6[%c0_30, %c0_31, %c0_32] : memref<2x4x8xi32, #tpu.memory_space<vmem>>, vector<1x4x8xi32>
    %102 = vector.shape_cast %101 : vector<1x4x8xi32> to vector<4x8xi32>
    %c0_i32_33 = arith.constant 0 : i32
    %103 = vector.broadcast %c0_i32_33 : i32 to vector<8x8xi32>
    %104 = vector.extract_strided_slice %100 {offsets = [0, 0], sizes = [8, 1], strides = [1, 1]} : vector<8x4xi32> to vector<8x1xi32>
    %105 = vector.extract_strided_slice %102 {offsets = [0, 0], sizes = [1, 8], strides = [1, 1]} : vector<4x8xi32> to vector<1x8xi32>
    %106 = vector.broadcast %104 : vector<8x1xi32> to vector<8x8xi32>
    %107 = vector.broadcast %105 : vector<1x8xi32> to vector<8x8xi32>
    %108 = arith.cmpi ne, %106, %107 : vector<8x8xi32>
    %109 = arith.extui %108 : vector<8x8xi1> to vector<8x8xi32>
    %110 = arith.addi %103, %109 : vector<8x8xi32>
    %111 = vector.extract_strided_slice %100 {offsets = [0, 1], sizes = [8, 1], strides = [1, 1]} : vector<8x4xi32> to vector<8x1xi32>
    %112 = vector.extract_strided_slice %102 {offsets = [1, 0], sizes = [1, 8], strides = [1, 1]} : vector<4x8xi32> to vector<1x8xi32>
    %113 = vector.broadcast %111 : vector<8x1xi32> to vector<8x8xi32>
    %114 = vector.broadcast %112 : vector<1x8xi32> to vector<8x8xi32>
    %115 = arith.cmpi ne, %113, %114 : vector<8x8xi32>
    %116 = arith.extui %115 : vector<8x8xi1> to vector<8x8xi32>
    %117 = arith.addi %110, %116 : vector<8x8xi32>
    %118 = vector.extract_strided_slice %100 {offsets = [0, 2], sizes = [8, 1], strides = [1, 1]} : vector<8x4xi32> to vector<8x1xi32>
    %119 = vector.extract_strided_slice %102 {offsets = [2, 0], sizes = [1, 8], strides = [1, 1]} : vector<4x8xi32> to vector<1x8xi32>
    %120 = vector.broadcast %118 : vector<8x1xi32> to vector<8x8xi32>
    %121 = vector.broadcast %119 : vector<1x8xi32> to vector<8x8xi32>
    %122 = arith.cmpi ne, %120, %121 : vector<8x8xi32>
    %123 = arith.extui %122 : vector<8x8xi1> to vector<8x8xi32>
    %124 = arith.addi %117, %123 : vector<8x8xi32>
    %125 = vector.extract_strided_slice %100 {offsets = [0, 3], sizes = [8, 1], strides = [1, 1]} : vector<8x4xi32> to vector<8x1xi32>
    %126 = vector.extract_strided_slice %102 {offsets = [3, 0], sizes = [1, 8], strides = [1, 1]} : vector<4x8xi32> to vector<1x8xi32>
    %127 = vector.broadcast %125 : vector<8x1xi32> to vector<8x8xi32>
    %128 = vector.broadcast %126 : vector<1x8xi32> to vector<8x8xi32>
    %129 = arith.cmpi ne, %127, %128 : vector<8x8xi32>
    %130 = arith.extui %129 : vector<8x8xi1> to vector<8x8xi32>
    %131 = arith.addi %124, %130 : vector<8x8xi32>
    %c4_i32 = arith.constant 4 : i32
    %132 = vector.broadcast %c4_i32 : i32 to vector<8x8xi32>
    %133 = arith.muli %131, %132 : vector<8x8xi32>
    %c5_i32 = arith.constant 5 : i32
    %134 = arith.muli %98, %c5_i32 : i32
    %cst_34 = arith.constant 0.000000e+00 : f32
    %135 = vector.broadcast %cst_34 : f32 to vector<8x8xf32>
    %c0_i32_35 = arith.constant 0 : i32
    %136 = vector.broadcast %c0_i32_35 : i32 to vector<8x8xi32>
    %137 = arith.cmpi sge, %133, %136 : vector<8x8xi32>
    %c4_i32_36 = arith.constant 4 : i32
    %138 = vector.broadcast %c4_i32_36 : i32 to vector<8x8xi32>
    %139 = arith.cmpi slt, %133, %138 : vector<8x8xi32>
    %140 = arith.andi %137, %139 : vector<8x8xi1>
    %c0_i32_37 = arith.constant 0 : i32
    %141 = arith.addi %134, %c0_i32_37 : i32
    %142 = arith.index_cast %141 : i32 to index
    %143 = memref.load %arg1[%142] : memref<10xf32, #tpu.memory_space<smem>>
    %144 = vector.broadcast %143 : f32 to vector<8x8xf32>
    %145 = arith.select %140, %144, %135 : vector<8x8xi1>, vector<8x8xf32>
    %c4_i32_38 = arith.constant 4 : i32
    %146 = vector.broadcast %c4_i32_38 : i32 to vector<8x8xi32>
    %147 = arith.cmpi sge, %133, %146 : vector<8x8xi32>
    %c8_i32 = arith.constant 8 : i32
    %148 = vector.broadcast %c8_i32 : i32 to vector<8x8xi32>
    %149 = arith.cmpi slt, %133, %148 : vector<8x8xi32>
    %150 = arith.andi %147, %149 : vector<8x8xi1>
    %c1_i32 = arith.constant 1 : i32
    %151 = arith.addi %134, %c1_i32 : i32
    %152 = arith.index_cast %151 : i32 to index
    %153 = memref.load %arg1[%152] : memref<10xf32, #tpu.memory_space<smem>>
    %154 = vector.broadcast %153 : f32 to vector<8x8xf32>
    %155 = arith.select %150, %154, %145 : vector<8x8xi1>, vector<8x8xf32>
    %c8_i32_39 = arith.constant 8 : i32
    %156 = vector.broadcast %c8_i32_39 : i32 to vector<8x8xi32>
    %157 = arith.cmpi sge, %133, %156 : vector<8x8xi32>
    %c12_i32 = arith.constant 12 : i32
    %158 = vector.broadcast %c12_i32 : i32 to vector<8x8xi32>
    %159 = arith.cmpi slt, %133, %158 : vector<8x8xi32>
    %160 = arith.andi %157, %159 : vector<8x8xi1>
    %c2_i32_40 = arith.constant 2 : i32
    %161 = arith.addi %134, %c2_i32_40 : i32
    %162 = arith.index_cast %161 : i32 to index
    %163 = memref.load %arg1[%162] : memref<10xf32, #tpu.memory_space<smem>>
    %164 = vector.broadcast %163 : f32 to vector<8x8xf32>
    %165 = arith.select %160, %164, %155 : vector<8x8xi1>, vector<8x8xf32>
    %c12_i32_41 = arith.constant 12 : i32
    %166 = vector.broadcast %c12_i32_41 : i32 to vector<8x8xi32>
    %167 = arith.cmpi sge, %133, %166 : vector<8x8xi32>
    %c16_i32 = arith.constant 16 : i32
    %168 = vector.broadcast %c16_i32 : i32 to vector<8x8xi32>
    %169 = arith.cmpi slt, %133, %168 : vector<8x8xi32>
    %170 = arith.andi %167, %169 : vector<8x8xi1>
    %c3_i32 = arith.constant 3 : i32
    %171 = arith.addi %134, %c3_i32 : i32
    %172 = arith.index_cast %171 : i32 to index
    %173 = memref.load %arg1[%172] : memref<10xf32, #tpu.memory_space<smem>>
    %174 = vector.broadcast %173 : f32 to vector<8x8xf32>
    %175 = arith.select %170, %174, %165 : vector<8x8xi1>, vector<8x8xf32>
    %c16_i32_42 = arith.constant 16 : i32
    %176 = vector.broadcast %c16_i32_42 : i32 to vector<8x8xi32>
    %177 = arith.cmpi sge, %133, %176 : vector<8x8xi32>
    %c20_i32 = arith.constant 20 : i32
    %178 = vector.broadcast %c20_i32 : i32 to vector<8x8xi32>
    %179 = arith.cmpi slt, %133, %178 : vector<8x8xi32>
    %180 = arith.andi %177, %179 : vector<8x8xi1>
    %c4_i32_43 = arith.constant 4 : i32
    %181 = arith.addi %134, %c4_i32_43 : i32
    %182 = arith.index_cast %181 : i32 to index
    %183 = memref.load %arg1[%182] : memref<10xf32, #tpu.memory_space<smem>>
    %184 = vector.broadcast %183 : f32 to vector<8x8xf32>
    %185 = arith.select %180, %184, %175 : vector<8x8xi1>, vector<8x8xf32>
    %cst_44 = arith.constant 0.176776692 : f32
    %186 = vector.broadcast %cst_44 : f32 to vector<8x8xf32>
    %187 = arith.mulf %185, %186 : vector<8x8xf32>
    %188 = arith.addf %187, %6 : vector<8x8xf32>
    %cst_45 = arith.constant dense<0xFF800000> : vector<8xf32>
    %189 = vector.multi_reduction <maximumf>, %188, %cst_45 [1] : vector<8x8xf32> to vector<8xf32>
    %190 = vector.shape_cast %189 : vector<8xf32> to vector<8x1xf32>
    %191 = vector.broadcast %190 : vector<8x1xf32> to vector<8x8xf32>
    %192 = arith.subf %188, %191 : vector<8x8xf32>
    %193 = math.exp %192 : vector<8x8xf32>
    %cst_46 = arith.constant dense<0.000000e+00> : vector<8xf32>
    %194 = vector.multi_reduction <add>, %193, %cst_46 [1] : vector<8x8xf32> to vector<8xf32>
    %195 = vector.shape_cast %194 : vector<8xf32> to vector<8x1xf32>
    %196 = vector.broadcast %195 : vector<8x1xf32> to vector<8x8xf32>
    %197 = arith.divf %193, %196 : vector<8x8xf32>
    %198 = vector.extract_strided_slice %42 {offsets = [0, 0], sizes = [8, 128], strides = [1, 1]} : vector<16x128xf32> to vector<8x128xf32>
    %199 = vector.extract_strided_slice %49 {offsets = [0, 0], sizes = [8, 128], strides = [1, 1]} : vector<16x128xf32> to vector<8x128xf32>
    %200 = vector.extract_strided_slice %53 {offsets = [0, 0], sizes = [8, 128], strides = [1, 1]} : vector<16x128xf32> to vector<8x128xf32>
    %201 = arith.truncf %198 : vector<8x128xf32> to vector<8x128xbf16>
    %202 = arith.truncf %199 : vector<8x128xf32> to vector<8x128xbf16>
    %cst_47 = arith.constant dense<0.000000e+00> : vector<8x8xf32>
    %203 = tpu.matmul %201, %202, %cst_47 {dimension_numbers = #tpu.dot_dimension_numbers<[1], [1], [0], [0], [0, 0, 1, 0], [], []>} : vector<8x128xbf16>, vector<8x128xbf16>, vector<8x8xf32> -> vector<8x8xf32>
    %204 = arith.addf %203, %6 : vector<8x8xf32>
    %cst_48 = arith.constant dense<0xFF800000> : vector<8xf32>
    %205 = vector.multi_reduction <maximumf>, %204, %cst_48 [1] : vector<8x8xf32> to vector<8xf32>
    %206 = vector.shape_cast %205 : vector<8xf32> to vector<8x1xf32>
    %207 = vector.broadcast %206 : vector<8x1xf32> to vector<8x8xf32>
    %208 = arith.subf %204, %207 : vector<8x8xf32>
    %209 = math.exp %208 : vector<8x8xf32>
    %cst_49 = arith.constant dense<0.000000e+00> : vector<8xf32>
    %210 = vector.multi_reduction <add>, %209, %cst_49 [1] : vector<8x8xf32> to vector<8xf32>
    %211 = vector.shape_cast %210 : vector<8xf32> to vector<8x1xf32>
    %212 = vector.broadcast %211 : vector<8x1xf32> to vector<8x8xf32>
    %213 = arith.divf %209, %212 : vector<8x8xf32>
    %214 = arith.addf %213, %197 : vector<8x8xf32>
    %215 = arith.truncf %214 : vector<8x8xf32> to vector<8x8xbf16>
    %216 = arith.truncf %200 : vector<8x128xf32> to vector<8x128xbf16>
    %cst_50 = arith.constant dense<0.000000e+00> : vector<8x128xf32>
    %217 = tpu.matmul %215, %216, %cst_50 {dimension_numbers = #tpu.dot_dimension_numbers<[1], [0], [0], [1], [0, 0, 1, 1], [], []>} : vector<8x8xbf16>, vector<8x128xbf16>, vector<8x128xf32> -> vector<8x128xf32>
    %218 = vector.extract_strided_slice %85 {offsets = [0, 0], sizes = [8, 128], strides = [1, 1]} : vector<16x128xf32> to vector<8x128xf32>
    %219 = vector.extract_strided_slice %92 {offsets = [0, 0], sizes = [8, 128], strides = [1, 1]} : vector<16x128xf32> to vector<8x128xf32>
    %220 = vector.extract_strided_slice %96 {offsets = [0, 0], sizes = [8, 128], strides = [1, 1]} : vector<16x128xf32> to vector<8x128xf32>
    %221 = arith.truncf %218 : vector<8x128xf32> to vector<8x128xbf16>
    %222 = arith.truncf %219 : vector<8x128xf32> to vector<8x128xbf16>
    %cst_51 = arith.constant dense<0.000000e+00> : vector<8x8xf32>
    %223 = tpu.matmul %221, %222, %cst_51 {dimension_numbers = #tpu.dot_dimension_numbers<[1], [1], [0], [0], [0, 0, 1, 0], [], []>} : vector<8x128xbf16>, vector<8x128xbf16>, vector<8x8xf32> -> vector<8x8xf32>
    %224 = arith.addf %223, %6 : vector<8x8xf32>
    %cst_52 = arith.constant dense<0xFF800000> : vector<8xf32>
    %225 = vector.multi_reduction <maximumf>, %224, %cst_52 [1] : vector<8x8xf32> to vector<8xf32>
    %226 = vector.shape_cast %225 : vector<8xf32> to vector<8x1xf32>
    %227 = vector.broadcast %226 : vector<8x1xf32> to vector<8x8xf32>
    %228 = arith.subf %224, %227 : vector<8x8xf32>
    %229 = math.exp %228 : vector<8x8xf32>
    %cst_53 = arith.constant dense<0.000000e+00> : vector<8xf32>
    %230 = vector.multi_reduction <add>, %229, %cst_53 [1] : vector<8x8xf32> to vector<8xf32>
    %231 = vector.shape_cast %230 : vector<8xf32> to vector<8x1xf32>
    %232 = vector.broadcast %231 : vector<8x1xf32> to vector<8x8xf32>
    %233 = arith.divf %229, %232 : vector<8x8xf32>
    %234 = arith.addf %233, %197 : vector<8x8xf32>
    %235 = arith.truncf %234 : vector<8x8xf32> to vector<8x8xbf16>
    %236 = arith.truncf %220 : vector<8x128xf32> to vector<8x128xbf16>
    %cst_54 = arith.constant dense<0.000000e+00> : vector<8x128xf32>
    %237 = tpu.matmul %235, %236, %cst_54 {dimension_numbers = #tpu.dot_dimension_numbers<[1], [0], [0], [1], [0, 0, 1, 1], [], []>} : vector<8x8xbf16>, vector<8x128xbf16>, vector<8x128xf32> -> vector<8x128xf32>
    %238 = arith.addf %217, %237 : vector<8x128xf32>
    %c2_i32_55 = arith.constant 2 : i32
    %239 = arith.muli %arg0, %c2_i32_55 : i32
    %c1_i32_56 = arith.constant 1 : i32
    %240 = arith.addi %239, %c1_i32_56 : i32
    %c1 = arith.constant 1 : index
    %c0_57 = arith.constant 0 : index
    %c0_58 = arith.constant 0 : index
    %241 = vector.load %arg5[%c1, %c0_57, %c0_58] : memref<2x8x4xi32, #tpu.memory_space<vmem>>, vector<1x8x4xi32>
    %242 = vector.shape_cast %241 : vector<1x8x4xi32> to vector<8x4xi32>
    %c1_59 = arith.constant 1 : index
    %c0_60 = arith.constant 0 : index
    %c0_61 = arith.constant 0 : index
    %243 = vector.load %arg6[%c1_59, %c0_60, %c0_61] : memref<2x4x8xi32, #tpu.memory_space<vmem>>, vector<1x4x8xi32>
    %244 = vector.shape_cast %243 : vector<1x4x8xi32> to vector<4x8xi32>
    %c0_i32_62 = arith.constant 0 : i32
    %245 = vector.broadcast %c0_i32_62 : i32 to vector<8x8xi32>
    %246 = vector.extract_strided_slice %242 {offsets = [0, 0], sizes = [8, 1], strides = [1, 1]} : vector<8x4xi32> to vector<8x1xi32>
    %247 = vector.extract_strided_slice %244 {offsets = [0, 0], sizes = [1, 8], strides = [1, 1]} : vector<4x8xi32> to vector<1x8xi32>
    %248 = vector.broadcast %246 : vector<8x1xi32> to vector<8x8xi32>
    %249 = vector.broadcast %247 : vector<1x8xi32> to vector<8x8xi32>
    %250 = arith.cmpi ne, %248, %249 : vector<8x8xi32>
    %251 = arith.extui %250 : vector<8x8xi1> to vector<8x8xi32>
    %252 = arith.addi %245, %251 : vector<8x8xi32>
    %253 = vector.extract_strided_slice %242 {offsets = [0, 1], sizes = [8, 1], strides = [1, 1]} : vector<8x4xi32> to vector<8x1xi32>
    %254 = vector.extract_strided_slice %244 {offsets = [1, 0], sizes = [1, 8], strides = [1, 1]} : vector<4x8xi32> to vector<1x8xi32>
    %255 = vector.broadcast %253 : vector<8x1xi32> to vector<8x8xi32>
    %256 = vector.broadcast %254 : vector<1x8xi32> to vector<8x8xi32>
    %257 = arith.cmpi ne, %255, %256 : vector<8x8xi32>
    %258 = arith.extui %257 : vector<8x8xi1> to vector<8x8xi32>
    %259 = arith.addi %252, %258 : vector<8x8xi32>
    %260 = vector.extract_strided_slice %242 {offsets = [0, 2], sizes = [8, 1], strides = [1, 1]} : vector<8x4xi32> to vector<8x1xi32>
    %261 = vector.extract_strided_slice %244 {offsets = [2, 0], sizes = [1, 8], strides = [1, 1]} : vector<4x8xi32> to vector<1x8xi32>
    %262 = vector.broadcast %260 : vector<8x1xi32> to vector<8x8xi32>
    %263 = vector.broadcast %261 : vector<1x8xi32> to vector<8x8xi32>
    %264 = arith.cmpi ne, %262, %263 : vector<8x8xi32>
    %265 = arith.extui %264 : vector<8x8xi1> to vector<8x8xi32>
    %266 = arith.addi %259, %265 : vector<8x8xi32>
    %267 = vector.extract_strided_slice %242 {offsets = [0, 3], sizes = [8, 1], strides = [1, 1]} : vector<8x4xi32> to vector<8x1xi32>
    %268 = vector.extract_strided_slice %244 {offsets = [3, 0], sizes = [1, 8], strides = [1, 1]} : vector<4x8xi32> to vector<1x8xi32>
    %269 = vector.broadcast %267 : vector<8x1xi32> to vector<8x8xi32>
    %270 = vector.broadcast %268 : vector<1x8xi32> to vector<8x8xi32>
    %271 = arith.cmpi ne, %269, %270 : vector<8x8xi32>
    %272 = arith.extui %271 : vector<8x8xi1> to vector<8x8xi32>
    %273 = arith.addi %266, %272 : vector<8x8xi32>
    %c4_i32_63 = arith.constant 4 : i32
    %274 = vector.broadcast %c4_i32_63 : i32 to vector<8x8xi32>
    %275 = arith.muli %273, %274 : vector<8x8xi32>
    %c5_i32_64 = arith.constant 5 : i32
    %276 = arith.muli %240, %c5_i32_64 : i32
    %cst_65 = arith.constant 0.000000e+00 : f32
    %277 = vector.broadcast %cst_65 : f32 to vector<8x8xf32>
    %c0_i32_66 = arith.constant 0 : i32
    %278 = vector.broadcast %c0_i32_66 : i32 to vector<8x8xi32>
    %279 = arith.cmpi sge, %275, %278 : vector<8x8xi32>
    %c4_i32_67 = arith.constant 4 : i32
    %280 = vector.broadcast %c4_i32_67 : i32 to vector<8x8xi32>
    %281 = arith.cmpi slt, %275, %280 : vector<8x8xi32>
    %282 = arith.andi %279, %281 : vector<8x8xi1>
    %c0_i32_68 = arith.constant 0 : i32
    %283 = arith.addi %276, %c0_i32_68 : i32
    %284 = arith.index_cast %283 : i32 to index
    %285 = memref.load %arg1[%284] : memref<10xf32, #tpu.memory_space<smem>>
    %286 = vector.broadcast %285 : f32 to vector<8x8xf32>
    %287 = arith.select %282, %286, %277 : vector<8x8xi1>, vector<8x8xf32>
    %c4_i32_69 = arith.constant 4 : i32
    %288 = vector.broadcast %c4_i32_69 : i32 to vector<8x8xi32>
    %289 = arith.cmpi sge, %275, %288 : vector<8x8xi32>
    %c8_i32_70 = arith.constant 8 : i32
    %290 = vector.broadcast %c8_i32_70 : i32 to vector<8x8xi32>
    %291 = arith.cmpi slt, %275, %290 : vector<8x8xi32>
    %292 = arith.andi %289, %291 : vector<8x8xi1>
    %c1_i32_71 = arith.constant 1 : i32
    %293 = arith.addi %276, %c1_i32_71 : i32
    %294 = arith.index_cast %293 : i32 to index
    %295 = memref.load %arg1[%294] : memref<10xf32, #tpu.memory_space<smem>>
    %296 = vector.broadcast %295 : f32 to vector<8x8xf32>
    %297 = arith.select %292, %296, %287 : vector<8x8xi1>, vector<8x8xf32>
    %c8_i32_72 = arith.constant 8 : i32
    %298 = vector.broadcast %c8_i32_72 : i32 to vector<8x8xi32>
    %299 = arith.cmpi sge, %275, %298 : vector<8x8xi32>
    %c12_i32_73 = arith.constant 12 : i32
    %300 = vector.broadcast %c12_i32_73 : i32 to vector<8x8xi32>
    %301 = arith.cmpi slt, %275, %300 : vector<8x8xi32>
    %302 = arith.andi %299, %301 : vector<8x8xi1>
    %c2_i32_74 = arith.constant 2 : i32
    %303 = arith.addi %276, %c2_i32_74 : i32
    %304 = arith.index_cast %303 : i32 to index
    %305 = memref.load %arg1[%304] : memref<10xf32, #tpu.memory_space<smem>>
    %306 = vector.broadcast %305 : f32 to vector<8x8xf32>
    %307 = arith.select %302, %306, %297 : vector<8x8xi1>, vector<8x8xf32>
    %c12_i32_75 = arith.constant 12 : i32
    %308 = vector.broadcast %c12_i32_75 : i32 to vector<8x8xi32>
    %309 = arith.cmpi sge, %275, %308 : vector<8x8xi32>
    %c16_i32_76 = arith.constant 16 : i32
    %310 = vector.broadcast %c16_i32_76 : i32 to vector<8x8xi32>
    %311 = arith.cmpi slt, %275, %310 : vector<8x8xi32>
    %312 = arith.andi %309, %311 : vector<8x8xi1>
    %c3_i32_77 = arith.constant 3 : i32
    %313 = arith.addi %276, %c3_i32_77 : i32
    %314 = arith.index_cast %313 : i32 to index
    %315 = memref.load %arg1[%314] : memref<10xf32, #tpu.memory_space<smem>>
    %316 = vector.broadcast %315 : f32 to vector<8x8xf32>
    %317 = arith.select %312, %316, %307 : vector<8x8xi1>, vector<8x8xf32>
    %c16_i32_78 = arith.constant 16 : i32
    %318 = vector.broadcast %c16_i32_78 : i32 to vector<8x8xi32>
    %319 = arith.cmpi sge, %275, %318 : vector<8x8xi32>
    %c20_i32_79 = arith.constant 20 : i32
    %320 = vector.broadcast %c20_i32_79 : i32 to vector<8x8xi32>
    %321 = arith.cmpi slt, %275, %320 : vector<8x8xi32>
    %322 = arith.andi %319, %321 : vector<8x8xi1>
    %c4_i32_80 = arith.constant 4 : i32
    %323 = arith.addi %276, %c4_i32_80 : i32
    %324 = arith.index_cast %323 : i32 to index
    %325 = memref.load %arg1[%324] : memref<10xf32, #tpu.memory_space<smem>>
    %326 = vector.broadcast %325 : f32 to vector<8x8xf32>
    %327 = arith.select %322, %326, %317 : vector<8x8xi1>, vector<8x8xf32>
    %cst_81 = arith.constant 0.176776692 : f32
    %328 = vector.broadcast %cst_81 : f32 to vector<8x8xf32>
    %329 = arith.mulf %327, %328 : vector<8x8xf32>
    %330 = arith.addf %329, %6 : vector<8x8xf32>
    %cst_82 = arith.constant dense<0xFF800000> : vector<8xf32>
    %331 = vector.multi_reduction <maximumf>, %330, %cst_82 [1] : vector<8x8xf32> to vector<8xf32>
    %332 = vector.shape_cast %331 : vector<8xf32> to vector<8x1xf32>
    %333 = vector.broadcast %332 : vector<8x1xf32> to vector<8x8xf32>
    %334 = arith.subf %330, %333 : vector<8x8xf32>
    %335 = math.exp %334 : vector<8x8xf32>
    %cst_83 = arith.constant dense<0.000000e+00> : vector<8xf32>
    %336 = vector.multi_reduction <add>, %335, %cst_83 [1] : vector<8x8xf32> to vector<8xf32>
    %337 = vector.shape_cast %336 : vector<8xf32> to vector<8x1xf32>
    %338 = vector.broadcast %337 : vector<8x1xf32> to vector<8x8xf32>
    %339 = arith.divf %335, %338 : vector<8x8xf32>
    %340 = vector.extract_strided_slice %42 {offsets = [8, 0], sizes = [8, 128], strides = [1, 1]} : vector<16x128xf32> to vector<8x128xf32>
    %341 = vector.extract_strided_slice %49 {offsets = [8, 0], sizes = [8, 128], strides = [1, 1]} : vector<16x128xf32> to vector<8x128xf32>
    %342 = vector.extract_strided_slice %53 {offsets = [8, 0], sizes = [8, 128], strides = [1, 1]} : vector<16x128xf32> to vector<8x128xf32>
    %343 = arith.truncf %340 : vector<8x128xf32> to vector<8x128xbf16>
    %344 = arith.truncf %341 : vector<8x128xf32> to vector<8x128xbf16>
    %cst_84 = arith.constant dense<0.000000e+00> : vector<8x8xf32>
    %345 = tpu.matmul %343, %344, %cst_84 {dimension_numbers = #tpu.dot_dimension_numbers<[1], [1], [0], [0], [0, 0, 1, 0], [], []>} : vector<8x128xbf16>, vector<8x128xbf16>, vector<8x8xf32> -> vector<8x8xf32>
    %346 = arith.addf %345, %6 : vector<8x8xf32>
    %cst_85 = arith.constant dense<0xFF800000> : vector<8xf32>
    %347 = vector.multi_reduction <maximumf>, %346, %cst_85 [1] : vector<8x8xf32> to vector<8xf32>
    %348 = vector.shape_cast %347 : vector<8xf32> to vector<8x1xf32>
    %349 = vector.broadcast %348 : vector<8x1xf32> to vector<8x8xf32>
    %350 = arith.subf %346, %349 : vector<8x8xf32>
    %351 = math.exp %350 : vector<8x8xf32>
    %cst_86 = arith.constant dense<0.000000e+00> : vector<8xf32>
    %352 = vector.multi_reduction <add>, %351, %cst_86 [1] : vector<8x8xf32> to vector<8xf32>
    %353 = vector.shape_cast %352 : vector<8xf32> to vector<8x1xf32>
    %354 = vector.broadcast %353 : vector<8x1xf32> to vector<8x8xf32>
    %355 = arith.divf %351, %354 : vector<8x8xf32>
    %356 = arith.addf %355, %339 : vector<8x8xf32>
    %357 = arith.truncf %356 : vector<8x8xf32> to vector<8x8xbf16>
    %358 = arith.truncf %342 : vector<8x128xf32> to vector<8x128xbf16>
    %cst_87 = arith.constant dense<0.000000e+00> : vector<8x128xf32>
    %359 = tpu.matmul %357, %358, %cst_87 {dimension_numbers = #tpu.dot_dimension_numbers<[1], [0], [0], [1], [0, 0, 1, 1], [], []>} : vector<8x8xbf16>, vector<8x128xbf16>, vector<8x128xf32> -> vector<8x128xf32>
    %360 = vector.extract_strided_slice %85 {offsets = [8, 0], sizes = [8, 128], strides = [1, 1]} : vector<16x128xf32> to vector<8x128xf32>
    %361 = vector.extract_strided_slice %92 {offsets = [8, 0], sizes = [8, 128], strides = [1, 1]} : vector<16x128xf32> to vector<8x128xf32>
    %362 = vector.extract_strided_slice %96 {offsets = [8, 0], sizes = [8, 128], strides = [1, 1]} : vector<16x128xf32> to vector<8x128xf32>
    %363 = arith.truncf %360 : vector<8x128xf32> to vector<8x128xbf16>
    %364 = arith.truncf %361 : vector<8x128xf32> to vector<8x128xbf16>
    %cst_88 = arith.constant dense<0.000000e+00> : vector<8x8xf32>
    %365 = tpu.matmul %363, %364, %cst_88 {dimension_numbers = #tpu.dot_dimension_numbers<[1], [1], [0], [0], [0, 0, 1, 0], [], []>} : vector<8x128xbf16>, vector<8x128xbf16>, vector<8x8xf32> -> vector<8x8xf32>
    %366 = arith.addf %365, %6 : vector<8x8xf32>
    %cst_89 = arith.constant dense<0xFF800000> : vector<8xf32>
    %367 = vector.multi_reduction <maximumf>, %366, %cst_89 [1] : vector<8x8xf32> to vector<8xf32>
    %368 = vector.shape_cast %367 : vector<8xf32> to vector<8x1xf32>
    %369 = vector.broadcast %368 : vector<8x1xf32> to vector<8x8xf32>
    %370 = arith.subf %366, %369 : vector<8x8xf32>
    %371 = math.exp %370 : vector<8x8xf32>
    %cst_90 = arith.constant dense<0.000000e+00> : vector<8xf32>
    %372 = vector.multi_reduction <add>, %371, %cst_90 [1] : vector<8x8xf32> to vector<8xf32>
    %373 = vector.shape_cast %372 : vector<8xf32> to vector<8x1xf32>
    %374 = vector.broadcast %373 : vector<8x1xf32> to vector<8x8xf32>
    %375 = arith.divf %371, %374 : vector<8x8xf32>
    %376 = arith.addf %375, %339 : vector<8x8xf32>
    %377 = arith.truncf %376 : vector<8x8xf32> to vector<8x8xbf16>
    %378 = arith.truncf %362 : vector<8x128xf32> to vector<8x128xbf16>
    %cst_91 = arith.constant dense<0.000000e+00> : vector<8x128xf32>
    %379 = tpu.matmul %377, %378, %cst_91 {dimension_numbers = #tpu.dot_dimension_numbers<[1], [0], [0], [1], [0, 0, 1, 1], [], []>} : vector<8x8xbf16>, vector<8x128xbf16>, vector<8x128xf32> -> vector<8x128xf32>
    %380 = arith.addf %359, %379 : vector<8x128xf32>
    %381 = tpu.concatenate %238, %380 in 0 : vector<8x128xf32>, vector<8x128xf32> -> vector<16x128xf32>
    %382 = arith.truncf %381 : vector<16x128xf32> to vector<16x128xbf16>
    %c0_92 = arith.constant 0 : index
    %c768 = arith.constant 768 : index
    %383 = vector.load %arg8[%c0_92, %c768] : memref<128x896xbf16, #tpu.memory_space<vmem>>, vector<128x128xbf16>
    %cst_93 = arith.constant dense<0.000000e+00> : vector<16x128xf32>
    %384 = tpu.matmul %382, %383, %cst_93 {dimension_numbers = #tpu.dot_dimension_numbers<[1], [0], [0], [1], [0, 0, 1, 1], [], []>} : vector<16x128xbf16>, vector<128x128xbf16>, vector<16x128xf32> -> vector<16x128xf32>
    %385 = vector.extract_strided_slice %0 {offsets = [6, 0], sizes = [1, 128], strides = [1, 1]} : vector<13x128xf32> to vector<1x128xf32>
    %386 = vector.broadcast %385 : vector<1x128xf32> to vector<16x128xf32>
    %387 = arith.addf %384, %386 : vector<16x128xf32>
    %c0_94 = arith.constant 0 : index
    %c0_95 = arith.constant 0 : index
    %c0_96 = arith.constant 0 : index
    %388 = vector.load %arg4[%c0_94, %c0_95, %c0_96] : memref<2x8x128xf32, #tpu.memory_space<vmem>>, vector<2x8x128xf32>
    %389 = vector.shape_cast %388 : vector<2x8x128xf32> to vector<16x128xf32>
    %390 = arith.addf %387, %389 : vector<16x128xf32>
    %391 = vector.extract_strided_slice %0 {offsets = [11, 0], sizes = [1, 128], strides = [1, 1]} : vector<13x128xf32> to vector<1x128xf32>
    %392 = vector.extract_strided_slice %0 {offsets = [12, 0], sizes = [1, 128], strides = [1, 1]} : vector<13x128xf32> to vector<1x128xf32>
    %393 = vector.broadcast %5 : vector<1x128xf32> to vector<16x128xf32>
    %394 = arith.mulf %390, %393 : vector<16x128xf32>
    %cst_97 = arith.constant dense<0.000000e+00> : vector<16xf32>
    %395 = vector.multi_reduction <add>, %394, %cst_97 [1] : vector<16x128xf32> to vector<16xf32>
    %396 = vector.shape_cast %395 : vector<16xf32> to vector<16x1xf32>
    %cst_98 = arith.constant 3.125000e-02 : f32
    %397 = vector.broadcast %cst_98 : f32 to vector<16x1xf32>
    %398 = arith.mulf %396, %397 : vector<16x1xf32>
    %399 = vector.broadcast %398 : vector<16x1xf32> to vector<16x128xf32>
    %400 = arith.subf %390, %399 : vector<16x128xf32>
    %401 = vector.broadcast %5 : vector<1x128xf32> to vector<16x128xf32>
    %402 = arith.mulf %400, %401 : vector<16x128xf32>
    %403 = arith.mulf %402, %402 : vector<16x128xf32>
    %cst_99 = arith.constant dense<0.000000e+00> : vector<16xf32>
    %404 = vector.multi_reduction <add>, %403, %cst_99 [1] : vector<16x128xf32> to vector<16xf32>
    %405 = vector.shape_cast %404 : vector<16xf32> to vector<16x1xf32>
    %cst_100 = arith.constant 3.125000e-02 : f32
    %406 = vector.broadcast %cst_100 : f32 to vector<16x1xf32>
    %407 = arith.mulf %405, %406 : vector<16x1xf32>
    %cst_101 = arith.constant 9.99999993E-9 : f32
    %408 = vector.broadcast %cst_101 : f32 to vector<16x1xf32>
    %409 = arith.addf %407, %408 : vector<16x1xf32>
    %410 = math.rsqrt %409 : vector<16x1xf32>
    %411 = vector.broadcast %410 : vector<16x1xf32> to vector<16x128xf32>
    %412 = arith.mulf %402, %411 : vector<16x128xf32>
    %413 = vector.broadcast %391 : vector<1x128xf32> to vector<16x128xf32>
    %414 = arith.mulf %412, %413 : vector<16x128xf32>
    %415 = vector.broadcast %392 : vector<1x128xf32> to vector<16x128xf32>
    %416 = arith.addf %414, %415 : vector<16x128xf32>
    %417 = vector.shape_cast %416 : vector<16x128xf32> to vector<2x8x128xf32>
    %c0_102 = arith.constant 0 : index
    %c0_103 = arith.constant 0 : index
    %c0_104 = arith.constant 0 : index
    %418 = vector.load %arg10[%c0_102, %c0_103, %c0_104] : memref<2x8x128xf32, #tpu.memory_space<vmem>>, vector<2x8x128xf32>
    tpu.vector_store %arg10[%c0_102, %c0_103, %c0_104], %417 {strides = array<i32>} : memref<2x8x128xf32, #tpu.memory_space<vmem>>, vector<2x8x128xf32>,
    return
  }
  func.func @transform_0(%arg0: i32) -> i32 {
    %c0_i32 = arith.constant 0 : i32
    %c0_i32_0 = arith.constant 0 : i32
    return %c0_i32 : i32
  }
  func.func @transform_1(%arg0: i32) -> (i32, i32, i32) {
    %c0_i32 = arith.constant 0 : i32
    %c0_i32_0 = arith.constant 0 : i32
    %c0_i32_1 = arith.constant 0 : i32
    return %arg0, %c0_i32, %c0_i32_0 : i32, i32, i32
  }
  func.func @transform_2(%arg0: i32) -> (i32, i32, i32) {
    %c0_i32 = arith.constant 0 : i32
    %c0_i32_0 = arith.constant 0 : i32
    %c0_i32_1 = arith.constant 0 : i32
    return %arg0, %c0_i32, %c0_i32_0 : i32, i32, i32
  }
  func.func @transform_3(%arg0: i32) -> (i32, i32, i32) {
    %c0_i32 = arith.constant 0 : i32
    %c0_i32_0 = arith.constant 0 : i32
    %c0_i32_1 = arith.constant 0 : i32
    return %arg0, %c0_i32, %c0_i32_0 : i32, i32, i32
  }
  func.func @transform_4(%arg0: i32) -> (i32, i32, i32) {
    %c0_i32 = arith.constant 0 : i32
    %c0_i32_0 = arith.constant 0 : i32
    %c0_i32_1 = arith.constant 0 : i32
    return %arg0, %c0_i32, %c0_i32_0 : i32, i32, i32
  }
  func.func @transform_5(%arg0: i32) -> (i32, i32, i32) {
    %c0_i32 = arith.constant 0 : i32
    %c0_i32_0 = arith.constant 0 : i32
    %c0_i32_1 = arith.constant 0 : i32
    return %arg0, %c0_i32, %c0_i32_0 : i32, i32, i32
  }
  func.func @transform_6(%arg0: i32) -> (i32, i32) {
    %c0_i32 = arith.constant 0 : i32
    %c0_i32_0 = arith.constant 0 : i32
    %c0_i32_1 = arith.constant 0 : i32
    return %c0_i32, %c0_i32_0 : i32, i32
  }
  func.func @transform_7(%arg0: i32) -> (i32, i32) {
    %c0_i32 = arith.constant 0 : i32
    %c0_i32_0 = arith.constant 0 : i32
    %c0_i32_1 = arith.constant 0 : i32
    return %c0_i32, %c0_i32_0 : i32, i32
  }
  func.func @transform_8(%arg0: i32) -> (i32, i32) {
    %c0_i32 = arith.constant 0 : i32
    %c0_i32_0 = arith.constant 0 : i32
    %c0_i32_1 = arith.constant 0 : i32
    return %c0_i32, %c0_i32_0 : i32, i32
  }
  func.func @transform_9(%arg0: i32) -> (i32, i32, i32) {
    %c0_i32 = arith.constant 0 : i32
    %c0_i32_0 = arith.constant 0 : i32
    %c0_i32_1 = arith.constant 0 : i32
    return %arg0, %c0_i32, %c0_i32_0 : i32, i32, i32
  }
}

</mosaic_0001>

<llo_original>
// kernel: tpu_custom_call.1
$region0: #{tpu_custom_call.1}
  #allocation0 [shape = 'u32[]', space=smem, size = 0x4, offset = 0x4, fixed_abs, tag = 'smem constant byte address 0x4 - core index']
  #allocation1 [shape = 'u32[144,128]{1,0:T(1,128)}', space=vmem, size = 0x12000, scoped, tag = 'internal scratch']
  %s0 = inlined_call_operand.vmem [shape: f32[10], index: 0, kind: input, shape index: {}]
  %s1 = inlined_call_operand.vmem [shape: f32[2,8,128], index: 1, kind: input, shape index: {}]
  %s2 = inlined_call_operand.hbm [shape: f32[2,8,128], index: 2, kind: input, shape index: {}]
  %s3 = inlined_call_operand.vmem [shape: f32[2,8,128], index: 3, kind: input, shape index: {}]
  %s4 = inlined_call_operand.vmem [shape: s32[2,8,4], index: 4, kind: input, shape index: {}]
  %s5 = inlined_call_operand.hbm [shape: s32[2,4,8], index: 5, kind: input, shape index: {}]
  %s6 = inlined_call_operand.hbm [shape: f32[8,8], index: 6, kind: input, shape index: {}]
  %s7 = inlined_call_operand.hbm [shape: bf16[128,896], index: 7, kind: input, shape index: {}]
  %s8 = inlined_call_operand.vmem [shape: f32[13,128], index: 8, kind: input, shape index: {}]
  %s9 = inlined_call_operand.hbm [shape: f32[2,8,128], index: 9, kind: output, shape index: {}]
  %s10 = sld [smem:[#allocation0]]
  $region66: #{tpu_custom_call.1} parent=0
    _
  %s12 = ssub.s32 1, %s10
  %s13 = scalar_select 0, %s12, %s10
  $region1: #{tpu_custom_call.1} parent=0
    #allocation2 [shape = 'u8[512]{0}', space=smem, size = 0x200, scoped, tag = 'input window, operand 0, single buffered']
    #allocation3 [shape = 's32[1]{0}', space=sflag, size = 0x4, scoped, tag = 'scoped memory for tpu_custom_call.1']
    #allocation4 [shape = 's32[1]{0}', space=sflag, size = 0x4, scoped, tag = 'scoped memory for tpu_custom_call.1']
    #allocation5 [shape = 's32[1]{0}', space=sflag, size = 0x4, scoped, tag = 'scoped memory for tpu_custom_call.1']
    #allocation6 [shape = 'u8[8192]{0}', space=vmem, size = 0x2000, scoped, tag = 'input window, operand 2, single buffered']
    #allocation7 [shape = 'u8[4096]{0}', space=vmem, size = 0x1000, scoped, tag = 'input window, operand 5, single buffered']
    #allocation8 [shape = 's32[1]{0}', space=sflag, size = 0x4, scoped, tag = 'scoped memory for tpu_custom_call.1']
    #allocation9 [shape = 'u8[4096]{0}', space=vmem, size = 0x1000, scoped, tag = 'input window, operand 6, single buffered']
    #allocation10 [shape = 'u8[229376]{0}', space=vmem, size = 0x38000, scoped, tag = 'input window, operand 7, single buffered']
    #allocation11 [shape = 's32[1]{0}', space=sflag, size = 0x4, scoped, tag = 'scoped memory for tpu_custom_call.1']
    #allocation12 [shape = 'u8[8192]{0}', space=vmem, size = 0x2000, scoped, tag = 'output window, operand 0, single buffered']
    %14 = vsyncpa [#allocation5], 0
    %15 = vsyncpa [#allocation3], 0
    %16 = vsyncpa [#allocation8], 0
    %17 = vsyncpa [#allocation11], 0
    %18 = vsyncpa [#allocation4], 0
    // Predicated region
    $region2: #{tpu_custom_call.1} parent=1 // pred_check
      _
    $region3: #{tpu_custom_call.1} parent=1 // pred_check_branch
      %20 = sbr.rel (0) target = $region5
    $region4: #{tpu_custom_call.1} parent=1 // pred_region
      %s22 = ssub.s32 16, 16
      %23 = vsyncadd [#allocation5], %s22
      %s25 = sshll.u32 %s0, 4
      %s26 = int_to_ptr.vmem [resolvable:$true] %s25
      %28 = dma.vmem_to_smem %s26, 16, [#allocation2], [#allocation5]
    $region5: #{tpu_custom_call.1} parent=1 // pred_fallthru
      _
    // Predicated region
    $region6: #{tpu_custom_call.1} parent=1 // pred_check
      _
    $region7: #{tpu_custom_call.1} parent=1 // pred_check_branch
      %30 = sbr.rel (0) target = $region9
    $region8: #{tpu_custom_call.1} parent=1 // pred_region
      _
    $region9: #{tpu_custom_call.1} parent=1 // pred_fallthru
      _
    // Predicated region
    $region10: #{tpu_custom_call.1} parent=1 // pred_check
      _
    $region11: #{tpu_custom_call.1} parent=1 // pred_check_branch
      %32 = sbr.rel (0) target = $region13
    $region12: #{tpu_custom_call.1} parent=1 // pred_region
      %s34 = ssub.s32 256, 256
      %35 = vsyncadd [#allocation3], %s34
      %s36 = sshll.u32 [#allocation6], 4
      %s37 = int_to_ptr.vmem [resolvable:$true] %s36
      %42 = dma.hbm_to_vmem [thread:$0]  %s2, 256, %s37, [#allocation3], 128, 128, 8
    $region13: #{tpu_custom_call.1} parent=1 // pred_fallthru
      _
    // Predicated region
    $region14: #{tpu_custom_call.1} parent=1 // pred_check
      _
    $region15: #{tpu_custom_call.1} parent=1 // pred_check_branch
      %44 = sbr.rel (0) target = $region17
    $region16: #{tpu_custom_call.1} parent=1 // pred_region
      _
    $region17: #{tpu_custom_call.1} parent=1 // pred_fallthru
      _
    // Predicated region
    $region18: #{tpu_custom_call.1} parent=1 // pred_check
      _
    $region19: #{tpu_custom_call.1} parent=1 // pred_check_branch
      %46 = sbr.rel (0) target = $region21
    $region20: #{tpu_custom_call.1} parent=1 // pred_region
      _
    $region21: #{tpu_custom_call.1} parent=1 // pred_fallthru
      _
    // Predicated region
    $region22: #{tpu_custom_call.1} parent=1 // pred_check
      _
    $region23: #{tpu_custom_call.1} parent=1 // pred_check_branch
      %48 = sbr.rel (0) target = $region25
    $region24: #{tpu_custom_call.1} parent=1 // pred_region
      %s50 = ssub.s32 128, 128
      %51 = vsyncadd [#allocation8], %s50
      %s52 = sshll.u32 [#allocation7], 4
      %s53 = int_to_ptr.vmem [resolvable:$true] %s52
      %58 = dma.hbm_to_vmem [thread:$0]  %s5, 128, %s53, [#allocation8], 64, 64, 4
    $region25: #{tpu_custom_call.1} parent=1 // pred_fallthru
      _
    // Predicated region
    $region26: #{tpu_custom_call.1} parent=1 // pred_check
      _
    $region27: #{tpu_custom_call.1} parent=1 // pred_check_branch
      %60 = sbr.rel (0) target = $region29
    $region28: #{tpu_custom_call.1} parent=1 // pred_region
      %s62 = ssub.s32 128, 128
      %63 = vsyncadd [#allocation8], %s62
      %s65 = sshll.u32 [#allocation9], 4
      %s66 = int_to_ptr.vmem [resolvable:$true] %s65
      %68 = dma.hbm_to_vmem [thread:$0]  %s6, 128, %s66, [#allocation8]
    $region29: #{tpu_custom_call.1} parent=1 // pred_fallthru
      _
    // Predicated region
    $region30: #{tpu_custom_call.1} parent=1 // pred_check
      _
    $region31: #{tpu_custom_call.1} parent=1 // pred_check_branch
      %70 = sbr.rel (0) target = $region33
    $region32: #{tpu_custom_call.1} parent=1 // pred_region
      %s72 = ssub.s32 7168, 7168
      %73 = vsyncadd [#allocation11], %s72
      %s74 = sshll.u32 [#allocation10], 4
      %s75 = int_to_ptr.vmem [resolvable:$true] %s74
      %80 = dma.hbm_to_vmem [thread:$0]  %s7, 7168, %s75, [#allocation11], 448, 448, 28
    $region33: #{tpu_custom_call.1} parent=1 // pred_fallthru
      _
    // Predicated region
    $region34: #{tpu_custom_call.1} parent=1 // pred_check
      _
    $region35: #{tpu_custom_call.1} parent=1 // pred_check_branch
      %82 = sbr.rel (0) target = $region37
    $region36: #{tpu_custom_call.1} parent=1 // pred_region
      _
    $region37: #{tpu_custom_call.1} parent=1 // pred_fallthru
      _
    // Predicated region
    $region38: #{tpu_custom_call.1} parent=1 // pred_check
      _
    $region39: #{tpu_custom_call.1} parent=1 // pred_check_branch
      %84 = sbr.rel (0) target = $region41
    $region40: #{tpu_custom_call.1} parent=1 // pred_region
      %85 = dma.done [#allocation5], 16
    $region41: #{tpu_custom_call.1} parent=1 // pred_fallthru
      _
    // Predicated region
    $region42: #{tpu_custom_call.1} parent=1 // pred_check
      _
    $region43: #{tpu_custom_call.1} parent=1 // pred_check_branch
      %87 = sbr.rel (0) target = $region45
    $region44: #{tpu_custom_call.1} parent=1 // pred_region
      %88 = dma.done [#allocation3], 256
    $region45: #{tpu_custom_call.1} parent=1 // pred_fallthru
      _
    // Predicated region
    $region46: #{tpu_custom_call.1} parent=1 // pred_check
      _
    $region47: #{tpu_custom_call.1} parent=1 // pred_check_branch
      %90 = sbr.rel (0) target = $region49
    $region48: #{tpu_custom_call.1} parent=1 // pred_region
      %91 = dma.done [#allocation8], 128
    $region49: #{tpu_custom_call.1} parent=1 // pred_fallthru
      _
    // Predicated region
    $region50: #{tpu_custom_call.1} parent=1 // pred_check
      _
    $region51: #{tpu_custom_call.1} parent=1 // pred_check_branch
      %93 = sbr.rel (0) target = $region53
    $region52: #{tpu_custom_call.1} parent=1 // pred_region
      %94 = dma.done [#allocation8], 128
    $region53: #{tpu_custom_call.1} parent=1 // pred_fallthru
      _
    // Predicated region
    $region54: #{tpu_custom_call.1} parent=1 // pred_check
      _
    $region55: #{tpu_custom_call.1} parent=1 // pred_check_branch
      %96 = sbr.rel (0) target = $region57
    $region56: #{tpu_custom_call.1} parent=1 // pred_region
      %97 = dma.done [#allocation11], 7168
    $region57: #{tpu_custom_call.1} parent=1 // pred_fallthru
      _
    %98 = sfence
    %v100 = vld [vmem:[%s8] sm:$0xff]
    %v101 = vld [vmem:[%s8 + $0x8] sm:$0x1f]
    %v102 = vlaneseq
    %v103 = vand.u32 %v102, 127
    %vm104 = vcmp.lt.s32.totalorder %v103, 32
    %v105 = vsel %vm104, 1, 0
    %v106 = vcvt.s32.f32 %v105
    %v107 = vld [vmem:[#allocation9] sm:$0xff]
    %v108 = vld [vmem:[%s1] sm:$0xff]
    %v109 = vld [vmem:[%s1 + $0x8] sm:$0xff]
    %v110 = vld [vmem:[#allocation6] sm:$0xff]
    %v111 = vld [vmem:[#allocation6 + $0x8] sm:$0xff]
    %v112 = vmul.f32 %v108, %v106
    %v113 = vmul.f32 %v109, %v106
    %114 = vadd.xlane.f32.xlu0 %v112
    %v115 = vpop.xlane.xlu0 %114
    %116 = vadd.xlane.f32.xlu0 %v113
    %v117 = vpop.xlane.xlu0 %116
    %v118 = vmul.f32 %v115, 0.03125
    %v119 = vmul.f32 %v117, 0.03125
    %v120 = vsub.f32 %v108, %v118
    %v121 = vsub.f32 %v109, %v119
    %v122 = vmul.f32 %v120, %v106
    %v123 = vmul.f32 %v121, %v106
    %v124 = vmul.f32 %v122, %v122
    %v125 = vmul.f32 %v123, %v123
    %126 = vadd.xlane.f32.xlu0 %v124
    %v127 = vpop.xlane.xlu0 %126
    %128 = vadd.xlane.f32.xlu0 %v125
    %v129 = vpop.xlane.xlu0 %128
    %v130 = vmul.f32 %v127, 0.03125
    %v131 = vmul.f32 %v129, 0.03125
    %v132 = vadd.f32 %v130, 1e-08
    %v133 = vadd.f32 %v131, 1e-08
    %v134 = vrsqrt.pop %v132
    %v135 = vrsqrt.pop %v133
    %v136 = vmul.f32 %v122, %v134
    %v137 = vmul.f32 %v123, %v135
    %v138 = vlaneseq
    %v139 = vshrl.u32 %v138, 7
    %v140 = vsub.s32 7, %v139
    %v141 = vrot.slane %v100, %v140
    %v142 = vmul.f32 %v136, %v141
    %v143 = vmul.f32 %v137, %v141
    %v144 = vlaneseq
    %v145 = vshrl.u32 %v144, 7
    %v146 = vsub.s32 0, %v145
    %v147 = vrot.slane %v101, %v146
    %v148 = vadd.f32 %v142, %v147
    %v149 = vadd.f32 %v143, %v147
    %v150 = vpack.c.bf16 %v149, %v148
    %v151 = vld [vmem:[#allocation10] sm:$0xf]
    %v152 = vld [vmem:[#allocation10 + $0x1c] sm:$0xf]
    %v153 = vld [vmem:[#allocation10 + $0x38] sm:$0xf]
    %v154 = vld [vmem:[#allocation10 + $0x54] sm:$0xf]
    %v155 = vld [vmem:[#allocation10 + $0x70] sm:$0xf]
    %v156 = vld [vmem:[#allocation10 + $0x8c] sm:$0xf]
    %v157 = vld [vmem:[#allocation10 + $0xa8] sm:$0xf]
    %v158 = vld [vmem:[#allocation10 + $0xc4] sm:$0xf]
    %v159 = vld [vmem:[#allocation10 + $0xe0] sm:$0xf]
    %v160 = vld [vmem:[#allocation10 + $0xfc] sm:$0xf]
    %v161 = vld [vmem:[#allocation10 + $0x118] sm:$0xf]
    %v162 = vld [vmem:[#allocation10 + $0x134] sm:$0xf]
    %v163 = vld [vmem:[#allocation10 + $0x150] sm:$0xf]
    %v164 = vld [vmem:[#allocation10 + $0x16c] sm:$0xf]
    %v165 = vld [vmem:[#allocation10 + $0x188] sm:$0xf]
    %v166 = vld [vmem:[#allocation10 + $0x1a4] sm:$0xf]
    %v167 = vlaneseq
    %v168 = vshrl.u32 %v167, 7
    %v169 = vsub.s32 0, %v168
    %v170 = vrot.slane %v100, %v169
    %v187 = vunpack.c.l.b16 %v151
    %v188 = vunpack.c.l.b16 %v152
    %v189 = vunpack.c.l.b16 %v153
    %v190 = vunpack.c.l.b16 %v154
    %v191 = vunpack.c.l.b16 %v155
    %v192 = vunpack.c.l.b16 %v156
    %v193 = vunpack.c.l.b16 %v157
    %v194 = vunpack.c.l.b16 %v158
    %v195 = vunpack.c.l.b16 %v159
    %v196 = vunpack.c.l.b16 %v160
    %v197 = vunpack.c.l.b16 %v161
    %v198 = vunpack.c.l.b16 %v162
    %v199 = vunpack.c.l.b16 %v163
    %v200 = vunpack.c.l.b16 %v164
    %v201 = vunpack.c.l.b16 %v165
    %v202 = vunpack.c.l.b16 %v166
    %v203 = vpack.c.b16 %v188, %v187
    %v204 = vpack.c.b16 %v190, %v189
    %v205 = vpack.c.b16 %v192, %v191
    %v206 = vpack.c.b16 %v194, %v193
    %v207 = vpack.c.b16 %v196, %v195
    %v208 = vpack.c.b16 %v198, %v197
    %v209 = vpack.c.b16 %v200, %v199
    %v210 = vpack.c.b16 %v202, %v201
    %219 = vmatprep.subr.bf16.mxu0 0
    %220 = vmatpush1.bf16.msra.mxu0 %v203
    %221 = vmatprep.subr.bf16.mxu0 0
    %222 = vmatpush1.bf16.msra.mxu0 %v204
    %223 = vmatprep.subr.bf16.mxu0 0
    %224 = vmatpush1.bf16.msra.mxu0 %v205
    %225 = vmatprep.subr.bf16.mxu0 0
    %226 = vmatpush1.bf16.msra.mxu0 %v206
    %227 = vmatprep.subr.bf16.mxu0 0
    %228 = vmatpush1.bf16.msra.mxu0 %v207
    %229 = vmatprep.subr.bf16.mxu0 0
    %230 = vmatpush1.bf16.msra.mxu0 %v208
    %231 = vmatprep.subr.bf16.mxu0 0
    %232 = vmatpush1.bf16.msra.mxu0 %v209
    %233 = vmatprep.subr.bf16.mxu0 0
    %234 = vmatpush1.bf16.msra.mxu0 %v210
    %235 = vmatprep.subr.bf16.mxu0 0
    %236 = vmatpush1.bf16.msra.mxu0 0
    %237 = vmatprep.subr.bf16.mxu0 0
    %238 = vmatpush1.bf16.msra.mxu0 0
    %239 = vmatprep.subr.bf16.mxu0 0
    %240 = vmatpush1.bf16.msra.mxu0 0
    %241 = vmatprep.subr.bf16.mxu0 0
    %242 = vmatpush1.bf16.msra.mxu0 0
    %243 = vmatprep.subr.bf16.mxu0 0
    %244 = vmatpush1.bf16.msra.mxu0 0
    %245 = vmatprep.subr.bf16.mxu0 0
    %246 = vmatpush1.bf16.msra.mxu0 0
    %247 = vmatprep.subr.bf16.mxu0 0
    %248 = vmatpush1.bf16.msra.mxu0 0
    %249 = vmatprep.subr.bf16.mxu0 0
    %250 = vmatpush1.bf16.msra.mxu0 0
    %251 = vmatprep.mubr.bf16.mxu0 0
    %252 = vmatmul.mubr.bf16.gmra.mrb[0].mxu0 %v150
    %v253 = vpop.f32.mrb[0].mxu0
    %v254 = vadd.f32 %v170, %v253
    %v255 = vpop.f32.mrb[0].mxu0
    %v256 = vpop.f32.mrb[0].mxu0
    %v257 = vadd.f32 %v170, %v256
    %v258 = vpop.f32.mrb[0].mxu0
    %259 = vdwg.mxu0
    %v260 = vpack.c.bf16 %v109, %v108
    %v261 = vld [vmem:[#allocation10 + $0x4] sm:$0xff]
    %v262 = vld [vmem:[#allocation10 + $0x20] sm:$0xff]
    %v263 = vld [vmem:[#allocation10 + $0x3c] sm:$0xff]
    %v264 = vld [vmem:[#allocation10 + $0x58] sm:$0xff]
    %v265 = vld [vmem:[#allocation10 + $0x74] sm:$0xff]
    %v266 = vld [vmem:[#allocation10 + $0x90] sm:$0xff]
    %v267 = vld [vmem:[#allocation10 + $0xac] sm:$0xff]
    %v268 = vld [vmem:[#allocation10 + $0xc8] sm:$0xff]
    %v269 = vld [vmem:[#allocation10 + $0xe4] sm:$0xff]
    %v270 = vld [vmem:[#allocation10 + $0x100] sm:$0xff]
    %v271 = vld [vmem:[#allocation10 + $0x11c] sm:$0xff]
    %v272 = vld [vmem:[#allocation10 + $0x138] sm:$0xff]
    %v273 = vld [vmem:[#allocation10 + $0x154] sm:$0xff]
    %v274 = vld [vmem:[#allocation10 + $0x170] sm:$0xff]
    %v275 = vld [vmem:[#allocation10 + $0x18c] sm:$0xff]
    %v276 = vld [vmem:[#allocation10 + $0x1a8] sm:$0xff]
    %v293 = vunpack.c.l.b16 %v261
    %v294 = vunpack.c.h.b16 %v261
    %v295 = vunpack.c.l.b16 %v262
    %v296 = vunpack.c.h.b16 %v262
    %v297 = vunpack.c.l.b16 %v263
    %v298 = vunpack.c.h.b16 %v263
    %v299 = vunpack.c.l.b16 %v264
    %v300 = vunpack.c.h.b16 %v264
    %v301 = vunpack.c.l.b16 %v265
    %v302 = vunpack.c.h.b16 %v265
    %v303 = vunpack.c.l.b16 %v266
    %v304 = vunpack.c.h.b16 %v266
    %v305 = vunpack.c.l.b16 %v267
    %v306 = vunpack.c.h.b16 %v267
    %v307 = vunpack.c.l.b16 %v268
    %v308 = vunpack.c.h.b16 %v268
    %v309 = vunpack.c.l.b16 %v269
    %v310 = vunpack.c.h.b16 %v269
    %v311 = vunpack.c.l.b16 %v270
    %v312 = vunpack.c.h.b16 %v270
    %v313 = vunpack.c.l.b16 %v271
    %v314 = vunpack.c.h.b16 %v271
    %v315 = vunpack.c.l.b16 %v272
    %v316 = vunpack.c.h.b16 %v272
    %v317 = vunpack.c.l.b16 %v273
    %v318 = vunpack.c.h.b16 %v273
    %v319 = vunpack.c.l.b16 %v274
    %v320 = vunpack.c.h.b16 %v274
    %v321 = vunpack.c.l.b16 %v275
    %v322 = vunpack.c.h.b16 %v275
    %v323 = vunpack.c.l.b16 %v276
    %v324 = vunpack.c.h.b16 %v276
    %v325 = vpack.c.b16 %v295, %v293
    %v326 = vpack.c.b16 %v296, %v294
    %v327 = vpack.c.b16 %v299, %v297
    %v328 = vpack.c.b16 %v300, %v298
    %v329 = vpack.c.b16 %v303, %v301
    %v330 = vpack.c.b16 %v304, %v302
    %v331 = vpack.c.b16 %v307, %v305
    %v332 = vpack.c.b16 %v308, %v306
    %v333 = vpack.c.b16 %v311, %v309
    %v334 = vpack.c.b16 %v312, %v310
    %v335 = vpack.c.b16 %v315, %v313
    %v336 = vpack.c.b16 %v316, %v314
    %v337 = vpack.c.b16 %v319, %v317
    %v338 = vpack.c.b16 %v320, %v318
    %v339 = vpack.c.b16 %v323, %v321
    %v340 = vpack.c.b16 %v324, %v322
    %357 = vmatprep.subr.bf16.mxu0 %v326
    %358 = vmatpush1.bf16.msra.mxu0 %v325
    %359 = vmatprep.subr.bf16.mxu0 %v328
    %360 = vmatpush1.bf16.msra.mxu0 %v327
    %361 = vmatprep.subr.bf16.mxu0 %v330
    %362 = vmatpush1.bf16.msra.mxu0 %v329
    %363 = vmatprep.subr.bf16.mxu0 %v332
    %364 = vmatpush1.bf16.msra.mxu0 %v331
    %365 = vmatprep.subr.bf16.mxu0 %v334
    %366 = vmatpush1.bf16.msra.mxu0 %v333
    %367 = vmatprep.subr.bf16.mxu0 %v336
    %368 = vmatpush1.bf16.msra.mxu0 %v335
    %369 = vmatprep.subr.bf16.mxu0 %v338
    %370 = vmatpush1.bf16.msra.mxu0 %v337
    %371 = vmatprep.subr.bf16.mxu0 %v340
    %372 = vmatpush1.bf16.msra.mxu0 %v339
    %373 = vmatprep.subr.bf16.mxu0 0
    %374 = vmatpush1.bf16.msra.mxu0 0
    %375 = vmatprep.subr.bf16.mxu0 0
    %376 = vmatpush1.bf16.msra.mxu0 0
    %377 = vmatprep.subr.bf16.mxu0 0
    %378 = vmatpush1.bf16.msra.mxu0 0
    %379 = vmatprep.subr.bf16.mxu0 0
    %380 = vmatpush1.bf16.msra.mxu0 0
    %381 = vmatprep.subr.bf16.mxu0 0
    %382 = vmatpush1.bf16.msra.mxu0 0
    %383 = vmatprep.subr.bf16.mxu0 0
    %384 = vmatpush1.bf16.msra.mxu0 0
    %385 = vmatprep.subr.bf16.mxu0 0
    %386 = vmatpush1.bf16.msra.mxu0 0
    %387 = vmatprep.subr.bf16.mxu0 0
    %388 = vmatpush1.bf16.msra.mxu0 0
    %389 = vmatprep.mubr.bf16.mxu0 0
    %390 = vmatmul.mubr.bf16.gmra.mrb[0].mxu0 %v260
    %v391 = vpop.f32.mrb[0].mxu0
    %v392 = vadd.f32 0.0, %v391
    %v393 = vpop.f32.mrb[0].mxu0
    %v394 = vadd.f32 0.0, %v393
    %v395 = vpop.f32.mrb[0].mxu0
    %v396 = vadd.f32 0.0, %v395
    %v397 = vpop.f32.mrb[0].mxu0
    %v398 = vadd.f32 0.0, %v397
    %399 = vdwg.mxu0
    %v400 = vlaneseq
    %v401 = vshrl.u32 %v400, 7
    %v402 = vsub.s32 1, %v401
    %v403 = vrot.slane %v100, %v402
    %v404 = vadd.f32 %v392, %v403
    %v405 = vadd.f32 %v396, %v403
    %v406 = vlaneseq
    %v407 = vshrl.u32 %v406, 7
    %v408 = vsub.s32 2, %v407
    %v409 = vrot.slane %v100, %v408
    %v410 = vadd.f32 %v394, %v409
    %v411 = vadd.f32 %v398, %v409
    %v412 = vmul.f32 %v110, %v106
    %v413 = vmul.f32 %v111, %v106
    %414 = vadd.xlane.f32.xlu0 %v412
    %v415 = vpop.xlane.xlu0 %414
    %416 = vadd.xlane.f32.xlu0 %v413
    %v417 = vpop.xlane.xlu0 %416
    %v418 = vmul.f32 %v415, 0.03125
    %v419 = vmul.f32 %v417, 0.03125
    %v420 = vsub.f32 %v110, %v418
    %v421 = vsub.f32 %v111, %v419
    %v422 = vmul.f32 %v420, %v106
    %v423 = vmul.f32 %v421, %v106
    %v424 = vmul.f32 %v422, %v422
    %v425 = vmul.f32 %v423, %v423
    %426 = vadd.xlane.f32.xlu0 %v424
    %v427 = vpop.xlane.xlu0 %426
    %428 = vadd.xlane.f32.xlu0 %v425
    %v429 = vpop.xlane.xlu0 %428
    %v430 = vmul.f32 %v427, 0.03125
    %v431 = vmul.f32 %v429, 0.03125
    %v432 = vadd.f32 %v430, 1e-08
    %v433 = vadd.f32 %v431, 1e-08
    %v434 = vrsqrt.pop %v432
    %v435 = vrsqrt.pop %v433
    %v436 = vmul.f32 %v422, %v434
    %v437 = vmul.f32 %v423, %v435
    %v438 = vlaneseq
    %v439 = vshrl.u32 %v438, 7
    %v440 = vsub.s32 1, %v439
    %v441 = vrot.slane %v101, %v440
    %v442 = vmul.f32 %v436, %v441
    %v443 = vmul.f32 %v437, %v441
    %v444 = vlaneseq
    %v445 = vshrl.u32 %v444, 7
    %v446 = vsub.s32 2, %v445
    %v447 = vrot.slane %v101, %v446
    %v448 = vadd.f32 %v442, %v447
    %v449 = vadd.f32 %v443, %v447
    %v450 = vpack.c.bf16 %v449, %v448
    %v451 = vld [vmem:[#allocation10 + $0xc] sm:$0xf]
    %v452 = vld [vmem:[#allocation10 + $0x28] sm:$0xf]
    %v453 = vld [vmem:[#allocation10 + $0x44] sm:$0xf]
    %v454 = vld [vmem:[#allocation10 + $0x60] sm:$0xf]
    %v455 = vld [vmem:[#allocation10 + $0x7c] sm:$0xf]
    %v456 = vld [vmem:[#allocation10 + $0x98] sm:$0xf]
    %v457 = vld [vmem:[#allocation10 + $0xb4] sm:$0xf]
    %v458 = vld [vmem:[#allocation10 + $0xd0] sm:$0xf]
    %v459 = vld [vmem:[#allocation10 + $0xec] sm:$0xf]
    %v460 = vld [vmem:[#allocation10 + $0x108] sm:$0xf]
    %v461 = vld [vmem:[#allocation10 + $0x124] sm:$0xf]
    %v462 = vld [vmem:[#allocation10 + $0x140] sm:$0xf]
    %v463 = vld [vmem:[#allocation10 + $0x15c] sm:$0xf]
    %v464 = vld [vmem:[#allocation10 + $0x178] sm:$0xf]
    %v465 = vld [vmem:[#allocation10 + $0x194] sm:$0xf]
    %v466 = vld [vmem:[#allocation10 + $0x1b0] sm:$0xf]
    %v467 = vlaneseq
    %v468 = vshrl.u32 %v467, 7
    %v469 = vsub.s32 3, %v468
    %v470 = vrot.slane %v100, %v469
    %v487 = vunpack.c.l.b16 %v451
    %v488 = vunpack.c.l.b16 %v452
    %v489 = vunpack.c.l.b16 %v453
    %v490 = vunpack.c.l.b16 %v454
    %v491 = vunpack.c.l.b16 %v455
    %v492 = vunpack.c.l.b16 %v456
    %v493 = vunpack.c.l.b16 %v457
    %v494 = vunpack.c.l.b16 %v458
    %v495 = vunpack.c.l.b16 %v459
    %v496 = vunpack.c.l.b16 %v460
    %v497 = vunpack.c.l.b16 %v461
    %v498 = vunpack.c.l.b16 %v462
    %v499 = vunpack.c.l.b16 %v463
    %v500 = vunpack.c.l.b16 %v464
    %v501 = vunpack.c.l.b16 %v465
    %v502 = vunpack.c.l.b16 %v466
    %v503 = vpack.c.b16 %v488, %v487
    %v504 = vpack.c.b16 %v490, %v489
    %v505 = vpack.c.b16 %v492, %v491
    %v506 = vpack.c.b16 %v494, %v493
    %v507 = vpack.c.b16 %v496, %v495
    %v508 = vpack.c.b16 %v498, %v497
    %v509 = vpack.c.b16 %v500, %v499
    %v510 = vpack.c.b16 %v502, %v501
    %519 = vmatprep.subr.bf16.mxu0 0
    %520 = vmatpush1.bf16.msra.mxu0 %v503
    %521 = vmatprep.subr.bf16.mxu0 0
    %522 = vmatpush1.bf16.msra.mxu0 %v504
    %523 = vmatprep.subr.bf16.mxu0 0
    %524 = vmatpush1.bf16.msra.mxu0 %v505
    %525 = vmatprep.subr.bf16.mxu0 0
    %526 = vmatpush1.bf16.msra.mxu0 %v506
    %527 = vmatprep.subr.bf16.mxu0 0
    %528 = vmatpush1.bf16.msra.mxu0 %v507
    %529 = vmatprep.subr.bf16.mxu0 0
    %530 = vmatpush1.bf16.msra.mxu0 %v508
    %531 = vmatprep.subr.bf16.mxu0 0
    %532 = vmatpush1.bf16.msra.mxu0 %v509
    %533 = vmatprep.subr.bf16.mxu0 0
    %534 = vmatpush1.bf16.msra.mxu0 %v510
    %535 = vmatprep.subr.bf16.mxu0 0
    %536 = vmatpush1.bf16.msra.mxu0 0
    %537 = vmatprep.subr.bf16.mxu0 0
    %538 = vmatpush1.bf16.msra.mxu0 0
    %539 = vmatprep.subr.bf16.mxu0 0
    %540 = vmatpush1.bf16.msra.mxu0 0
    %541 = vmatprep.subr.bf16.mxu0 0
    %542 = vmatpush1.bf16.msra.mxu0 0
    %543 = vmatprep.subr.bf16.mxu0 0
    %544 = vmatpush1.bf16.msra.mxu0 0
    %545 = vmatprep.subr.bf16.mxu0 0
    %546 = vmatpush1.bf16.msra.mxu0 0
    %547 = vmatprep.subr.bf16.mxu0 0
    %548 = vmatpush1.bf16.msra.mxu0 0
    %549 = vmatprep.subr.bf16.mxu0 0
    %550 = vmatpush1.bf16.msra.mxu0 0
    %551 = vmatprep.mubr.bf16.mxu0 0
    %552 = vmatmul.mubr.bf16.gmra.mrb[0].mxu0 %v450
    %v553 = vpop.f32.mrb[0].mxu0
    %v554 = vadd.f32 %v470, %v553
    %v555 = vpop.f32.mrb[0].mxu0
    %v556 = vpop.f32.mrb[0].mxu0
    %v557 = vadd.f32 %v470, %v556
    %v558 = vpop.f32.mrb[0].mxu0
    %559 = vdwg.mxu0
    %v560 = vpack.c.bf16 %v111, %v110
    %v561 = vld [vmem:[#allocation10 + $0x10] sm:$0xff]
    %v562 = vld [vmem:[#allocation10 + $0x2c] sm:$0xff]
    %v563 = vld [vmem:[#allocation10 + $0x48] sm:$0xff]
    %v564 = vld [vmem:[#allocation10 + $0x64] sm:$0xff]
    %v565 = vld [vmem:[#allocation10 + $0x80] sm:$0xff]
    %v566 = vld [vmem:[#allocation10 + $0x9c] sm:$0xff]
    %v567 = vld [vmem:[#allocation10 + $0xb8] sm:$0xff]
    %v568 = vld [vmem:[#allocation10 + $0xd4] sm:$0xff]
    %v569 = vld [vmem:[#allocation10 + $0xf0] sm:$0xff]
    %v570 = vld [vmem:[#allocation10 + $0x10c] sm:$0xff]
    %v571 = vld [vmem:[#allocation10 + $0x128] sm:$0xff]
    %v572 = vld [vmem:[#allocation10 + $0x144] sm:$0xff]
    %v573 = vld [vmem:[#allocation10 + $0x160] sm:$0xff]
    %v574 = vld [vmem:[#allocation10 + $0x17c] sm:$0xff]
    %v575 = vld [vmem:[#allocation10 + $0x198] sm:$0xff]
    %v576 = vld [vmem:[#allocation10 + $0x1b4] sm:$0xff]
    %v593 = vunpack.c.l.b16 %v561
    %v594 = vunpack.c.h.b16 %v561
    %v595 = vunpack.c.l.b16 %v562
    %v596 = vunpack.c.h.b16 %v562
    %v597 = vunpack.c.l.b16 %v563
    %v598 = vunpack.c.h.b16 %v563
    %v599 = vunpack.c.l.b16 %v564
    %v600 = vunpack.c.h.b16 %v564
    %v601 = vunpack.c.l.b16 %v565
    %v602 = vunpack.c.h.b16 %v565
    %v603 = vunpack.c.l.b16 %v566
    %v604 = vunpack.c.h.b16 %v566
    %v605 = vunpack.c.l.b16 %v567
    %v606 = vunpack.c.h.b16 %v567
    %v607 = vunpack.c.l.b16 %v568
    %v608 = vunpack.c.h.b16 %v568
    %v609 = vunpack.c.l.b16 %v569
    %v610 = vunpack.c.h.b16 %v569
    %v611 = vunpack.c.l.b16 %v570
    %v612 = vunpack.c.h.b16 %v570
    %v613 = vunpack.c.l.b16 %v571
    %v614 = vunpack.c.h.b16 %v571
    %v615 = vunpack.c.l.b16 %v572
    %v616 = vunpack.c.h.b16 %v572
    %v617 = vunpack.c.l.b16 %v573
    %v618 = vunpack.c.h.b16 %v573
    %v619 = vunpack.c.l.b16 %v574
    %v620 = vunpack.c.h.b16 %v574
    %v621 = vunpack.c.l.b16 %v575
    %v622 = vunpack.c.h.b16 %v575
    %v623 = vunpack.c.l.b16 %v576
    %v624 = vunpack.c.h.b16 %v576
    %v625 = vpack.c.b16 %v595, %v593
    %v626 = vpack.c.b16 %v596, %v594
    %v627 = vpack.c.b16 %v599, %v597
    %v628 = vpack.c.b16 %v600, %v598
    %v629 = vpack.c.b16 %v603, %v601
    %v630 = vpack.c.b16 %v604, %v602
    %v631 = vpack.c.b16 %v607, %v605
    %v632 = vpack.c.b16 %v608, %v606
    %v633 = vpack.c.b16 %v611, %v609
    %v634 = vpack.c.b16 %v612, %v610
    %v635 = vpack.c.b16 %v615, %v613
    %v636 = vpack.c.b16 %v616, %v614
    %v637 = vpack.c.b16 %v619, %v617
    %v638 = vpack.c.b16 %v620, %v618
    %v639 = vpack.c.b16 %v623, %v621
    %v640 = vpack.c.b16 %v624, %v622
    %657 = vmatprep.subr.bf16.mxu0 %v626
    %658 = vmatpush1.bf16.msra.mxu0 %v625
    %659 = vmatprep.subr.bf16.mxu0 %v628
    %660 = vmatpush1.bf16.msra.mxu0 %v627
    %661 = vmatprep.subr.bf16.mxu0 %v630
    %662 = vmatpush1.bf16.msra.mxu0 %v629
    %663 = vmatprep.subr.bf16.mxu0 %v632
    %664 = vmatpush1.bf16.msra.mxu0 %v631
    %665 = vmatprep.subr.bf16.mxu0 %v634
    %666 = vmatpush1.bf16.msra.mxu0 %v633
    %667 = vmatprep.subr.bf16.mxu0 %v636
    %668 = vmatpush1.bf16.msra.mxu0 %v635
    %669 = vmatprep.subr.bf16.mxu0 %v638
    %670 = vmatpush1.bf16.msra.mxu0 %v637
    %671 = vmatprep.subr.bf16.mxu0 %v640
    %672 = vmatpush1.bf16.msra.mxu0 %v639
    %673 = vmatprep.subr.bf16.mxu0 0
    %674 = vmatpush1.bf16.msra.mxu0 0
    %675 = vmatprep.subr.bf16.mxu0 0
    %676 = vmatpush1.bf16.msra.mxu0 0
    %677 = vmatprep.subr.bf16.mxu0 0
    %678 = vmatpush1.bf16.msra.mxu0 0
    %679 = vmatprep.subr.bf16.mxu0 0
    %680 = vmatpush1.bf16.msra.mxu0 0
    %681 = vmatprep.subr.bf16.mxu0 0
    %682 = vmatpush1.bf16.msra.mxu0 0
    %683 = vmatprep.subr.bf16.mxu0 0
    %684 = vmatpush1.bf16.msra.mxu0 0
    %685 = vmatprep.subr.bf16.mxu0 0
    %686 = vmatpush1.bf16.msra.mxu0 0
    %687 = vmatprep.subr.bf16.mxu0 0
    %688 = vmatpush1.bf16.msra.mxu0 0
    %689 = vmatprep.mubr.bf16.mxu0 0
    %690 = vmatmul.mubr.bf16.gmra.mrb[0].mxu0 %v560
    %v691 = vpop.f32.mrb[0].mxu0
    %v692 = vadd.f32 0.0, %v691
    %v693 = vpop.f32.mrb[0].mxu0
    %v694 = vadd.f32 0.0, %v693
    %v695 = vpop.f32.mrb[0].mxu0
    %v696 = vadd.f32 0.0, %v695
    %v697 = vpop.f32.mrb[0].mxu0
    %v698 = vadd.f32 0.0, %v697
    %699 = vdwg.mxu0
    %v700 = vlaneseq
    %v701 = vshrl.u32 %v700, 7
    %v702 = vsub.s32 4, %v701
    %v703 = vrot.slane %v100, %v702
    %v704 = vadd.f32 %v692, %v703
    %v705 = vadd.f32 %v696, %v703
    %v706 = vlaneseq
    %v707 = vshrl.u32 %v706, 7
    %v708 = vsub.s32 5, %v707
    %v709 = vrot.slane %v100, %v708
    %v710 = vadd.f32 %v694, %v709
    %v711 = vadd.f32 %v698, %v709
    %v712 = vld [vmem:[%s4] sm:$0xff]
    %v713 = vld [vmem:[#allocation7] sm:$0xf]
    %714 = vset.pattern.permute.xlu0 0
    %715 = vperm.xlu0 %714, %v712
    %v716 = vpop.permute.xlu0 %715
    %v717 = vlaneseq
    %v718 = vshrl.u32 %v717, 7
    %v719 = vsub.s32 0, %v718
    %v720 = vrot.slane %v713, %v719
    %vm721 = vcmp.ne.s32.totalorder %v716, %v720
    %v722 = vsel %vm721, 1, 0
    %723 = vset.pattern.permute.xlu0 1
    %724 = vperm.xlu0 %723, %v712
    %v725 = vpop.permute.xlu0 %724
    %v726 = vlaneseq
    %v727 = vshrl.u32 %v726, 7
    %v728 = vsub.s32 1, %v727
    %v729 = vrot.slane %v713, %v728
    %vm730 = vcmp.ne.s32.totalorder %v725, %v729
    %v731 = vsel %vm730, 1, 0
    %v732 = vadd.s32 %v722, %v731
    %733 = vset.pattern.permute.xlu0 2
    %734 = vperm.xlu0 %733, %v712
    %v735 = vpop.permute.xlu0 %734
    %v736 = vlaneseq
    %v737 = vshrl.u32 %v736, 7
    %v738 = vsub.s32 2, %v737
    %v739 = vrot.slane %v713, %v738
    %vm740 = vcmp.ne.s32.totalorder %v735, %v739
    %v741 = vsel %vm740, 1, 0
    %v742 = vadd.s32 %v732, %v741
    %743 = vset.pattern.permute.xlu0 3
    %744 = vperm.xlu0 %743, %v712
    %v745 = vpop.permute.xlu0 %744
    %v746 = vlaneseq
    %v747 = vshrl.u32 %v746, 7
    %v748 = vsub.s32 3, %v747
    %v749 = vrot.slane %v713, %v748
    %vm750 = vcmp.ne.s32.totalorder %v745, %v749
    %v751 = vsel %vm750, 1, 0
    %v752 = vadd.s32 %v742, %v751
    %v753 = vmul.u32 %v752, 4
    %s754 = smul.u32 0, 10
    %vm755 = vcmp.ge.s32.totalorder %v753, 0
    %vm756 = vcmp.lt.s32.totalorder %v753, 4
    %vm757 = vmand %vm755, %vm756
    %s758 = sld [smem:[#allocation2 + %s754]]
    %v759 = vstv %s758
    %v760 = vsel %vm757, %v759, 0.0
    %vm761 = vcmp.ge.s32.totalorder %v753, 4
    %vm762 = vcmp.lt.s32.totalorder %v753, 8
    %vm763 = vmand %vm761, %vm762
    %s764 = sadd.s32 %s754, 1
    %s765 = sld [smem:[#allocation2 + %s764]]
    %v766 = vstv %s765
    %v767 = vsel %vm763, %v766, %v760
    %vm768 = vcmp.ge.s32.totalorder %v753, 8
    %vm769 = vcmp.lt.s32.totalorder %v753, 12
    %vm770 = vmand %vm768, %vm769
    %s771 = sadd.s32 %s754, 2
    %s772 = sld [smem:[#allocation2 + %s771]]
    %v773 = vstv %s772
    %v774 = vsel %vm770, %v773, %v767
    %vm775 = vcmp.ge.s32.totalorder %v753, 12
    %vm776 = vcmp.lt.s32.totalorder %v753, 16
    %vm777 = vmand %vm775, %vm776
    %s778 = sadd.s32 %s754, 3
    %s779 = sld [smem:[#allocation2 + %s778]]
    %v780 = vstv %s779
    %v781 = vsel %vm777, %v780, %v774
    %vm782 = vcmp.ge.s32.totalorder %v753, 16
    %vm783 = vcmp.lt.s32.totalorder %v753, 20
    %vm784 = vmand %vm782, %vm783
    %s785 = sadd.s32 %s754, 4
    %s786 = sld [smem:[#allocation2 + %s785]]
    %v787 = vstv %s786
    %v788 = vsel %vm784, %v787, %v781
    %v789 = vmul.f32 %v788, 0.17677669
    %v790 = vadd.f32 %v789, %v107
    %vm791 = vcmask 64512
    %v792 = vsel %vm791, %v790, -inf
    %793 = vmax.xlane.f32.xlu0 %v792
    %v794 = vpop.xlane.xlu0 %793
    %v795 = vsub.f32 %v790, %v794
    %v796 = vmul.f32 %v795, 1.442695
    %v797 = vpow.pop %v796
    %v798 = vsel %vm791, %v797, 0.0
    %799 = vadd.xlane.f32.xlu0 %v798
    %v800 = vpop.xlane.xlu0 %799
    %v801 = vrcp.pop %v800
    %v802 = vmul.f32 %v797, %v801
    %v803 = vpack.c.bf16 %v254, %v254
    %v804 = vpack.c.bf16 %v404, %v404
    %805 = vmatprep.subr.bf16.mxu0 0
    %806 = vmatpush1.bf16.xpose.msra.mxu0 %v804
    %807 = vmatprep.subr.bf16.mxu0 0
    %808 = vmatpush1.bf16.xpose.msra.mxu0 0
    %809 = vmatprep.subr.bf16.mxu0 0
    %810 = vmatpush1.bf16.xpose.msra.mxu0 0
    %811 = vmatprep.subr.bf16.mxu0 0
    %812 = vmatpush1.bf16.xpose.msra.mxu0 0
    %813 = vmatprep.subr.bf16.mxu0 0
    %814 = vmatpush1.bf16.xpose.msra.mxu0 0
    %815 = vmatprep.subr.bf16.mxu0 0
    %816 = vmatpush1.bf16.xpose.msra.mxu0 0
    %817 = vmatprep.subr.bf16.mxu0 0
    %818 = vmatpush1.bf16.xpose.msra.mxu0 0
    %819 = vmatprep.subr.bf16.mxu0 0
    %820 = vmatpush1.bf16.xpose.msra.mxu0 0
    %821 = vmatprep.subr.bf16.mxu0 0
    %822 = vmatpush1.bf16.xpose.msra.mxu0 0
    %823 = vmatprep.subr.bf16.mxu0 0
    %824 = vmatpush1.bf16.xpose.msra.mxu0 0
    %825 = vmatprep.subr.bf16.mxu0 0
    %826 = vmatpush1.bf16.xpose.msra.mxu0 0
    %827 = vmatprep.subr.bf16.mxu0 0
    %828 = vmatpush1.bf16.xpose.msra.mxu0 0
    %829 = vmatprep.subr.bf16.mxu0 0
    %830 = vmatpush1.bf16.xpose.msra.mxu0 0
    %831 = vmatprep.subr.bf16.mxu0 0
    %832 = vmatpush1.bf16.xpose.msra.mxu0 0
    %833 = vmatprep.subr.bf16.mxu0 0
    %834 = vmatpush1.bf16.xpose.msra.mxu0 0
    %835 = vmatprep.subr.bf16.mxu0 0
    %836 = vmatpush1.bf16.xpose.msra.mxu0 0
    %837 = vmatprep.mubr.bf16.mxu0 0
    %838 = vmatmul.mubr.bf16.gmra.mrb[0].mxu0 %v803
    %v839 = vpop.f32.mrb[0].mxu0
    %v840 = vadd.f32 %v107, %v839
    %v841 = vpop.f32.mrb[0].mxu0
    %v842 = vpop.f32.mrb[0].mxu0
    %v843 = vpop.f32.mrb[0].mxu0
    %844 = vdwg.mxu0
    %v845 = vsel %vm791, %v840, -inf
    %846 = vmax.xlane.f32.xlu0 %v845
    %v847 = vpop.xlane.xlu0 %846
    %v848 = vsub.f32 %v840, %v847
    %v849 = vmul.f32 %v848, 1.442695
    %v850 = vpow.pop %v849
    %v851 = vsel %vm791, %v850, 0.0
    %852 = vadd.xlane.f32.xlu0 %v851
    %v853 = vpop.xlane.xlu0 %852
    %v854 = vrcp.pop %v853
    %v855 = vmul.f32 %v850, %v854
    %v856 = vadd.f32 %v855, %v802
    %v857 = vpack.c.bf16 %v856, %v856
    %v858 = vpack.c.bf16 %v410, %v410
    %v859 = vpack.c.bf16 %v554, %v554
    %v860 = vpack.c.bf16 %v704, %v704
    %861 = vmatprep.subr.bf16.mxu0 0
    %862 = vmatpush1.bf16.xpose.msra.mxu0 %v860
    %863 = vmatprep.subr.bf16.mxu0 0
    %864 = vmatpush1.bf16.xpose.msra.mxu0 0
    %865 = vmatprep.subr.bf16.mxu0 0
    %866 = vmatpush1.bf16.xpose.msra.mxu0 0
    %867 = vmatprep.subr.bf16.mxu0 0
    %868 = vmatpush1.bf16.xpose.msra.mxu0 0
    %869 = vmatprep.subr.bf16.mxu0 0
    %870 = vmatpush1.bf16.xpose.msra.mxu0 0
    %871 = vmatprep.subr.bf16.mxu0 0
    %872 = vmatpush1.bf16.xpose.msra.mxu0 0
    %873 = vmatprep.subr.bf16.mxu0 0
    %874 = vmatpush1.bf16.xpose.msra.mxu0 0
    %875 = vmatprep.subr.bf16.mxu0 0
    %876 = vmatpush1.bf16.xpose.msra.mxu0 0
    %877 = vmatprep.subr.bf16.mxu0 0
    %878 = vmatpush1.bf16.xpose.msra.mxu0 0
    %879 = vmatprep.subr.bf16.mxu0 0
    %880 = vmatpush1.bf16.xpose.msra.mxu0 0
    %881 = vmatprep.subr.bf16.mxu0 0
    %882 = vmatpush1.bf16.xpose.msra.mxu0 0
    %883 = vmatprep.subr.bf16.mxu0 0
    %884 = vmatpush1.bf16.xpose.msra.mxu0 0
    %885 = vmatprep.subr.bf16.mxu0 0
    %886 = vmatpush1.bf16.xpose.msra.mxu0 0
    %887 = vmatprep.subr.bf16.mxu0 0
    %888 = vmatpush1.bf16.xpose.msra.mxu0 0
    %889 = vmatprep.subr.bf16.mxu0 0
    %890 = vmatpush1.bf16.xpose.msra.mxu0 0
    %891 = vmatprep.subr.bf16.mxu0 0
    %892 = vmatpush1.bf16.xpose.msra.mxu0 0
    %893 = vmatprep.mubr.bf16.mxu0 0
    %894 = vmatmul.mubr.bf16.gmra.mrb[0].mxu0 %v859
    %v895 = vpop.f32.mrb[0].mxu0
    %v896 = vadd.f32 %v107, %v895
    %v897 = vpop.f32.mrb[0].mxu0
    %v898 = vpop.f32.mrb[0].mxu0
    %v899 = vpop.f32.mrb[0].mxu0
    %900 = vdwg.mxu0
    %v901 = vsel %vm791, %v896, -inf
    %902 = vmax.xlane.f32.xlu0 %v901
    %v903 = vpop.xlane.xlu0 %902
    %v904 = vsub.f32 %v896, %v903
    %v905 = vmul.f32 %v904, 1.442695
    %v906 = vpow.pop %v905
    %v907 = vsel %vm791, %v906, 0.0
    %908 = vadd.xlane.f32.xlu0 %v907
    %v909 = vpop.xlane.xlu0 %908
    %v910 = vrcp.pop %v909
    %v911 = vmul.f32 %v906, %v910
    %v912 = vadd.f32 %v911, %v802
    %v913 = vpack.c.bf16 %v912, %v912
    %v914 = vpack.c.bf16 %v710, %v710
    %v916 = vsel %vm791, %v913, 0
    %vm918 = vcmask 1043456
    %v920 = vsel %vm918, %v914, 0
    %922 = vmatprep.subr.bf16.mxu0 0
    %923 = vmatpush1.bf16.msra.mxu0 %v920
    %924 = vmatprep.subr.bf16.mxu0 0
    %925 = vmatpush1.bf16.msra.mxu0 0
    %926 = vmatprep.subr.bf16.mxu0 0
    %927 = vmatpush1.bf16.msra.mxu0 0
    %928 = vmatprep.subr.bf16.mxu0 0
    %929 = vmatpush1.bf16.msra.mxu0 0
    %930 = vmatprep.subr.bf16.mxu0 0
    %931 = vmatpush1.bf16.msra.mxu0 0
    %932 = vmatprep.subr.bf16.mxu0 0
    %933 = vmatpush1.bf16.msra.mxu0 0
    %934 = vmatprep.subr.bf16.mxu0 0
    %935 = vmatpush1.bf16.msra.mxu0 0
    %936 = vmatprep.subr.bf16.mxu0 0
    %937 = vmatpush1.bf16.msra.mxu0 0
    %938 = vmatprep.subr.bf16.mxu0 0
    %939 = vmatpush1.bf16.msra.mxu0 0
    %940 = vmatprep.subr.bf16.mxu0 0
    %941 = vmatpush1.bf16.msra.mxu0 0
    %942 = vmatprep.subr.bf16.mxu0 0
    %943 = vmatpush1.bf16.msra.mxu0 0
    %944 = vmatprep.subr.bf16.mxu0 0
    %945 = vmatpush1.bf16.msra.mxu0 0
    %946 = vmatprep.subr.bf16.mxu0 0
    %947 = vmatpush1.bf16.msra.mxu0 0
    %948 = vmatprep.subr.bf16.mxu0 0
    %949 = vmatpush1.bf16.msra.mxu0 0
    %950 = vmatprep.subr.bf16.mxu0 0
    %951 = vmatpush1.bf16.msra.mxu0 0
    %952 = vmatprep.subr.bf16.mxu0 0
    %953 = vmatpush1.bf16.msra.mxu0 0
    %954 = vmatprep.mubr.bf16.mxu0 0
    %955 = vmatmul.mubr.bf16.gmra.mrb[0].mxu0 %v916
    %v956 = vpop.f32.mrb[0].mxu0
    %v957 = vadd.f32 0.0, %v956
    %v958 = vpop.f32.mrb[0].mxu0
    %v959 = vpop.f32.mrb[0].mxu0
    %v960 = vpop.f32.mrb[0].mxu0
    %961 = vdwg.mxu0
    %v963 = vsel %vm791, %v857, 0
    %v966 = vsel %vm918, %v858, 0
    %968 = vmatprep.subr.bf16.mxu0 0
    %969 = vmatpush1.bf16.msra.mxu0 %v966
    %970 = vmatprep.subr.bf16.mxu0 0
    %971 = vmatpush1.bf16.msra.mxu0 0
    %972 = vmatprep.subr.bf16.mxu0 0
    %973 = vmatpush1.bf16.msra.mxu0 0
    %974 = vmatprep.subr.bf16.mxu0 0
    %975 = vmatpush1.bf16.msra.mxu0 0
    %976 = vmatprep.subr.bf16.mxu0 0
    %977 = vmatpush1.bf16.msra.mxu0 0
    %978 = vmatprep.subr.bf16.mxu0 0
    %979 = vmatpush1.bf16.msra.mxu0 0
    %980 = vmatprep.subr.bf16.mxu0 0
    %981 = vmatpush1.bf16.msra.mxu0 0
    %982 = vmatprep.subr.bf16.mxu0 0
    %983 = vmatpush1.bf16.msra.mxu0 0
    %984 = vmatprep.subr.bf16.mxu0 0
    %985 = vmatpush1.bf16.msra.mxu0 0
    %986 = vmatprep.subr.bf16.mxu0 0
    %987 = vmatpush1.bf16.msra.mxu0 0
    %988 = vmatprep.subr.bf16.mxu0 0
    %989 = vmatpush1.bf16.msra.mxu0 0
    %990 = vmatprep.subr.bf16.mxu0 0
    %991 = vmatpush1.bf16.msra.mxu0 0
    %992 = vmatprep.subr.bf16.mxu0 0
    %993 = vmatpush1.bf16.msra.mxu0 0
    %994 = vmatprep.subr.bf16.mxu0 0
    %995 = vmatpush1.bf16.msra.mxu0 0
    %996 = vmatprep.subr.bf16.mxu0 0
    %997 = vmatpush1.bf16.msra.mxu0 0
    %998 = vmatprep.subr.bf16.mxu0 0
    %999 = vmatpush1.bf16.msra.mxu0 0
    %1000 = vmatprep.mubr.bf16.mxu0 0
    %1001 = vmatmul.mubr.bf16.gmra.mrb[0].mxu0 %v963
    %v1002 = vpop.f32.mrb[0].mxu0
    %v1003 = vadd.f32 %v957, %v1002
    %v1004 = vpop.f32.mrb[0].mxu0
    %v1005 = vpop.f32.mrb[0].mxu0
    %v1006 = vpop.f32.mrb[0].mxu0
    %1007 = vdwg.mxu0
    %s1008 = smul.u32 0, 2
    %s1009 = sadd.s32 %s1008, 1
    %s1010 = scalar_lea.vmem %s4, 8
    %v1011 = vld [vmem:[%s1010] sm:$0xff]
    %s1012 = scalar_lea.vmem [#allocation7], 4
    %v1013 = vld [vmem:[%s1012] sm:$0xf]
    %1014 = vset.pattern.permute.xlu0 0
    %1015 = vperm.xlu0 %1014, %v1011
    %v1016 = vpop.permute.xlu0 %1015
    %v1017 = vlaneseq
    %v1018 = vshrl.u32 %v1017, 7
    %v1019 = vsub.s32 0, %v1018
    %v1020 = vrot.slane %v1013, %v1019
    %vm1021 = vcmp.ne.s32.totalorder %v1016, %v1020
    %v1022 = vsel %vm1021, 1, 0
    %1023 = vset.pattern.permute.xlu0 1
    %1024 = vperm.xlu0 %1023, %v1011
    %v1025 = vpop.permute.xlu0 %1024
    %v1026 = vlaneseq
    %v1027 = vshrl.u32 %v1026, 7
    %v1028 = vsub.s32 1, %v1027
    %v1029 = vrot.slane %v1013, %v1028
    %vm1030 = vcmp.ne.s32.totalorder %v1025, %v1029
    %v1031 = vsel %vm1030, 1, 0
    %v1032 = vadd.s32 %v1022, %v1031
    %1033 = vset.pattern.permute.xlu0 2
    %1034 = vperm.xlu0 %1033, %v1011
    %v1035 = vpop.permute.xlu0 %1034
    %v1036 = vlaneseq
    %v1037 = vshrl.u32 %v1036, 7
    %v1038 = vsub.s32 2, %v1037
    %v1039 = vrot.slane %v1013, %v1038
    %vm1040 = vcmp.ne.s32.totalorder %v1035, %v1039
    %v1041 = vsel %vm1040, 1, 0
    %v1042 = vadd.s32 %v1032, %v1041
    %1043 = vset.pattern.permute.xlu0 3
    %1044 = vperm.xlu0 %1043, %v1011
    %v1045 = vpop.permute.xlu0 %1044
    %v1046 = vlaneseq
    %v1047 = vshrl.u32 %v1046, 7
    %v1048 = vsub.s32 3, %v1047
    %v1049 = vrot.slane %v1013, %v1048
    %vm1050 = vcmp.ne.s32.totalorder %v1045, %v1049
    %v1051 = vsel %vm1050, 1, 0
    %v1052 = vadd.s32 %v1042, %v1051
    %v1053 = vmul.u32 %v1052, 4
    %s1054 = smul.u32 %s1009, 5
    %vm1055 = vcmp.ge.s32.totalorder %v1053, 0
    %vm1056 = vcmp.lt.s32.totalorder %v1053, 4
    %vm1057 = vmand %vm1055, %vm1056
    %s1058 = sld [smem:[#allocation2 + %s1054]]
    %v1059 = vstv %s1058
    %v1060 = vsel %vm1057, %v1059, 0.0
    %vm1061 = vcmp.ge.s32.totalorder %v1053, 4
    %vm1062 = vcmp.lt.s32.totalorder %v1053, 8
    %vm1063 = vmand %vm1061, %vm1062
    %s1064 = sadd.s32 %s1054, 1
    %s1065 = sld [smem:[#allocation2 + %s1064]]
    %v1066 = vstv %s1065
    %v1067 = vsel %vm1063, %v1066, %v1060
    %vm1068 = vcmp.ge.s32.totalorder %v1053, 8
    %vm1069 = vcmp.lt.s32.totalorder %v1053, 12
    %vm1070 = vmand %vm1068, %vm1069
    %s1071 = sadd.s32 %s1054, 2
    %s1072 = sld [smem:[#allocation2 + %s1071]]
    %v1073 = vstv %s1072
    %v1074 = vsel %vm1070, %v1073, %v1067
    %vm1075 = vcmp.ge.s32.totalorder %v1053, 12
    %vm1076 = vcmp.lt.s32.totalorder %v1053, 16
    %vm1077 = vmand %vm1075, %vm1076
    %s1078 = sadd.s32 %s1054, 3
    %s1079 = sld [smem:[#allocation2 + %s1078]]
    %v1080 = vstv %s1079
    %v1081 = vsel %vm1077, %v1080, %v1074
    %vm1082 = vcmp.ge.s32.totalorder %v1053, 16
    %vm1083 = vcmp.lt.s32.totalorder %v1053, 20
    %vm1084 = vmand %vm1082, %vm1083
    %s1085 = sadd.s32 %s1054, 4
    %s1086 = sld [smem:[#allocation2 + %s1085]]
    %v1087 = vstv %s1086
    %v1088 = vsel %vm1084, %v1087, %v1081
    %v1089 = vmul.f32 %v1088, 0.17677669
    %v1090 = vadd.f32 %v1089, %v107
    %v1091 = vsel %vm791, %v1090, -inf
    %1092 = vmax.xlane.f32.xlu0 %v1091
    %v1093 = vpop.xlane.xlu0 %1092
    %v1094 = vsub.f32 %v1090, %v1093
    %v1095 = vmul.f32 %v1094, 1.442695
    %v1096 = vpow.pop %v1095
    %v1097 = vsel %vm791, %v1096, 0.0
    %1098 = vadd.xlane.f32.xlu0 %v1097
    %v1099 = vpop.xlane.xlu0 %1098
    %v1100 = vrcp.pop %v1099
    %v1101 = vmul.f32 %v1096, %v1100
    %v1102 = vpack.c.bf16 %v257, %v257
    %v1103 = vpack.c.bf16 %v405, %v405
    %1104 = vmatprep.subr.bf16.mxu0 0
    %1105 = vmatpush1.bf16.xpose.msra.mxu0 %v1103
    %1106 = vmatprep.subr.bf16.mxu0 0
    %1107 = vmatpush1.bf16.xpose.msra.mxu0 0
    %1108 = vmatprep.subr.bf16.mxu0 0
    %1109 = vmatpush1.bf16.xpose.msra.mxu0 0
    %1110 = vmatprep.subr.bf16.mxu0 0
    %1111 = vmatpush1.bf16.xpose.msra.mxu0 0
    %1112 = vmatprep.subr.bf16.mxu0 0
    %1113 = vmatpush1.bf16.xpose.msra.mxu0 0
    %1114 = vmatprep.subr.bf16.mxu0 0
    %1115 = vmatpush1.bf16.xpose.msra.mxu0 0
    %1116 = vmatprep.subr.bf16.mxu0 0
    %1117 = vmatpush1.bf16.xpose.msra.mxu0 0
    %1118 = vmatprep.subr.bf16.mxu0 0
    %1119 = vmatpush1.bf16.xpose.msra.mxu0 0
    %1120 = vmatprep.subr.bf16.mxu0 0
    %1121 = vmatpush1.bf16.xpose.msra.mxu0 0
    %1122 = vmatprep.subr.bf16.mxu0 0
    %1123 = vmatpush1.bf16.xpose.msra.mxu0 0
    %1124 = vmatprep.subr.bf16.mxu0 0
    %1125 = vmatpush1.bf16.xpose.msra.mxu0 0
    %1126 = vmatprep.subr.bf16.mxu0 0
    %1127 = vmatpush1.bf16.xpose.msra.mxu0 0
    %1128 = vmatprep.subr.bf16.mxu0 0
    %1129 = vmatpush1.bf16.xpose.msra.mxu0 0
    %1130 = vmatprep.subr.bf16.mxu0 0
    %1131 = vmatpush1.bf16.xpose.msra.mxu0 0
    %1132 = vmatprep.subr.bf16.mxu0 0
    %1133 = vmatpush1.bf16.xpose.msra.mxu0 0
    %1134 = vmatprep.subr.bf16.mxu0 0
    %1135 = vmatpush1.bf16.xpose.msra.mxu0 0
    %1136 = vmatprep.mubr.bf16.mxu0 0
    %1137 = vmatmul.mubr.bf16.gmra.mrb[0].mxu0 %v1102
    %v1138 = vpop.f32.mrb[0].mxu0
    %v1139 = vadd.f32 %v107, %v1138
    %v1140 = vpop.f32.mrb[0].mxu0
    %v1141 = vpop.f32.mrb[0].mxu0
    %v1142 = vpop.f32.mrb[0].mxu0
    %1143 = vdwg.mxu0
    %v1144 = vsel %vm791, %v1139, -inf
    %1145 = vmax.xlane.f32.xlu0 %v1144
    %v1146 = vpop.xlane.xlu0 %1145
    %v1147 = vsub.f32 %v1139, %v1146
    %v1148 = vmul.f32 %v1147, 1.442695
    %v1149 = vpow.pop %v1148
    %v1150 = vsel %vm791, %v1149, 0.0
    %1151 = vadd.xlane.f32.xlu0 %v1150
    %v1152 = vpop.xlane.xlu0 %1151
    %v1153 = vrcp.pop %v1152
    %v1154 = vmul.f32 %v1149, %v1153
    %v1155 = vadd.f32 %v1154, %v1101
    %v1156 = vpack.c.bf16 %v1155, %v1155
    %v1157 = vpack.c.bf16 %v411, %v411
    %v1158 = vpack.c.bf16 %v557, %v557
    %v1159 = vpack.c.bf16 %v705, %v705
    %1160 = vmatprep.subr.bf16.mxu0 0
    %1161 = vmatpush1.bf16.xpose.msra.mxu0 %v1159
    %1162 = vmatprep.subr.bf16.mxu0 0
    %1163 = vmatpush1.bf16.xpose.msra.mxu0 0
    %1164 = vmatprep.subr.bf16.mxu0 0
    %1165 = vmatpush1.bf16.xpose.msra.mxu0 0
    %1166 = vmatprep.subr.bf16.mxu0 0
    %1167 = vmatpush1.bf16.xpose.msra.mxu0 0
    %1168 = vmatprep.subr.bf16.mxu0 0
    %1169 = vmatpush1.bf16.xpose.msra.mxu0 0
    %1170 = vmatprep.subr.bf16.mxu0 0
    %1171 = vmatpush1.bf16.xpose.msra.mxu0 0
    %1172 = vmatprep.subr.bf16.mxu0 0
    %1173 = vmatpush1.bf16.xpose.msra.mxu0 0
    %1174 = vmatprep.subr.bf16.mxu0 0
    %1175 = vmatpush1.bf16.xpose.msra.mxu0 0
    %1176 = vmatprep.subr.bf16.mxu0 0
    %1177 = vmatpush1.bf16.xpose.msra.mxu0 0
    %1178 = vmatprep.subr.bf16.mxu0 0
    %1179 = vmatpush1.bf16.xpose.msra.mxu0 0
    %1180 = vmatprep.subr.bf16.mxu0 0
    %1181 = vmatpush1.bf16.xpose.msra.mxu0 0
    %1182 = vmatprep.subr.bf16.mxu0 0
    %1183 = vmatpush1.bf16.xpose.msra.mxu0 0
    %1184 = vmatprep.subr.bf16.mxu0 0
    %1185 = vmatpush1.bf16.xpose.msra.mxu0 0
    %1186 = vmatprep.subr.bf16.mxu0 0
    %1187 = vmatpush1.bf16.xpose.msra.mxu0 0
    %1188 = vmatprep.subr.bf16.mxu0 0
    %1189 = vmatpush1.bf16.xpose.msra.mxu0 0
    %1190 = vmatprep.subr.bf16.mxu0 0
    %1191 = vmatpush1.bf16.xpose.msra.mxu0 0
    %1192 = vmatprep.mubr.bf16.mxu0 0
    %1193 = vmatmul.mubr.bf16.gmra.mrb[0].mxu0 %v1158
    %v1194 = vpop.f32.mrb[0].mxu0
    %v1195 = vadd.f32 %v107, %v1194
    %v1196 = vpop.f32.mrb[0].mxu0
    %v1197 = vpop.f32.mrb[0].mxu0
    %v1198 = vpop.f32.mrb[0].mxu0
    %1199 = vdwg.mxu0
    %v1200 = vsel %vm791, %v1195, -inf
    %1201 = vmax.xlane.f32.xlu0 %v1200
    %v1202 = vpop.xlane.xlu0 %1201
    %v1203 = vsub.f32 %v1195, %v1202
    %v1204 = vmul.f32 %v1203, 1.442695
    %v1205 = vpow.pop %v1204
    %v1206 = vsel %vm791, %v1205, 0.0
    %1207 = vadd.xlane.f32.xlu0 %v1206
    %v1208 = vpop.xlane.xlu0 %1207
    %v1209 = vrcp.pop %v1208
    %v1210 = vmul.f32 %v1205, %v1209
    %v1211 = vadd.f32 %v1210, %v1101
    %v1212 = vpack.c.bf16 %v1211, %v1211
    %v1213 = vpack.c.bf16 %v711, %v711
    %v1215 = vsel %vm791, %v1212, 0
    %v1218 = vsel %vm918, %v1213, 0
    %1220 = vmatprep.subr.bf16.mxu0 0
    %1221 = vmatpush1.bf16.msra.mxu0 %v1218
    %1222 = vmatprep.subr.bf16.mxu0 0
    %1223 = vmatpush1.bf16.msra.mxu0 0
    %1224 = vmatprep.subr.bf16.mxu0 0
    %1225 = vmatpush1.bf16.msra.mxu0 0
    %1226 = vmatprep.subr.bf16.mxu0 0
    %1227 = vmatpush1.bf16.msra.mxu0 0
    %1228 = vmatprep.subr.bf16.mxu0 0
    %1229 = vmatpush1.bf16.msra.mxu0 0
    %1230 = vmatprep.subr.bf16.mxu0 0
    %1231 = vmatpush1.bf16.msra.mxu0 0
    %1232 = vmatprep.subr.bf16.mxu0 0
    %1233 = vmatpush1.bf16.msra.mxu0 0
    %1234 = vmatprep.subr.bf16.mxu0 0
    %1235 = vmatpush1.bf16.msra.mxu0 0
    %1236 = vmatprep.subr.bf16.mxu0 0
    %1237 = vmatpush1.bf16.msra.mxu0 0
    %1238 = vmatprep.subr.bf16.mxu0 0
    %1239 = vmatpush1.bf16.msra.mxu0 0
    %1240 = vmatprep.subr.bf16.mxu0 0
    %1241 = vmatpush1.bf16.msra.mxu0 0
    %1242 = vmatprep.subr.bf16.mxu0 0
    %1243 = vmatpush1.bf16.msra.mxu0 0
    %1244 = vmatprep.subr.bf16.mxu0 0
    %1245 = vmatpush1.bf16.msra.mxu0 0
    %1246 = vmatprep.subr.bf16.mxu0 0
    %1247 = vmatpush1.bf16.msra.mxu0 0
    %1248 = vmatprep.subr.bf16.mxu0 0
    %1249 = vmatpush1.bf16.msra.mxu0 0
    %1250 = vmatprep.subr.bf16.mxu0 0
    %1251 = vmatpush1.bf16.msra.mxu0 0
    %1252 = vmatprep.mubr.bf16.mxu0 0
    %1253 = vmatmul.mubr.bf16.gmra.mrb[0].mxu0 %v1215
    %v1254 = vpop.f32.mrb[0].mxu0
    %v1255 = vadd.f32 0.0, %v1254
    %v1256 = vpop.f32.mrb[0].mxu0
    %v1257 = vpop.f32.mrb[0].mxu0
    %v1258 = vpop.f32.mrb[0].mxu0
    %1259 = vdwg.mxu0
    %v1261 = vsel %vm791, %v1156, 0
    %v1264 = vsel %vm918, %v1157, 0
    %1266 = vmatprep.subr.bf16.mxu0 0
    %1267 = vmatpush1.bf16.msra.mxu0 %v1264
    %1268 = vmatprep.subr.bf16.mxu0 0
    %1269 = vmatpush1.bf16.msra.mxu0 0
    %1270 = vmatprep.subr.bf16.mxu0 0
    %1271 = vmatpush1.bf16.msra.mxu0 0
    %1272 = vmatprep.subr.bf16.mxu0 0
    %1273 = vmatpush1.bf16.msra.mxu0 0
    %1274 = vmatprep.subr.bf16.mxu0 0
    %1275 = vmatpush1.bf16.msra.mxu0 0
    %1276 = vmatprep.subr.bf16.mxu0 0
    %1277 = vmatpush1.bf16.msra.mxu0 0
    %1278 = vmatprep.subr.bf16.mxu0 0
    %1279 = vmatpush1.bf16.msra.mxu0 0
    %1280 = vmatprep.subr.bf16.mxu0 0
    %1281 = vmatpush1.bf16.msra.mxu0 0
    %1282 = vmatprep.subr.bf16.mxu0 0
    %1283 = vmatpush1.bf16.msra.mxu0 0
    %1284 = vmatprep.subr.bf16.mxu0 0
    %1285 = vmatpush1.bf16.msra.mxu0 0
    %1286 = vmatprep.subr.bf16.mxu0 0
    %1287 = vmatpush1.bf16.msra.mxu0 0
    %1288 = vmatprep.subr.bf16.mxu0 0
    %1289 = vmatpush1.bf16.msra.mxu0 0
    %1290 = vmatprep.subr.bf16.mxu0 0
    %1291 = vmatpush1.bf16.msra.mxu0 0
    %1292 = vmatprep.subr.bf16.mxu0 0
    %1293 = vmatpush1.bf16.msra.mxu0 0
    %1294 = vmatprep.subr.bf16.mxu0 0
    %1295 = vmatpush1.bf16.msra.mxu0 0
    %1296 = vmatprep.subr.bf16.mxu0 0
    %1297 = vmatpush1.bf16.msra.mxu0 0
    %1298 = vmatprep.mubr.bf16.mxu0 0
    %1299 = vmatmul.mubr.bf16.gmra.mrb[0].mxu0 %v1261
    %v1300 = vpop.f32.mrb[0].mxu0
    %v1301 = vadd.f32 %v1255, %v1300
    %v1302 = vpop.f32.mrb[0].mxu0
    %v1303 = vpop.f32.mrb[0].mxu0
    %v1304 = vpop.f32.mrb[0].mxu0
    %1305 = vdwg.mxu0
    %v1306 = vpack.c.bf16 %v1301, %v1003
    %v1307 = vld [vmem:[#allocation10 + $0x18] sm:$0xf]
    %v1308 = vld [vmem:[#allocation10 + $0x34] sm:$0xf]
    %v1309 = vld [vmem:[#allocation10 + $0x50] sm:$0xf]
    %v1310 = vld [vmem:[#allocation10 + $0x6c] sm:$0xf]
    %v1311 = vld [vmem:[#allocation10 + $0x88] sm:$0xf]
    %v1312 = vld [vmem:[#allocation10 + $0xa4] sm:$0xf]
    %v1313 = vld [vmem:[#allocation10 + $0xc0] sm:$0xf]
    %v1314 = vld [vmem:[#allocation10 + $0xdc] sm:$0xf]
    %v1315 = vld [vmem:[#allocation10 + $0xf8] sm:$0xf]
    %v1316 = vld [vmem:[#allocation10 + $0x114] sm:$0xf]
    %v1317 = vld [vmem:[#allocation10 + $0x130] sm:$0xf]
    %v1318 = vld [vmem:[#allocation10 + $0x14c] sm:$0xf]
    %v1319 = vld [vmem:[#allocation10 + $0x168] sm:$0xf]
    %v1320 = vld [vmem:[#allocation10 + $0x184] sm:$0xf]
    %v1321 = vld [vmem:[#allocation10 + $0x1a0] sm:$0xf]
    %v1322 = vld [vmem:[#allocation10 + $0x1bc] sm:$0xf]
    %v1323 = vlaneseq
    %v1324 = vshrl.u32 %v1323, 7
    %v1325 = vsub.s32 6, %v1324
    %v1326 = vrot.slane %v100, %v1325
    %v1343 = vunpack.c.l.b16 %v1307
    %v1344 = vunpack.c.l.b16 %v1308
    %v1345 = vunpack.c.l.b16 %v1309
    %v1346 = vunpack.c.l.b16 %v1310
    %v1347 = vunpack.c.l.b16 %v1311
    %v1348 = vunpack.c.l.b16 %v1312
    %v1349 = vunpack.c.l.b16 %v1313
    %v1350 = vunpack.c.l.b16 %v1314
    %v1351 = vunpack.c.l.b16 %v1315
    %v1352 = vunpack.c.l.b16 %v1316
    %v1353 = vunpack.c.l.b16 %v1317
    %v1354 = vunpack.c.l.b16 %v1318
    %v1355 = vunpack.c.l.b16 %v1319
    %v1356 = vunpack.c.l.b16 %v1320
    %v1357 = vunpack.c.l.b16 %v1321
    %v1358 = vunpack.c.l.b16 %v1322
    %v1359 = vpack.c.b16 %v1344, %v1343
    %v1360 = vpack.c.b16 %v1346, %v1345
    %v1361 = vpack.c.b16 %v1348, %v1347
    %v1362 = vpack.c.b16 %v1350, %v1349
    %v1363 = vpack.c.b16 %v1352, %v1351
    %v1364 = vpack.c.b16 %v1354, %v1353
    %v1365 = vpack.c.b16 %v1356, %v1355
    %v1366 = vpack.c.b16 %v1358, %v1357
    %1375 = vmatprep.subr.bf16.mxu0 0
    %1376 = vmatpush1.bf16.msra.mxu0 %v1359
    %1377 = vmatprep.subr.bf16.mxu0 0
    %1378 = vmatpush1.bf16.msra.mxu0 %v1360
    %1379 = vmatprep.subr.bf16.mxu0 0
    %1380 = vmatpush1.bf16.msra.mxu0 %v1361
    %1381 = vmatprep.subr.bf16.mxu0 0
    %1382 = vmatpush1.bf16.msra.mxu0 %v1362
    %1383 = vmatprep.subr.bf16.mxu0 0
    %1384 = vmatpush1.bf16.msra.mxu0 %v1363
    %1385 = vmatprep.subr.bf16.mxu0 0
    %1386 = vmatpush1.bf16.msra.mxu0 %v1364
    %1387 = vmatprep.subr.bf16.mxu0 0
    %1388 = vmatpush1.bf16.msra.mxu0 %v1365
    %1389 = vmatprep.subr.bf16.mxu0 0
    %1390 = vmatpush1.bf16.msra.mxu0 %v1366
    %1391 = vmatprep.subr.bf16.mxu0 0
    %1392 = vmatpush1.bf16.msra.mxu0 0
    %1393 = vmatprep.subr.bf16.mxu0 0
    %1394 = vmatpush1.bf16.msra.mxu0 0
    %1395 = vmatprep.subr.bf16.mxu0 0
    %1396 = vmatpush1.bf16.msra.mxu0 0
    %1397 = vmatprep.subr.bf16.mxu0 0
    %1398 = vmatpush1.bf16.msra.mxu0 0
    %1399 = vmatprep.subr.bf16.mxu0 0
    %1400 = vmatpush1.bf16.msra.mxu0 0
    %1401 = vmatprep.subr.bf16.mxu0 0
    %1402 = vmatpush1.bf16.msra.mxu0 0
    %1403 = vmatprep.subr.bf16.mxu0 0
    %1404 = vmatpush1.bf16.msra.mxu0 0
    %1405 = vmatprep.subr.bf16.mxu0 0
    %1406 = vmatpush1.bf16.msra.mxu0 0
    %1407 = vmatprep.mubr.bf16.mxu0 0
    %1408 = vmatmul.mubr.bf16.gmra.mrb[0].mxu0 %v1306
    %v1409 = vpop.f32.mrb[0].mxu0
    %v1410 = vadd.f32 %v1326, %v1409
    %v1411 = vpop.f32.mrb[0].mxu0
    %v1412 = vpop.f32.mrb[0].mxu0
    %v1413 = vadd.f32 %v1326, %v1412
    %v1414 = vpop.f32.mrb[0].mxu0
    %1415 = vdwg.mxu0
    %v1416 = vld [vmem:[%s3] sm:$0xff]
    %v1417 = vld [vmem:[%s3 + $0x8] sm:$0xff]
    %v1418 = vadd.f32 %v1410, %v1416
    %v1419 = vadd.f32 %v1413, %v1417
    %v1420 = vmul.f32 %v1418, %v106
    %v1421 = vmul.f32 %v1419, %v106
    %1422 = vadd.xlane.f32.xlu0 %v1420
    %v1423 = vpop.xlane.xlu0 %1422
    %1424 = vadd.xlane.f32.xlu0 %v1421
    %v1425 = vpop.xlane.xlu0 %1424
    %v1426 = vmul.f32 %v1423, 0.03125
    %v1427 = vmul.f32 %v1425, 0.03125
    %v1428 = vsub.f32 %v1418, %v1426
    %v1429 = vsub.f32 %v1419, %v1427
    %v1430 = vmul.f32 %v1428, %v106
    %v1431 = vmul.f32 %v1429, %v106
    %v1432 = vmul.f32 %v1430, %v1430
    %v1433 = vmul.f32 %v1431, %v1431
    %1434 = vadd.xlane.f32.xlu0 %v1432
    %v1435 = vpop.xlane.xlu0 %1434
    %1436 = vadd.xlane.f32.xlu0 %v1433
    %v1437 = vpop.xlane.xlu0 %1436
    %v1438 = vmul.f32 %v1435, 0.03125
    %v1439 = vmul.f32 %v1437, 0.03125
    %v1440 = vadd.f32 %v1438, 1e-08
    %v1441 = vadd.f32 %v1439, 1e-08
    %v1442 = vrsqrt.pop %v1440
    %v1443 = vrsqrt.pop %v1441
    %v1444 = vmul.f32 %v1430, %v1442
    %v1445 = vmul.f32 %v1431, %v1443
    %v1446 = vlaneseq
    %v1447 = vshrl.u32 %v1446, 7
    %v1448 = vsub.s32 3, %v1447
    %v1449 = vrot.slane %v101, %v1448
    %v1450 = vmul.f32 %v1444, %v1449
    %v1451 = vmul.f32 %v1445, %v1449
    %v1452 = vlaneseq
    %v1453 = vshrl.u32 %v1452, 7
    %v1454 = vsub.s32 4, %v1453
    %v1455 = vrot.slane %v101, %v1454
    %v1456 = vadd.f32 %v1450, %v1455
    %v1457 = vadd.f32 %v1451, %v1455
    %1458 = vst [vmem:[#allocation12] sm:$0xff] %v1456
    %1459 = vst [vmem:[#allocation12 + $0x8] sm:$0xff] %v1457
    // Predicated region
    $region58: #{tpu_custom_call.1} parent=1 // pred_check
      _
    $region59: #{tpu_custom_call.1} parent=1 // pred_check_branch
      %1461 = sbr.rel (0) target = $region61
    $region60: #{tpu_custom_call.1} parent=1 // pred_region
      %s1463 = ssub.s32 256, 256
      %1464 = vsyncadd [#allocation4], %s1463
      %s1465 = sshll.u32 [#allocation12], 4
      %s1466 = int_to_ptr.vmem [resolvable:$true] %s1465
      %1471 = dma.vmem_to_hbm [thread:$0]  %s1466, 256, %s9, [#allocation4], 128, 128, 8
    $region61: #{tpu_custom_call.1} parent=1 // pred_fallthru
      _
    // Predicated region
    $region62: #{tpu_custom_call.1} parent=1 // pred_check
      _
    $region63: #{tpu_custom_call.1} parent=1 // pred_check_branch
      %1473 = sbr.rel (0) target = $region65
    $region64: #{tpu_custom_call.1} parent=1 // pred_region
      %1474 = dma.done [#allocation4], 256
    $region65: #{tpu_custom_call.1} parent=1 // pred_fallthru
      _
    %1475 = vsyncpa [#allocation3], 1
    %1476 = vsyncpa [#allocation8], 1
    %1477 = vsyncpa [#allocation11], 1
    %1478 = vsyncpa [#allocation4], 1
    %1479 = vsyncpa [#allocation5], 1

// kernel: tpu_custom_call.1
$region0: #{tpu_custom_call.1}
  #allocation0 [shape = 'u32[]', space=smem, size = 0x4, offset = 0x4, fixed_abs, tag = 'smem constant byte address 0x4 - core index']
  #allocation1 [shape = 'u32[144,128]{1,0:T(1,128)}', space=vmem, size = 0x12000, scoped, tag = 'internal scratch']
  %s0 = inlined_call_operand.vmem [shape: f32[10], index: 0, kind: input, shape index: {}]
  %s1 = inlined_call_operand.vmem [shape: f32[2,8,128], index: 1, kind: input, shape index: {}]
  %s2 = inlined_call_operand.hbm [shape: f32[2,8,128], index: 2, kind: input, shape index: {}]
  %s3 = inlined_call_operand.vmem [shape: f32[2,8,128], index: 3, kind: input, shape index: {}]
  %s4 = inlined_call_operand.vmem [shape: s32[2,8,4], index: 4, kind: input, shape index: {}]
  %s5 = inlined_call_operand.hbm [shape: s32[2,4,8], index: 5, kind: input, shape index: {}]
  %s6 = inlined_call_operand.hbm [shape: f32[8,8], index: 6, kind: input, shape index: {}]
  %s7 = inlined_call_operand.hbm [shape: bf16[128,896], index: 7, kind: input, shape index: {}]
  %s8 = inlined_call_operand.vmem [shape: f32[13,128], index: 8, kind: input, shape index: {}]
  %s9 = inlined_call_operand.hbm [shape: f32[2,8,128], index: 9, kind: output, shape index: {}]
  %s10 = sld [smem:[#allocation0]]
  $region66: #{tpu_custom_call.1} parent=0
    _
  %s12 = ssub.s32 1, %s10
  %s13 = scalar_select 0, %s12, %s10
  $region1: #{tpu_custom_call.1} parent=0
    #allocation2 [shape = 'u8[512]{0}', space=smem, size = 0x200, scoped, tag = 'input window, operand 0, single buffered']
    #allocation3 [shape = 's32[1]{0}', space=sflag, size = 0x4, scoped, tag = 'scoped memory for tpu_custom_call.1']
    #allocation4 [shape = 's32[1]{0}', space=sflag, size = 0x4, scoped, tag = 'scoped memory for tpu_custom_call.1']
    #allocation5 [shape = 's32[1]{0}', space=sflag, size = 0x4, scoped, tag = 'scoped memory for tpu_custom_call.1']
    #allocation6 [shape = 'u8[8192]{0}', space=vmem, size = 0x2000, scoped, tag = 'input window, operand 2, single buffered']
    #allocation7 [shape = 'u8[4096]{0}', space=vmem, size = 0x1000, scoped, tag = 'input window, operand 5, single buffered']
    #allocation8 [shape = 's32[1]{0}', space=sflag, size = 0x4, scoped, tag = 'scoped memory for tpu_custom_call.1']
    #allocation9 [shape = 'u8[4096]{0}', space=vmem, size = 0x1000, scoped, tag = 'input window, operand 6, single buffered']
    #allocation10 [shape = 'u8[229376]{0}', space=vmem, size = 0x38000, scoped, tag = 'input window, operand 7, single buffered']
    #allocation11 [shape = 's32[1]{0}', space=sflag, size = 0x4, scoped, tag = 'scoped memory for tpu_custom_call.1']
    #allocation12 [shape = 'u8[8192]{0}', space=vmem, size = 0x2000, scoped, tag = 'output window, operand 0, single buffered']
    %14 = vsyncpa [#allocation5], 0
    %15 = vsyncpa [#allocation3], 0
    %16 = vsyncpa [#allocation8], 0
    %17 = vsyncpa [#allocation11], 0
    %18 = vsyncpa [#allocation4], 0
    // Predicated region
    $region2: #{tpu_custom_call.1} parent=1 // pred_check
      _
    $region3: #{tpu_custom_call.1} parent=1 // pred_check_branch
      %20 = sbr.rel (0) target = $region5
    $region4: #{tpu_custom_call.1} parent=1 // pred_region
      %s22 = ssub.s32 16, 16
      %23 = vsyncadd [#allocation5], %s22
      %s25 = sshll.u32 %s0, 4
      %s26 = int_to_ptr.vmem [resolvable:$true] %s25
      %28 = dma.vmem_to_smem %s26, 16, [#allocation2], [#allocation5]
    $region5: #{tpu_custom_call.1} parent=1 // pred_fallthru
      _
    // Predicated region
    $region6: #{tpu_custom_call.1} parent=1 // pred_check
      _
    $region7: #{tpu_custom_call.1} parent=1 // pred_check_branch
      %30 = sbr.rel (0) target = $region9
    $region8: #{tpu_custom_call.1} parent=1 // pred_region
      _
    $region9: #{tpu_custom_call.1} parent=1 // pred_fallthru
      _
    // Predicated region
    $region10: #{tpu_custom_call.1} parent=1 // pred_check
      _
    $region11: #{tpu_custom_call.1} parent=1 // pred_check_branch
      %32 = sbr.rel (0) target = $region13
    $region12: #{tpu_custom_call.1} parent=1 // pred_region
      %s34 = ssub.s32 256, 256
      %35 = vsyncadd [#allocation3], %s34
      %s36 = sshll.u32 [#allocation6], 4
      %s37 = int_to_ptr.vmem [resolvable:$true] %s36
      %42 = dma.hbm_to_vmem [thread:$0]  %s2, 256, %s37, [#allocation3], 128, 128, 8
    $region13: #{tpu_custom_call.1} parent=1 // pred_fallthru
      _
    // Predicated region
    $region14: #{tpu_custom_call.1} parent=1 // pred_check
      _
    $region15: #{tpu_custom_call.1} parent=1 // pred_check_branch
      %44 = sbr.rel (0) target = $region17
    $region16: #{tpu_custom_call.1} parent=1 // pred_region
      _
    $region17: #{tpu_custom_call.1} parent=1 // pred_fallthru
      _
    // Predicated region
    $region18: #{tpu_custom_call.1} parent=1 // pred_check
      _
    $region19: #{tpu_custom_call.1} parent=1 // pred_check_branch
      %46 = sbr.rel (0) target = $region21
    $region20: #{tpu_custom_call.1} parent=1 // pred_region
      _
    $region21: #{tpu_custom_call.1} parent=1 // pred_fallthru
      _
    // Predicated region
    $region22: #{tpu_custom_call.1} parent=1 // pred_check
      _
    $region23: #{tpu_custom_call.1} parent=1 // pred_check_branch
      %48 = sbr.rel (0) target = $region25
    $region24: #{tpu_custom_call.1} parent=1 // pred_region
      %s50 = ssub.s32 128, 128
      %51 = vsyncadd [#allocation8], %s50
      %s52 = sshll.u32 [#allocation7], 4
      %s53 = int_to_ptr.vmem [resolvable:$true] %s52
      %58 = dma.hbm_to_vmem [thread:$0]  %s5, 128, %s53, [#allocation8], 64, 64, 4
    $region25: #{tpu_custom_call.1} parent=1 // pred_fallthru
      _
    // Predicated region
    $region26: #{tpu_custom_call.1} parent=1 // pred_check
      _
    $region27: #{tpu_custom_call.1} parent=1 // pred_check_branch
      %60 = sbr.rel (0) target = $region29
    $region28: #{tpu_custom_call.1} parent=1 // pred_region
      %s62 = ssub.s32 128, 128
      %63 = vsyncadd [#allocation8], %s62
      %s65 = sshll.u32 [#allocation9], 4
      %s66 = int_to_ptr.vmem [resolvable:$true] %s65
      %68 = dma.hbm_to_vmem [thread:$0]  %s6, 128, %s66, [#allocation8]
    $region29: #{tpu_custom_call.1} parent=1 // pred_fallthru
      _
    // Predicated region
    $region30: #{tpu_custom_call.1} parent=1 // pred_check
      _
    $region31: #{tpu_custom_call.1} parent=1 // pred_check_branch
      %70 = sbr.rel (0) target = $region33
    $region32: #{tpu_custom_call.1} parent=1 // pred_region
      %s72 = ssub.s32 7168, 7168
      %73 = vsyncadd [#allocation11], %s72
      %s74 = sshll.u32 [#allocation10], 4
      %s75 = int_to_ptr.vmem [resolvable:$true] %s74
      %80 = dma.hbm_to_vmem [thread:$0]  %s7, 7168, %s75, [#allocation11], 448, 448, 28
    $region33: #{tpu_custom_call.1} parent=1 // pred_fallthru
      _
    // Predicated region
    $region34: #{tpu_custom_call.1} parent=1 // pred_check
      _
    $region35: #{tpu_custom_call.1} parent=1 // pred_check_branch
      %82 = sbr.rel (0) target = $region37
    $region36: #{tpu_custom_call.1} parent=1 // pred_region
      _
    $region37: #{tpu_custom_call.1} parent=1 // pred_fallthru
      _
    // Predicated region
    $region38: #{tpu_custom_call.1} parent=1 // pred_check
      _
    $region39: #{tpu_custom_call.1} parent=1 // pred_check_branch
      %84 = sbr.rel (0) target = $region41
    $region40: #{tpu_custom_call.1} parent=1 // pred_region
      %85 = dma.done [#allocation5], 16
    $region41: #{tpu_custom_call.1} parent=1 // pred_fallthru
      _
    // Predicated region
    $region42: #{tpu_custom_call.1} parent=1 // pred_check
      _
    $region43: #{tpu_custom_call.1} parent=1 // pred_check_branch
      %87 = sbr.rel (0) target = $region45
    $region44: #{tpu_custom_call.1} parent=1 // pred_region
      %88 = dma.done [#allocation3], 256
    $region45: #{tpu_custom_call.1} parent=1 // pred_fallthru
      _
    // Predicated region
    $region46: #{tpu_custom_call.1} parent=1 // pred_check
      _
    $region47: #{tpu_custom_call.1} parent=1 // pred_check_branch
      %90 = sbr.rel (0) target = $region49
    $region48: #{tpu_custom_call.1} parent=1 // pred_region
      %91 = dma.done [#allocation8], 128
    $region49: #{tpu_custom_call.1} parent=1 // pred_fallthru
      _
    // Predicated region
    $region50: #{tpu_custom_call.1} parent=1 // pred_check
      _
    $region51: #{tpu_custom_call.1} parent=1 // pred_check_branch
      %93 = sbr.rel (0) target = $region53
    $region52: #{tpu_custom_call.1} parent=1 // pred_region
      %94 = dma.done [#allocation8], 128
    $region53: #{tpu_custom_call.1} parent=1 // pred_fallthru
      _
    // Predicated region
    $region54: #{tpu_custom_call.1} parent=1 // pred_check
      _
    $region55: #{tpu_custom_call.1} parent=1 // pred_check_branch
      %96 = sbr.rel (0) target = $region57
    $region56: #{tpu_custom_call.1} parent=1 // pred_region
      %97 = dma.done [#allocation11], 7168
    $region57: #{tpu_custom_call.1} parent=1 // pred_fallthru
      _
    %98 = sfence
    %v100 = vld [vmem:[%s8] sm:$0xff]
    %v101 = vld [vmem:[%s8 + $0x8] sm:$0x1f]
    %v102 = vlaneseq
    %v103 = vand.u32 %v102, 127
    %vm104 = vcmp.lt.s32.totalorder %v103, 32
    %v105 = vsel %vm104, 1, 0
    %v106 = vcvt.s32.f32 %v105
    %v107 = vld [vmem:[#allocation9] sm:$0xff]
    %v108 = vld [vmem:[%s1] sm:$0xff]
    %v109 = vld [vmem:[%s1 + $0x8] sm:$0xff]
    %v110 = vld [vmem:[#allocation6] sm:$0xff]
    %v111 = vld [vmem:[#allocation6 + $0x8] sm:$0xff]
    %v112 = vmul.f32 %v108, %v106
    %v113 = vmul.f32 %v109, %v106
    %114 = vadd.xlane.f32.xlu0 %v112
    %v115 = vpop.xlane.xlu0 %114
    %116 = vadd.xlane.f32.xlu0 %v113
    %v117 = vpop.xlane.xlu0 %116
    %v118 = vmul.f32 %v115, 0.03125
    %v119 = vmul.f32 %v117, 0.03125
    %v120 = vsub.f32 %v108, %v118
    %v121 = vsub.f32 %v109, %v119
    %v122 = vmul.f32 %v120, %v106
    %v123 = vmul.f32 %v121, %v106
    %v124 = vmul.f32 %v122, %v122
    %v125 = vmul.f32 %v123, %v123
    %126 = vadd.xlane.f32.xlu0 %v124
    %v127 = vpop.xlane.xlu0 %126
    %128 = vadd.xlane.f32.xlu0 %v125
    %v129 = vpop.xlane.xlu0 %128
    %v130 = vmul.f32 %v127, 0.03125
    %v131 = vmul.f32 %v129, 0.03125
    %v132 = vadd.f32 %v130, 1e-08
    %v133 = vadd.f32 %v131, 1e-08
    %v134 = vrsqrt.pop %v132
    %v135 = vrsqrt.pop %v133
    %v136 = vmul.f32 %v122, %v134
    %v137 = vmul.f32 %v123, %v135
    %v138 = vlaneseq
    %v139 = vshrl.u32 %v138, 7
    %v140 = vsub.s32 7, %v139
    %v141 = vrot.slane %v100, %v140
    %v142 = vmul.f32 %v136, %v141
    %v143 = vmul.f32 %v137, %v141
    %v144 = vlaneseq
    %v145 = vshrl.u32 %v144, 7
    %v146 = vsub.s32 0, %v145
    %v147 = vrot.slane %v101, %v146
    %v148 = vadd.f32 %v142, %v147
    %v149 = vadd.f32 %v143, %v147
    %v150 = vpack.c.bf16 %v149, %v148
    %v151 = vld [vmem:[#allocation10] sm:$0xf]
    %v152 = vld [vmem:[#allocation10 + $0x1c] sm:$0xf]
    %v153 = vld [vmem:[#allocation10 + $0x38] sm:$0xf]
    %v154 = vld [vmem:[#allocation10 + $0x54] sm:$0xf]
    %v155 = vld [vmem:[#allocation10 + $0x70] sm:$0xf]
    %v156 = vld [vmem:[#allocation10 + $0x8c] sm:$0xf]
    %v157 = vld [vmem:[#allocation10 + $0xa8] sm:$0xf]
    %v158 = vld [vmem:[#allocation10 + $0xc4] sm:$0xf]
    %v159 = vld [vmem:[#allocation10 + $0xe0] sm:$0xf]
    %v160 = vld [vmem:[#allocation10 + $0xfc] sm:$0xf]
    %v161 = vld [vmem:[#allocation10 + $0x118] sm:$0xf]
    %v162 = vld [vmem:[#allocation10 + $0x134] sm:$0xf]
    %v163 = vld [vmem:[#allocation10 + $0x150] sm:$0xf]
    %v164 = vld [vmem:[#allocation10 + $0x16c] sm:$0xf]
    %v165 = vld [vmem:[#allocation10 + $0x188] sm:$0xf]
    %v166 = vld [vmem:[#allocation10 + $0x1a4] sm:$0xf]
    %v167 = vlaneseq
    %v168 = vshrl.u32 %v167, 7
    %v169 = vsub.s32 0, %v168
    %v170 = vrot.slane %v100, %v169
    %v187 = vunpack.c.l.b16 %v151
    %v188 = vunpack.c.l.b16 %v152
    %v189 = vunpack.c.l.b16 %v153
    %v190 = vunpack.c.l.b16 %v154
    %v191 = vunpack.c.l.b16 %v155
    %v192 = vunpack.c.l.b16 %v156
    %v193 = vunpack.c.l.b16 %v157
    %v194 = vunpack.c.l.b16 %v158
    %v195 = vunpack.c.l.b16 %v159
    %v196 = vunpack.c.l.b16 %v160
    %v197 = vunpack.c.l.b16 %v161
    %v198 = vunpack.c.l.b16 %v162
    %v199 = vunpack.c.l.b16 %v163
    %v200 = vunpack.c.l.b16 %v164
    %v201 = vunpack.c.l.b16 %v165
    %v202 = vunpack.c.l.b16 %v166
    %v203 = vpack.c.b16 %v188, %v187
    %v204 = vpack.c.b16 %v190, %v189
    %v205 = vpack.c.b16 %v192, %v191
    %v206 = vpack.c.b16 %v194, %v193
    %v207 = vpack.c.b16 %v196, %v195
    %v208 = vpack.c.b16 %v198, %v197
    %v209 = vpack.c.b16 %v200, %v199
    %v210 = vpack.c.b16 %v202, %v201
    %219 = vmatprep.subr.bf16.mxu0 0
    %220 = vmatpush1.bf16.msra.mxu0 %v203
    %221 = vmatprep.subr.bf16.mxu0 0
    %222 = vmatpush1.bf16.msra.mxu0 %v204
    %223 = vmatprep.subr.bf16.mxu0 0
    %224 = vmatpush1.bf16.msra.mxu0 %v205
    %225 = vmatprep.subr.bf16.mxu0 0
    %226 = vmatpush1.bf16.msra.mxu0 %v206
    %227 = vmatprep.subr.bf16.mxu0 0
    %228 = vmatpush1.bf16.msra.mxu0 %v207
    %229 = vmatprep.subr.bf16.mxu0 0
    %230 = vmatpush1.bf16.msra.mxu0 %v208
    %231 = vmatprep.subr.bf16.mxu0 0
    %232 = vmatpush1.bf16.msra.mxu0 %v209
    %233 = vmatprep.subr.bf16.mxu0 0
    %234 = vmatpush1.bf16.msra.mxu0 %v210
    %235 = vmatprep.subr.bf16.mxu0 0
    %236 = vmatpush1.bf16.msra.mxu0 0
    %237 = vmatprep.subr.bf16.mxu0 0
    %238 = vmatpush1.bf16.msra.mxu0 0
    %239 = vmatprep.subr.bf16.mxu0 0
    %240 = vmatpush1.bf16.msra.mxu0 0
    %241 = vmatprep.subr.bf16.mxu0 0
    %242 = vmatpush1.bf16.msra.mxu0 0
    %243 = vmatprep.subr.bf16.mxu0 0
    %244 = vmatpush1.bf16.msra.mxu0 0
    %245 = vmatprep.subr.bf16.mxu0 0
    %246 = vmatpush1.bf16.msra.mxu0 0
    %247 = vmatprep.subr.bf16.mxu0 0
    %248 = vmatpush1.bf16.msra.mxu0 0
    %249 = vmatprep.subr.bf16.mxu0 0
    %250 = vmatpush1.bf16.msra.mxu0 0
    %251 = vmatprep.mubr.bf16.mxu0 0
    %252 = vmatmul.mubr.bf16.gmra.mrb[0].mxu0 %v150
    %v253 = vpop.f32.mrb[0].mxu0
    %v254 = vadd.f32 %v170, %v253
    %v255 = vpop.f32.mrb[0].mxu0
    %v256 = vpop.f32.mrb[0].mxu0
    %v257 = vadd.f32 %v170, %v256
    %v258 = vpop.f32.mrb[0].mxu0
    %259 = vdwg.mxu0
    %v260 = vpack.c.bf16 %v109, %v108
    %v261 = vld [vmem:[#allocation10 + $0x4] sm:$0xff]
    %v262 = vld [vmem:[#allocation10 + $0x20] sm:$0xff]
    %v263 = vld [vmem:[#allocation10 + $0x3c] sm:$0xff]
    %v264 = vld [vmem:[#allocation10 + $0x58] sm:$0xff]
    %v265 = vld [vmem:[#allocation10 + $0x74] sm:$0xff]
    %v266 = vld [vmem:[#allocation10 + $0x90] sm:$0xff]
    %v267 = vld [vmem:[#allocation10 + $0xac] sm:$0xff]
    %v268 = vld [vmem:[#allocation10 + $0xc8] sm:$0xff]
    %v269 = vld [vmem:[#allocation10 + $0xe4] sm:$0xff]
    %v270 = vld [vmem:[#allocation10 + $0x100] sm:$0xff]
    %v271 = vld [vmem:[#allocation10 + $0x11c] sm:$0xff]
    %v272 = vld [vmem:[#allocation10 + $0x138] sm:$0xff]
    %v273 = vld [vmem:[#allocation10 + $0x154] sm:$0xff]
    %v274 = vld [vmem:[#allocation10 + $0x170] sm:$0xff]
    %v275 = vld [vmem:[#allocation10 + $0x18c] sm:$0xff]
    %v276 = vld [vmem:[#allocation10 + $0x1a8] sm:$0xff]
    %v293 = vunpack.c.l.b16 %v261
    %v294 = vunpack.c.h.b16 %v261
    %v295 = vunpack.c.l.b16 %v262
    %v296 = vunpack.c.h.b16 %v262
    %v297 = vunpack.c.l.b16 %v263
    %v298 = vunpack.c.h.b16 %v263
    %v299 = vunpack.c.l.b16 %v264
    %v300 = vunpack.c.h.b16 %v264
    %v301 = vunpack.c.l.b16 %v265
    %v302 = vunpack.c.h.b16 %v265
    %v303 = vunpack.c.l.b16 %v266
    %v304 = vunpack.c.h.b16 %v266
    %v305 = vunpack.c.l.b16 %v267
    %v306 = vunpack.c.h.b16 %v267
    %v307 = vunpack.c.l.b16 %v268
    %v308 = vunpack.c.h.b16 %v268
    %v309 = vunpack.c.l.b16 %v269
    %v310 = vunpack.c.h.b16 %v269
    %v311 = vunpack.c.l.b16 %v270
    %v312 = vunpack.c.h.b16 %v270
    %v313 = vunpack.c.l.b16 %v271
    %v314 = vunpack.c.h.b16 %v271
    %v315 = vunpack.c.l.b16 %v272
    %v316 = vunpack.c.h.b16 %v272
    %v317 = vunpack.c.l.b16 %v273
    %v318 = vunpack.c.h.b16 %v273
    %v319 = vunpack.c.l.b16 %v274
    %v320 = vunpack.c.h.b16 %v274
    %v321 = vunpack.c.l.b16 %v275
    %v322 = vunpack.c.h.b16 %v275
    %v323 = vunpack.c.l.b16 %v276
    %v324 = vunpack.c.h.b16 %v276
    %v325 = vpack.c.b16 %v295, %v293
    %v326 = vpack.c.b16 %v296, %v294
    %v327 = vpack.c.b16 %v299, %v297
    %v328 = vpack.c.b16 %v300, %v298
    %v329 = vpack.c.b16 %v303, %v301
    %v330 = vpack.c.b16 %v304, %v302
    %v331 = vpack.c.b16 %v307, %v305
    %v332 = vpack.c.b16 %v308, %v306
    %v333 = vpack.c.b16 %v311, %v309
    %v334 = vpack.c.b16 %v312, %v310
    %v335 = vpack.c.b16 %v315, %v313
    %v336 = vpack.c.b16 %v316, %v314
    %v337 = vpack.c.b16 %v319, %v317
    %v338 = vpack.c.b16 %v320, %v318
    %v339 = vpack.c.b16 %v323, %v321
    %v340 = vpack.c.b16 %v324, %v322
    %357 = vmatprep.subr.bf16.mxu0 %v326
    %358 = vmatpush1.bf16.msra.mxu0 %v325
    %359 = vmatprep.subr.bf16.mxu0 %v328
    %360 = vmatpush1.bf16.msra.mxu0 %v327
    %361 = vmatprep.subr.bf16.mxu0 %v330
    %362 = vmatpush1.bf16.msra.mxu0 %v329
    %363 = vmatprep.subr.bf16.mxu0 %v332
    %364 = vmatpush1.bf16.msra.mxu0 %v331
    %365 = vmatprep.subr.bf16.mxu0 %v334
    %366 = vmatpush1.bf16.msra.mxu0 %v333
    %367 = vmatprep.subr.bf16.mxu0 %v336
    %368 = vmatpush1.bf16.msra.mxu0 %v335
    %369 = vmatprep.subr.bf16.mxu0 %v338
    %370 = vmatpush1.bf16.msra.mxu0 %v337
    %371 = vmatprep.subr.bf16.mxu0 %v340
    %372 = vmatpush1.bf16.msra.mxu0 %v339
    %373 = vmatprep.subr.bf16.mxu0 0
    %374 = vmatpush1.bf16.msra.mxu0 0
    %375 = vmatprep.subr.bf16.mxu0 0
    %376 = vmatpush1.bf16.msra.mxu0 0
    %377 = vmatprep.subr.bf16.mxu0 0
    %378 = vmatpush1.bf16.msra.mxu0 0
    %379 = vmatprep.subr.bf16.mxu0 0
    %380 = vmatpush1.bf16.msra.mxu0 0
    %381 = vmatprep.subr.bf16.mxu0 0
    %382 = vmatpush1.bf16.msra.mxu0 0
    %383 = vmatprep.subr.bf16.mxu0 0
    %384 = vmatpush1.bf16.msra.mxu0 0
    %385 = vmatprep.subr.bf16.mxu0 0
    %386 = vmatpush1.bf16.msra.mxu0 0
    %387 = vmatprep.subr.bf16.mxu0 0
    %388 = vmatpush1.bf16.msra.mxu0 0
    %389 = vmatprep.mubr.bf16.mxu0 0
    %390 = vmatmul.mubr.bf16.gmra.mrb[0].mxu0 %v260
    %v391 = vpop.f32.mrb[0].mxu0
    %v392 = vadd.f32 0.0, %v391
    %v393 = vpop.f32.mrb[0].mxu0
    %v394 = vadd.f32 0.0, %v393
    %v395 = vpop.f32.mrb[0].mxu0
    %v396 = vadd.f32 0.0, %v395
    %v397 = vpop.f32.mrb[0].mxu0
    %v398 = vadd.f32 0.0, %v397
    %399 = vdwg.mxu0
    %v400 = vlaneseq
    %v401 = vshrl.u32 %v400, 7
    %v402 = vsub.s32 1, %v401
    %v403 = vrot.slane %v100, %v402
    %v404 = vadd.f32 %v392, %v403
    %v405 = vadd.f32 %v396, %v403
    %v406 = vlaneseq
    %v407 = vshrl.u32 %v406, 7
    %v408 = vsub.s32 2, %v407
    %v409 = vrot.slane %v100, %v408
    %v410 = vadd.f32 %v394, %v409
    %v411 = vadd.f32 %v398, %v409
    %v412 = vmul.f32 %v110, %v106
    %v413 = vmul.f32 %v111, %v106
    %414 = vadd.xlane.f32.xlu0 %v412
    %v415 = vpop.xlane.xlu0 %414
    %416 = vadd.xlane.f32.xlu0 %v413
    %v417 = vpop.xlane.xlu0 %416
    %v418 = vmul.f32 %v415, 0.03125
    %v419 = vmul.f32 %v417, 0.03125
    %v420 = vsub.f32 %v110, %v418
    %v421 = vsub.f32 %v111, %v419
    %v422 = vmul.f32 %v420, %v106
    %v423 = vmul.f32 %v421, %v106
    %v424 = vmul.f32 %v422, %v422
    %v425 = vmul.f32 %v423, %v423
    %426 = vadd.xlane.f32.xlu0 %v424
    %v427 = vpop.xlane.xlu0 %426
    %428 = vadd.xlane.f32.xlu0 %v425
    %v429 = vpop.xlane.xlu0 %428
    %v430 = vmul.f32 %v427, 0.03125
    %v431 = vmul.f32 %v429, 0.03125
    %v432 = vadd.f32 %v430, 1e-08
    %v433 = vadd.f32 %v431, 1e-08
    %v434 = vrsqrt.pop %v432
    %v435 = vrsqrt.pop %v433
    %v436 = vmul.f32 %v422, %v434
    %v437 = vmul.f32 %v423, %v435
    %v438 = vlaneseq
    %v439 = vshrl.u32 %v438, 7
    %v440 = vsub.s32 1, %v439
    %v441 = vrot.slane %v101, %v440
    %v442 = vmul.f32 %v436, %v441
    %v443 = vmul.f32 %v437, %v441
    %v444 = vlaneseq
    %v445 = vshrl.u32 %v444, 7
    %v446 = vsub.s32 2, %v445
    %v447 = vrot.slane %v101, %v446
    %v448 = vadd.f32 %v442, %v447
    %v449 = vadd.f32 %v443, %v447
    %v450 = vpack.c.bf16 %v449, %v448
    %v451 = vld [vmem:[#allocation10 + $0xc] sm:$0xf]
    %v452 = vld [vmem:[#allocation10 + $0x28] sm:$0xf]
    %v453 = vld [vmem:[#allocation10 + $0x44] sm:$0xf]
    %v454 = vld [vmem:[#allocation10 + $0x60] sm:$0xf]
    %v455 = vld [vmem:[#allocation10 + $0x7c] sm:$0xf]
    %v456 = vld [vmem:[#allocation10 + $0x98] sm:$0xf]
    %v457 = vld [vmem:[#allocation10 + $0xb4] sm:$0xf]
    %v458 = vld [vmem:[#allocation10 + $0xd0] sm:$0xf]
    %v459 = vld [vmem:[#allocation10 + $0xec] sm:$0xf]
    %v460 = vld [vmem:[#allocation10 + $0x108] sm:$0xf]
    %v461 = vld [vmem:[#allocation10 + $0x124] sm:$0xf]
    %v462 = vld [vmem:[#allocation10 + $0x140] sm:$0xf]
    %v463 = vld [vmem:[#allocation10 + $0x15c] sm:$0xf]
    %v464 = vld [vmem:[#allocation10 + $0x178] sm:$0xf]
    %v465 = vld [vmem:[#allocation10 + $0x194] sm:$0xf]
    %v466 = vld [vmem:[#allocation10 + $0x1b0] sm:$0xf]
    %v467 = vlaneseq
    %v468 = vshrl.u32 %v467, 7
    %v469 = vsub.s32 3, %v468
    %v470 = vrot.slane %v100, %v469
    %v487 = vunpack.c.l.b16 %v451
    %v488 = vunpack.c.l.b16 %v452
    %v489 = vunpack.c.l.b16 %v453
    %v490 = vunpack.c.l.b16 %v454
    %v491 = vunpack.c.l.b16 %v455
    %v492 = vunpack.c.l.b16 %v456
    %v493 = vunpack.c.l.b16 %v457
    %v494 = vunpack.c.l.b16 %v458
    %v495 = vunpack.c.l.b16 %v459
    %v496 = vunpack.c.l.b16 %v460
    %v497 = vunpack.c.l.b16 %v461
    %v498 = vunpack.c.l.b16 %v462
    %v499 = vunpack.c.l.b16 %v463
    %v500 = vunpack.c.l.b16 %v464
    %v501 = vunpack.c.l.b16 %v465
    %v502 = vunpack.c.l.b16 %v466
    %v503 = vpack.c.b16 %v488, %v487
    %v504 = vpack.c.b16 %v490, %v489
    %v505 = vpack.c.b16 %v492, %v491
    %v506 = vpack.c.b16 %v494, %v493
    %v507 = vpack.c.b16 %v496, %v495
    %v508 = vpack.c.b16 %v498, %v497
    %v509 = vpack.c.b16 %v500, %v499
    %v510 = vpack.c.b16 %v502, %v501
    %519 = vmatprep.subr.bf16.mxu0 0
    %520 = vmatpush1.bf16.msra.mxu0 %v503
    %521 = vmatprep.subr.bf16.mxu0 0
    %522 = vmatpush1.bf16.msra.mxu0 %v504
    %523 = vmatprep.subr.bf16.mxu0 0
    %524 = vmatpush1.bf16.msra.mxu0 %v505
    %525 = vmatprep.subr.bf16.mxu0 0
    %526 = vmatpush1.bf16.msra.mxu0 %v506
    %527 = vmatprep.subr.bf16.mxu0 0
    %528 = vmatpush1.bf16.msra.mxu0 %v507
    %529 = vmatprep.subr.bf16.mxu0 0
    %530 = vmatpush1.bf16.msra.mxu0 %v508
    %531 = vmatprep.subr.bf16.mxu0 0
    %532 = vmatpush1.bf16.msra.mxu0 %v509
    %533 = vmatprep.subr.bf16.mxu0 0
    %534 = vmatpush1.bf16.msra.mxu0 %v510
    %535 = vmatprep.subr.bf16.mxu0 0
    %536 = vmatpush1.bf16.msra.mxu0 0
    %537 = vmatprep.subr.bf16.mxu0 0
    %538 = vmatpush1.bf16.msra.mxu0 0
    %539 = vmatprep.subr.bf16.mxu0 0
    %540 = vmatpush1.bf16.msra.mxu0 0
    %541 = vmatprep.subr.bf16.mxu0 0
    %542 = vmatpush1.bf16.msra.mxu0 0
    %543 = vmatprep.subr.bf16.mxu0 0
    %544 = vmatpush1.bf16.msra.mxu0 0
    %545 = vmatprep.subr.bf16.mxu0 0
    %546 = vmatpush1.bf16.msra.mxu0 0
    %547 = vmatprep.subr.bf16.mxu0 0
    %548 = vmatpush1.bf16.msra.mxu0 0
    %549 = vmatprep.subr.bf16.mxu0 0
    %550 = vmatpush1.bf16.msra.mxu0 0
    %551 = vmatprep.mubr.bf16.mxu0 0
    %552 = vmatmul.mubr.bf16.gmra.mrb[0].mxu0 %v450
    %v553 = vpop.f32.mrb[0].mxu0
    %v554 = vadd.f32 %v470, %v553
    %v555 = vpop.f32.mrb[0].mxu0
    %v556 = vpop.f32.mrb[0].mxu0
    %v557 = vadd.f32 %v470, %v556
    %v558 = vpop.f32.mrb[0].mxu0
    %559 = vdwg.mxu0
    %v560 = vpack.c.bf16 %v111, %v110
    %v561 = vld [vmem:[#allocation10 + $0x10] sm:$0xff]
    %v562 = vld [vmem:[#allocation10 + $0x2c] sm:$0xff]
    %v563 = vld [vmem:[#allocation10 + $0x48] sm:$0xff]
    %v564 = vld [vmem:[#allocation10 + $0x64] sm:$0xff]
    %v565 = vld [vmem:[#allocation10 + $0x80] sm:$0xff]
    %v566 = vld [vmem:[#allocation10 + $0x9c] sm:$0xff]
    %v567 = vld [vmem:[#allocation10 + $0xb8] sm:$0xff]
    %v568 = vld [vmem:[#allocation10 + $0xd4] sm:$0xff]
    %v569 = vld [vmem:[#allocation10 + $0xf0] sm:$0xff]
    %v570 = vld [vmem:[#allocation10 + $0x10c] sm:$0xff]
    %v571 = vld [vmem:[#allocation10 + $0x128] sm:$0xff]
    %v572 = vld [vmem:[#allocation10 + $0x144] sm:$0xff]
    %v573 = vld [vmem:[#allocation10 + $0x160] sm:$0xff]
    %v574 = vld [vmem:[#allocation10 + $0x17c] sm:$0xff]
    %v575 = vld [vmem:[#allocation10 + $0x198] sm:$0xff]
    %v576 = vld [vmem:[#allocation10 + $0x1b4] sm:$0xff]
    %v593 = vunpack.c.l.b16 %v561
    %v594 = vunpack.c.h.b16 %v561
    %v595 = vunpack.c.l.b16 %v562
    %v596 = vunpack.c.h.b16 %v562
    %v597 = vunpack.c.l.b16 %v563
    %v598 = vunpack.c.h.b16 %v563
    %v599 = vunpack.c.l.b16 %v564
    %v600 = vunpack.c.h.b16 %v564
    %v601 = vunpack.c.l.b16 %v565
    %v602 = vunpack.c.h.b16 %v565
    %v603 = vunpack.c.l.b16 %v566
    %v604 = vunpack.c.h.b16 %v566
    %v605 = vunpack.c.l.b16 %v567
    %v606 = vunpack.c.h.b16 %v567
    %v607 = vunpack.c.l.b16 %v568
    %v608 = vunpack.c.h.b16 %v568
    %v609 = vunpack.c.l.b16 %v569
    %v610 = vunpack.c.h.b16 %v569
    %v611 = vunpack.c.l.b16 %v570
    %v612 = vunpack.c.h.b16 %v570
    %v613 = vunpack.c.l.b16 %v571
    %v614 = vunpack.c.h.b16 %v571
    %v615 = vunpack.c.l.b16 %v572
    %v616 = vunpack.c.h.b16 %v572
    %v617 = vunpack.c.l.b16 %v573
    %v618 = vunpack.c.h.b16 %v573
    %v619 = vunpack.c.l.b16 %v574
    %v620 = vunpack.c.h.b16 %v574
    %v621 = vunpack.c.l.b16 %v575
    %v622 = vunpack.c.h.b16 %v575
    %v623 = vunpack.c.l.b16 %v576
    %v624 = vunpack.c.h.b16 %v576
    %v625 = vpack.c.b16 %v595, %v593
    %v626 = vpack.c.b16 %v596, %v594
    %v627 = vpack.c.b16 %v599, %v597
    %v628 = vpack.c.b16 %v600, %v598
    %v629 = vpack.c.b16 %v603, %v601
    %v630 = vpack.c.b16 %v604, %v602
    %v631 = vpack.c.b16 %v607, %v605
    %v632 = vpack.c.b16 %v608, %v606
    %v633 = vpack.c.b16 %v611, %v609
    %v634 = vpack.c.b16 %v612, %v610
    %v635 = vpack.c.b16 %v615, %v613
    %v636 = vpack.c.b16 %v616, %v614
    %v637 = vpack.c.b16 %v619, %v617
    %v638 = vpack.c.b16 %v620, %v618
    %v639 = vpack.c.b16 %v623, %v621
    %v640 = vpack.c.b16 %v624, %v622
    %657 = vmatprep.subr.bf16.mxu0 %v626
    %658 = vmatpush1.bf16.msra.mxu0 %v625
    %659 = vmatprep.subr.bf16.mxu0 %v628
    %660 = vmatpush1.bf16.msra.mxu0 %v627
    %661 = vmatprep.subr.bf16.mxu0 %v630
    %662 = vmatpush1.bf16.msra.mxu0 %v629
    %663 = vmatprep.subr.bf16.mxu0 %v632
    %664 = vmatpush1.bf16.msra.mxu0 %v631
    %665 = vmatprep.subr.bf16.mxu0 %v634
    %666 = vmatpush1.bf16.msra.mxu0 %v633
    %667 = vmatprep.subr.bf16.mxu0 %v636
    %668 = vmatpush1.bf16.msra.mxu0 %v635
    %669 = vmatprep.subr.bf16.mxu0 %v638
    %670 = vmatpush1.bf16.msra.mxu0 %v637
    %671 = vmatprep.subr.bf16.mxu0 %v640
    %672 = vmatpush1.bf16.msra.mxu0 %v639
    %673 = vmatprep.subr.bf16.mxu0 0
    %674 = vmatpush1.bf16.msra.mxu0 0
    %675 = vmatprep.subr.bf16.mxu0 0
    %676 = vmatpush1.bf16.msra.mxu0 0
    %677 = vmatprep.subr.bf16.mxu0 0
    %678 = vmatpush1.bf16.msra.mxu0 0
    %679 = vmatprep.subr.bf16.mxu0 0
    %680 = vmatpush1.bf16.msra.mxu0 0
    %681 = vmatprep.subr.bf16.mxu0 0
    %682 = vmatpush1.bf16.msra.mxu0 0
    %683 = vmatprep.subr.bf16.mxu0 0
    %684 = vmatpush1.bf16.msra.mxu0 0
    %685 = vmatprep.subr.bf16.mxu0 0
    %686 = vmatpush1.bf16.msra.mxu0 0
    %687 = vmatprep.subr.bf16.mxu0 0
    %688 = vmatpush1.bf16.msra.mxu0 0
    %689 = vmatprep.mubr.bf16.mxu0 0
    %690 = vmatmul.mubr.bf16.gmra.mrb[0].mxu0 %v560
    %v691 = vpop.f32.mrb[0].mxu0
    %v692 = vadd.f32 0.0, %v691
    %v693 = vpop.f32.mrb[0].mxu0
    %v694 = vadd.f32 0.0, %v693
    %v695 = vpop.f32.mrb[0].mxu0
    %v696 = vadd.f32 0.0, %v695
    %v697 = vpop.f32.mrb[0].mxu0
    %v698 = vadd.f32 0.0, %v697
    %699 = vdwg.mxu0
    %v700 = vlaneseq
    %v701 = vshrl.u32 %v700, 7
    %v702 = vsub.s32 4, %v701
    %v703 = vrot.slane %v100, %v702
    %v704 = vadd.f32 %v692, %v703
    %v705 = vadd.f32 %v696, %v703
    %v706 = vlaneseq
    %v707 = vshrl.u32 %v706, 7
    %v708 = vsub.s32 5, %v707
    %v709 = vrot.slane %v100, %v708
    %v710 = vadd.f32 %v694, %v709
    %v711 = vadd.f32 %v698, %v709
    %v712 = vld [vmem:[%s4] sm:$0xff]
    %v713 = vld [vmem:[#allocation7] sm:$0xf]
    %714 = vset.pattern.permute.xlu0 0
    %715 = vperm.xlu0 %714, %v712
    %v716 = vpop.permute.xlu0 %715
    %v717 = vlaneseq
    %v718 = vshrl.u32 %v717, 7
    %v719 = vsub.s32 0, %v718
    %v720 = vrot.slane %v713, %v719
    %vm721 = vcmp.ne.s32.totalorder %v716, %v720
    %v722 = vsel %vm721, 1, 0
    %723 = vset.pattern.permute.xlu0 1
    %724 = vperm.xlu0 %723, %v712
    %v725 = vpop.permute.xlu0 %724
    %v726 = vlaneseq
    %v727 = vshrl.u32 %v726, 7
    %v728 = vsub.s32 1, %v727
    %v729 = vrot.slane %v713, %v728
    %vm730 = vcmp.ne.s32.totalorder %v725, %v729
    %v731 = vsel %vm730, 1, 0
    %v732 = vadd.s32 %v722, %v731
    %733 = vset.pattern.permute.xlu0 2
    %734 = vperm.xlu0 %733, %v712
    %v735 = vpop.permute.xlu0 %734
    %v736 = vlaneseq
    %v737 = vshrl.u32 %v736, 7
    %v738 = vsub.s32 2, %v737
    %v739 = vrot.slane %v713, %v738
    %vm740 = vcmp.ne.s32.totalorder %v735, %v739
    %v741 = vsel %vm740, 1, 0
    %v742 = vadd.s32 %v732, %v741
    %743 = vset.pattern.permute.xlu0 3
    %744 = vperm.xlu0 %743, %v712
    %v745 = vpop.permute.xlu0 %744
    %v746 = vlaneseq
    %v747 = vshrl.u32 %v746, 7
    %v748 = vsub.s32 3, %v747
    %v749 = vrot.slane %v713, %v748
    %vm750 = vcmp.ne.s32.totalorder %v745, %v749
    %v751 = vsel %vm750, 1, 0
    %v752 = vadd.s32 %v742, %v751
    %v753 = vmul.u32 %v752, 4
    %s754 = smul.u32 0, 10
    %vm755 = vcmp.ge.s32.totalorder %v753, 0
    %vm756 = vcmp.lt.s32.totalorder %v753, 4
    %vm757 = vmand %vm755, %vm756
    %s758 = sld [smem:[#allocation2 + %s754]]
    %v759 = vstv %s758
    %v760 = vsel %vm757, %v759, 0.0
    %vm761 = vcmp.ge.s32.totalorder %v753, 4
    %vm762 = vcmp.lt.s32.totalorder %v753, 8
    %vm763 = vmand %vm761, %vm762
    %s764 = sadd.s32 %s754, 1
    %s765 = sld [smem:[#allocation2 + %s764]]
    %v766 = vstv %s765
    %v767 = vsel %vm763, %v766, %v760
    %vm768 = vcmp.ge.s32.totalorder %v753, 8
    %vm769 = vcmp.lt.s32.totalorder %v753, 12
    %vm770 = vmand %vm768, %vm769
    %s771 = sadd.s32 %s754, 2
    %s772 = sld [smem:[#allocation2 + %s771]]
    %v773 = vstv %s772
    %v774 = vsel %vm770, %v773, %v767
    %vm775 = vcmp.ge.s32.totalorder %v753, 12
    %vm776 = vcmp.lt.s32.totalorder %v753, 16
    %vm777 = vmand %vm775, %vm776
    %s778 = sadd.s32 %s754, 3
    %s779 = sld [smem:[#allocation2 + %s778]]
    %v780 = vstv %s779
    %v781 = vsel %vm777, %v780, %v774
    %vm782 = vcmp.ge.s32.totalorder %v753, 16
    %vm783 = vcmp.lt.s32.totalorder %v753, 20
    %vm784 = vmand %vm782, %vm783
    %s785 = sadd.s32 %s754, 4
    %s786 = sld [smem:[#allocation2 + %s785]]
    %v787 = vstv %s786
    %v788 = vsel %vm784, %v787, %v781
    %v789 = vmul.f32 %v788, 0.17677669
    %v790 = vadd.f32 %v789, %v107
    %vm791 = vcmask 64512
    %v792 = vsel %vm791, %v790, -inf
    %793 = vmax.xlane.f32.xlu0 %v792
    %v794 = vpop.xlane.xlu0 %793
    %v795 = vsub.f32 %v790, %v794
    %v796 = vmul.f32 %v795, 1.442695
    %v797 = vpow.pop %v796
    %v798 = vsel %vm791, %v797, 0.0
    %799 = vadd.xlane.f32.xlu0 %v798
    %v800 = vpop.xlane.xlu0 %799
    %v801 = vrcp.pop %v800
    %v802 = vmul.f32 %v797, %v801
    %v803 = vpack.c.bf16 %v254, %v254
    %v804 = vpack.c.bf16 %v404, %v404
    %805 = vmatprep.subr.bf16.mxu0 0
    %806 = vmatpush1.bf16.xpose.msra.mxu0 %v804
    %807 = vmatprep.subr.bf16.mxu0 0
    %808 = vmatpush1.bf16.xpose.msra.mxu0 0
    %809 = vmatprep.subr.bf16.mxu0 0
    %810 = vmatpush1.bf16.xpose.msra.mxu0 0
    %811 = vmatprep.subr.bf16.mxu0 0
    %812 = vmatpush1.bf16.xpose.msra.mxu0 0
    %813 = vmatprep.subr.bf16.mxu0 0
    %814 = vmatpush1.bf16.xpose.msra.mxu0 0
    %815 = vmatprep.subr.bf16.mxu0 0
    %816 = vmatpush1.bf16.xpose.msra.mxu0 0
    %817 = vmatprep.subr.bf16.mxu0 0
    %818 = vmatpush1.bf16.xpose.msra.mxu0 0
    %819 = vmatprep.subr.bf16.mxu0 0
    %820 = vmatpush1.bf16.xpose.msra.mxu0 0
    %821 = vmatprep.subr.bf16.mxu0 0
    %822 = vmatpush1.bf16.xpose.msra.mxu0 0
    %823 = vmatprep.subr.bf16.mxu0 0
    %824 = vmatpush1.bf16.xpose.msra.mxu0 0
    %825 = vmatprep.subr.bf16.mxu0 0
    %826 = vmatpush1.bf16.xpose.msra.mxu0 0
    %827 = vmatprep.subr.bf16.mxu0 0
    %828 = vmatpush1.bf16.xpose.msra.mxu0 0
    %829 = vmatprep.subr.bf16.mxu0 0
    %830 = vmatpush1.bf16.xpose.msra.mxu0 0
    %831 = vmatprep.subr.bf16.mxu0 0
    %832 = vmatpush1.bf16.xpose.msra.mxu0 0
    %833 = vmatprep.subr.bf16.mxu0 0
    %834 = vmatpush1.bf16.xpose.msra.mxu0 0
    %835 = vmatprep.subr.bf16.mxu0 0
    %836 = vmatpush1.bf16.xpose.msra.mxu0 0
    %837 = vmatprep.mubr.bf16.mxu0 0
    %838 = vmatmul.mubr.bf16.gmra.mrb[0].mxu0 %v803
    %v839 = vpop.f32.mrb[0].mxu0
    %v840 = vadd.f32 %v107, %v839
    %v841 = vpop.f32.mrb[0].mxu0
    %v842 = vpop.f32.mrb[0].mxu0
    %v843 = vpop.f32.mrb[0].mxu0
    %844 = vdwg.mxu0
    %v845 = vsel %vm791, %v840, -inf
    %846 = vmax.xlane.f32.xlu0 %v845
    %v847 = vpop.xlane.xlu0 %846
    %v848 = vsub.f32 %v840, %v847
    %v849 = vmul.f32 %v848, 1.442695
    %v850 = vpow.pop %v849
    %v851 = vsel %vm791, %v850, 0.0
    %852 = vadd.xlane.f32.xlu0 %v851
    %v853 = vpop.xlane.xlu0 %852
    %v854 = vrcp.pop %v853
    %v855 = vmul.f32 %v850, %v854
    %v856 = vadd.f32 %v855, %v802
    %v857 = vpack.c.bf16 %v856, %v856
    %v858 = vpack.c.bf16 %v410, %v410
    %v859 = vpack.c.bf16 %v554, %v554
    %v860 = vpack.c.bf16 %v704, %v704
    %861 = vmatprep.subr.bf16.mxu0 0
    %862 = vmatpush1.bf16.xpose.msra.mxu0 %v860
    %863 = vmatprep.subr.bf16.mxu0 0
    %864 = vmatpush1.bf16.xpose.msra.mxu0 0
    %865 = vmatprep.subr.bf16.mxu0 0
    %866 = vmatpush1.bf16.xpose.msra.mxu0 0
    %867 = vmatprep.subr.bf16.mxu0 0
    %868 = vmatpush1.bf16.xpose.msra.mxu0 0
    %869 = vmatprep.subr.bf16.mxu0 0
    %870 = vmatpush1.bf16.xpose.msra.mxu0 0
    %871 = vmatprep.subr.bf16.mxu0 0
    %872 = vmatpush1.bf16.xpose.msra.mxu0 0
    %873 = vmatprep.subr.bf16.mxu0 0
    %874 = vmatpush1.bf16.xpose.msra.mxu0 0
    %875 = vmatprep.subr.bf16.mxu0 0
    %876 = vmatpush1.bf16.xpose.msra.mxu0 0
    %877 = vmatprep.subr.bf16.mxu0 0
    %878 = vmatpush1.bf16.xpose.msra.mxu0 0
    %879 = vmatprep.subr.bf16.mxu0 0
    %880 = vmatpush1.bf16.xpose.msra.mxu0 0
    %881 = vmatprep.subr.bf16.mxu0 0
    %882 = vmatpush1.bf16.xpose.msra.mxu0 0
    %883 = vmatprep.subr.bf16.mxu0 0
    %884 = vmatpush1.bf16.xpose.msra.mxu0 0
    %885 = vmatprep.subr.bf16.mxu0 0
    %886 = vmatpush1.bf16.xpose.msra.mxu0 0
    %887 = vmatprep.subr.bf16.mxu0 0
    %888 = vmatpush1.bf16.xpose.msra.mxu0 0
    %889 = vmatprep.subr.bf16.mxu0 0
    %890 = vmatpush1.bf16.xpose.msra.mxu0 0
    %891 = vmatprep.subr.bf16.mxu0 0
    %892 = vmatpush1.bf16.xpose.msra.mxu0 0
    %893 = vmatprep.mubr.bf16.mxu0 0
    %894 = vmatmul.mubr.bf16.gmra.mrb[0].mxu0 %v859
    %v895 = vpop.f32.mrb[0].mxu0
    %v896 = vadd.f32 %v107, %v895
    %v897 = vpop.f32.mrb[0].mxu0
    %v898 = vpop.f32.mrb[0].mxu0
    %v899 = vpop.f32.mrb[0].mxu0
    %900 = vdwg.mxu0
    %v901 = vsel %vm791, %v896, -inf
    %902 = vmax.xlane.f32.xlu0 %v901
    %v903 = vpop.xlane.xlu0 %902
    %v904 = vsub.f32 %v896, %v903
    %v905 = vmul.f32 %v904, 1.442695
    %v906 = vpow.pop %v905
    %v907 = vsel %vm791, %v906, 0.0
    %908 = vadd.xlane.f32.xlu0 %v907
    %v909 = vpop.xlane.xlu0 %908
    %v910 = vrcp.pop %v909
    %v911 = vmul.f32 %v906, %v910
    %v912 = vadd.f32 %v911, %v802
    %v913 = vpack.c.bf16 %v912, %v912
    %v914 = vpack.c.bf16 %v710, %v710
    %v916 = vsel %vm791, %v913, 0
    %vm918 = vcmask 1043456
    %v920 = vsel %vm918, %v914, 0
    %922 = vmatprep.subr.bf16.mxu0 0
    %923 = vmatpush1.bf16.msra.mxu0 %v920
    %924 = vmatprep.subr.bf16.mxu0 0
    %925 = vmatpush1.bf16.msra.mxu0 0
    %926 = vmatprep.subr.bf16.mxu0 0
    %927 = vmatpush1.bf16.msra.mxu0 0
    %928 = vmatprep.subr.bf16.mxu0 0
    %929 = vmatpush1.bf16.msra.mxu0 0
    %930 = vmatprep.subr.bf16.mxu0 0
    %931 = vmatpush1.bf16.msra.mxu0 0
    %932 = vmatprep.subr.bf16.mxu0 0
    %933 = vmatpush1.bf16.msra.mxu0 0
    %934 = vmatprep.subr.bf16.mxu0 0
    %935 = vmatpush1.bf16.msra.mxu0 0
    %936 = vmatprep.subr.bf16.mxu0 0
    %937 = vmatpush1.bf16.msra.mxu0 0
    %938 = vmatprep.subr.bf16.mxu0 0
    %939 = vmatpush1.bf16.msra.mxu0 0
    %940 = vmatprep.subr.bf16.mxu0 0
    %941 = vmatpush1.bf16.msra.mxu0 0
    %942 = vmatprep.subr.bf16.mxu0 0
    %943 = vmatpush1.bf16.msra.mxu0 0
    %944 = vmatprep.subr.bf16.mxu0 0
    %945 = vmatpush1.bf16.msra.mxu0 0
    %946 = vmatprep.subr.bf16.mxu0 0
    %947 = vmatpush1.bf16.msra.mxu0 0
    %948 = vmatprep.subr.bf16.mxu0 0
    %949 = vmatpush1.bf16.msra.mxu0 0
    %950 = vmatprep.subr.bf16.mxu0 0
    %951 = vmatpush1.bf16.msra.mxu0 0
    %952 = vmatprep.subr.bf16.mxu0 0
    %953 = vmatpush1.bf16.msra.mxu0 0
    %954 = vmatprep.mubr.bf16.mxu0 0
    %955 = vmatmul.mubr.bf16.gmra.mrb[0].mxu0 %v916
    %v956 = vpop.f32.mrb[0].mxu0
    %v957 = vadd.f32 0.0, %v956
    %v958 = vpop.f32.mrb[0].mxu0
    %v959 = vpop.f32.mrb[0].mxu0
    %v960 = vpop.f32.mrb[0].mxu0
    %961 = vdwg.mxu0
    %v963 = vsel %vm791, %v857, 0
    %v966 = vsel %vm918, %v858, 0
    %968 = vmatprep.subr.bf16.mxu0 0
    %969 = vmatpush1.bf16.msra.mxu0 %v966
    %970 = vmatprep.subr.bf16.mxu0 0
    %971 = vmatpush1.bf16.msra.mxu0 0
    %972 = vmatprep.subr.bf16.mxu0 0
    %973 = vmatpush1.bf16.msra.mxu0 0
    %974 = vmatprep.subr.bf16.mxu0 0
    %975 = vmatpush1.bf16.msra.mxu0 0
    %976 = vmatprep.subr.bf16.mxu0 0
    %977 = vmatpush1.bf16.msra.mxu0 0
    %978 = vmatprep.subr.bf16.mxu0 0
    %979 = vmatpush1.bf16.msra.mxu0 0
    %980 = vmatprep.subr.bf16.mxu0 0
    %981 = vmatpush1.bf16.msra.mxu0 0
    %982 = vmatprep.subr.bf16.mxu0 0
    %983 = vmatpush1.bf16.msra.mxu0 0
    %984 = vmatprep.subr.bf16.mxu0 0
    %985 = vmatpush1.bf16.msra.mxu0 0
    %986 = vmatprep.subr.bf16.mxu0 0
    %987 = vmatpush1.bf16.msra.mxu0 0
    %988 = vmatprep.subr.bf16.mxu0 0
    %989 = vmatpush1.bf16.msra.mxu0 0
    %990 = vmatprep.subr.bf16.mxu0 0
    %991 = vmatpush1.bf16.msra.mxu0 0
    %992 = vmatprep.subr.bf16.mxu0 0
    %993 = vmatpush1.bf16.msra.mxu0 0
    %994 = vmatprep.subr.bf16.mxu0 0
    %995 = vmatpush1.bf16.msra.mxu0 0
    %996 = vmatprep.subr.bf16.mxu0 0
    %997 = vmatpush1.bf16.msra.mxu0 0
    %998 = vmatprep.subr.bf16.mxu0 0
    %999 = vmatpush1.bf16.msra.mxu0 0
    %1000 = vmatprep.mubr.bf16.mxu0 0
    %1001 = vmatmul.mubr.bf16.gmra.mrb[0].mxu0 %v963
    %v1002 = vpop.f32.mrb[0].mxu0
    %v1003 = vadd.f32 %v957, %v1002
    %v1004 = vpop.f32.mrb[0].mxu0
    %v1005 = vpop.f32.mrb[0].mxu0
    %v1006 = vpop.f32.mrb[0].mxu0
    %1007 = vdwg.mxu0
    %s1008 = smul.u32 0, 2
    %s1009 = sadd.s32 %s1008, 1
    %s1010 = scalar_lea.vmem %s4, 8
    %v1011 = vld [vmem:[%s1010] sm:$0xff]
    %s1012 = scalar_lea.vmem [#allocation7], 4
    %v1013 = vld [vmem:[%s1012] sm:$0xf]
    %1014 = vset.pattern.permute.xlu0 0
    %1015 = vperm.xlu0 %1014, %v1011
    %v1016 = vpop.permute.xlu0 %1015
    %v1017 = vlaneseq
    %v1018 = vshrl.u32 %v1017, 7
    %v1019 = vsub.s32 0, %v1018
    %v1020 = vrot.slane %v1013, %v1019
    %vm1021 = vcmp.ne.s32.totalorder %v1016, %v1020
    %v1022 = vsel %vm1021, 1, 0
    %1023 = vset.pattern.permute.xlu0 1
    %1024 = vperm.xlu0 %1023, %v1011
    %v1025 = vpop.permute.xlu0 %1024
    %v1026 = vlaneseq
    %v1027 = vshrl.u32 %v1026, 7
    %v1028 = vsub.s32 1, %v1027
    %v1029 = vrot.slane %v1013, %v1028
    %vm1030 = vcmp.ne.s32.totalorder %v1025, %v1029
    %v1031 = vsel %vm1030, 1, 0
    %v1032 = vadd.s32 %v1022, %v1031
    %1033 = vset.pattern.permute.xlu0 2
    %1034 = vperm.xlu0 %1033, %v1011
    %v1035 = vpop.permute.xlu0 %1034
    %v1036 = vlaneseq
    %v1037 = vshrl.u32 %v1036, 7
    %v1038 = vsub.s32 2, %v1037
    %v1039 = vrot.slane %v1013, %v1038
    %vm1040 = vcmp.ne.s32.totalorder %v1035, %v1039
    %v1041 = vsel %vm1040, 1, 0
    %v1042 = vadd.s32 %v1032, %v1041
    %1043 = vset.pattern.permute.xlu0 3
    %1044 = vperm.xlu0 %1043, %v1011
    %v1045 = vpop.permute.xlu0 %1044
    %v1046 = vlaneseq
    %v1047 = vshrl.u32 %v1046, 7
    %v1048 = vsub.s32 3, %v1047
    %v1049 = vrot.slane %v1013, %v1048
    %vm1050 = vcmp.ne.s32.totalorder %v1045, %v1049
    %v1051 = vsel %vm1050, 1, 0
    %v1052 = vadd.s32 %v1042, %v1051
    %v1053 = vmul.u32 %v1052, 4
    %s1054 = smul.u32 %s1009, 5
    %vm1055 = vcmp.ge.s32.totalorder %v1053, 0
    %vm1056 = vcmp.lt.s32.totalorder %v1053, 4
    %vm1057 = vmand %vm1055, %vm1056
    %s1058 = sld [smem:[#allocation2 + %s1054]]
    %v1059 = vstv %s1058
    %v1060 = vsel %vm1057, %v1059, 0.0
    %vm1061 = vcmp.ge.s32.totalorder %v1053, 4
    %vm1062 = vcmp.lt.s32.totalorder %v1053, 8
    %vm1063 = vmand %vm1061, %vm1062
    %s1064 = sadd.s32 %s1054, 1
    %s1065 = sld [smem:[#allocation2 + %s1064]]
    %v1066 = vstv %s1065
    %v1067 = vsel %vm1063, %v1066, %v1060
    %vm1068 = vcmp.ge.s32.totalorder %v1053, 8
    %vm1069 = vcmp.lt.s32.totalorder %v1053, 12
    %vm1070 = vmand %vm1068, %vm1069
    %s1071 = sadd.s32 %s1054, 2
    %s1072 = sld [smem:[#allocation2 + %s1071]]
    %v1073 = vstv %s1072
    %v1074 = vsel %vm1070, %v1073, %v1067
    %vm1075 = vcmp.ge.s32.totalorder %v1053, 12
    %vm1076 = vcmp.lt.s32.totalorder %v1053, 16
    %vm1077 = vmand %vm1075, %vm1076
    %s1078 = sadd.s32 %s1054, 3
    %s1079 = sld [smem:[#allocation2 + %s1078]]
    %v1080 = vstv %s1079
    %v1081 = vsel %vm1077, %v1080, %v1074
    %vm1082 = vcmp.ge.s32.totalorder %v1053, 16
    %vm1083 = vcmp.lt.s32.totalorder %v1053, 20
    %vm1084 = vmand %vm1082, %vm1083
    %s1085 = sadd.s32 %s1054, 4
    %s1086 = sld [smem:[#allocation2 + %s1085]]
    %v1087 = vstv %s1086
    %v1088 = vsel %vm1084, %v1087, %v1081
    %v1089 = vmul.f32 %v1088, 0.17677669
    %v1090 = vadd.f32 %v1089, %v107
    %v1091 = vsel %vm791, %v1090, -inf
    %1092 = vmax.xlane.f32.xlu0 %v1091
    %v1093 = vpop.xlane.xlu0 %1092
    %v1094 = vsub.f32 %v1090, %v1093
    %v1095 = vmul.f32 %v1094, 1.442695
    %v1096 = vpow.pop %v1095
    %v1097 = vsel %vm791, %v1096, 0.0
    %1098 = vadd.xlane.f32.xlu0 %v1097
    %v1099 = vpop.xlane.xlu0 %1098
    %v1100 = vrcp.pop %v1099
    %v1101 = vmul.f32 %v1096, %v1100
    %v1102 = vpack.c.bf16 %v257, %v257
    %v1103 = vpack.c.bf16 %v405, %v405
    %1104 = vmatprep.subr.bf16.mxu0 0
    %1105 = vmatpush1.bf16.xpose.msra.mxu0 %v1103
    %1106 = vmatprep.subr.bf16.mxu0 0
    %1107 = vmatpush1.bf16.xpose.msra.mxu0 0
    %1108 = vmatprep.subr.bf16.mxu0 0
    %1109 = vmatpush1.bf16.xpose.msra.mxu0 0
    %1110 = vmatprep.subr.bf16.mxu0 0
    %1111 = vmatpush1.bf16.xpose.msra.mxu0 0
    %1112 = vmatprep.subr.bf16.mxu0 0
    %1113 = vmatpush1.bf16.xpose.msra.mxu0 0
    %1114 = vmatprep.subr.bf16.mxu0 0
    %1115 = vmatpush1.bf16.xpose.msra.mxu0 0
    %1116 = vmatprep.subr.bf16.mxu0 0
    %1117 = vmatpush1.bf16.xpose.msra.mxu0 0
    %1118 = vmatprep.subr.bf16.mxu0 0
    %1119 = vmatpush1.bf16.xpose.msra.mxu0 0
    %1120 = vmatprep.subr.bf16.mxu0 0
    %1121 = vmatpush1.bf16.xpose.msra.mxu0 0
    %1122 = vmatprep.subr.bf16.mxu0 0
    %1123 = vmatpush1.bf16.xpose.msra.mxu0 0
    %1124 = vmatprep.subr.bf16.mxu0 0
    %1125 = vmatpush1.bf16.xpose.msra.mxu0 0
    %1126 = vmatprep.subr.bf16.mxu0 0
    %1127 = vmatpush1.bf16.xpose.msra.mxu0 0
    %1128 = vmatprep.subr.bf16.mxu0 0
    %1129 = vmatpush1.bf16.xpose.msra.mxu0 0
    %1130 = vmatprep.subr.bf16.mxu0 0
    %1131 = vmatpush1.bf16.xpose.msra.mxu0 0
    %1132 = vmatprep.subr.bf16.mxu0 0
    %1133 = vmatpush1.bf16.xpose.msra.mxu0 0
    %1134 = vmatprep.subr.bf16.mxu0 0
    %1135 = vmatpush1.bf16.xpose.msra.mxu0 0
    %1136 = vmatprep.mubr.bf16.mxu0 0
    %1137 = vmatmul.mubr.bf16.gmra.mrb[0].mxu0 %v1102
    %v1138 = vpop.f32.mrb[0].mxu0
    %v1139 = vadd.f32 %v107, %v1138
    %v1140 = vpop.f32.mrb[0].mxu0
    %v1141 = vpop.f32.mrb[0].mxu0
    %v1142 = vpop.f32.mrb[0].mxu0
    %1143 = vdwg.mxu0
    %v1144 = vsel %vm791, %v1139, -inf
    %1145 = vmax.xlane.f32.xlu0 %v1144
    %v1146 = vpop.xlane.xlu0 %1145
    %v1147 = vsub.f32 %v1139, %v1146
    %v1148 = vmul.f32 %v1147, 1.442695
    %v1149 = vpow.pop %v1148
    %v1150 = vsel %vm791, %v1149, 0.0
    %1151 = vadd.xlane.f32.xlu0 %v1150
    %v1152 = vpop.xlane.xlu0 %1151
    %v1153 = vrcp.pop %v1152
    %v1154 = vmul.f32 %v1149, %v1153
    %v1155 = vadd.f32 %v1154, %v1101
    %v1156 = vpack.c.bf16 %v1155, %v1155
    %v1157 = vpack.c.bf16 %v411, %v411
    %v1158 = vpack.c.bf16 %v557, %v557
    %v1159 = vpack.c.bf16 %v705, %v705
    %1160 = vmatprep.subr.bf16.mxu0 0
    %1161 = vmatpush1.bf16.xpose.msra.mxu0 %v1159
    %1162 = vmatprep.subr.bf16.mxu0 0
    %1163 = vmatpush1.bf16.xpose.msra.mxu0 0
    %1164 = vmatprep.subr.bf16.mxu0 0
    %1165 = vmatpush1.bf16.xpose.msra.mxu0 0
    %1166 = vmatprep.subr.bf16.mxu0 0
    %1167 = vmatpush1.bf16.xpose.msra.mxu0 0
    %1168 = vmatprep.subr.bf16.mxu0 0
    %1169 = vmatpush1.bf16.xpose.msra.mxu0 0
    %1170 = vmatprep.subr.bf16.mxu0 0
    %1171 = vmatpush1.bf16.xpose.msra.mxu0 0
    %1172 = vmatprep.subr.bf16.mxu0 0
    %1173 = vmatpush1.bf16.xpose.msra.mxu0 0
    %1174 = vmatprep.subr.bf16.mxu0 0
    %1175 = vmatpush1.bf16.xpose.msra.mxu0 0
    %1176 = vmatprep.subr.bf16.mxu0 0
    %1177 = vmatpush1.bf16.xpose.msra.mxu0 0
    %1178 = vmatprep.subr.bf16.mxu0 0
    %1179 = vmatpush1.bf16.xpose.msra.mxu0 0
    %1180 = vmatprep.subr.bf16.mxu0 0
    %1181 = vmatpush1.bf16.xpose.msra.mxu0 0
    %1182 = vmatprep.subr.bf16.mxu0 0
    %1183 = vmatpush1.bf16.xpose.msra.mxu0 0
    %1184 = vmatprep.subr.bf16.mxu0 0
    %1185 = vmatpush1.bf16.xpose.msra.mxu0 0
    %1186 = vmatprep.subr.bf16.mxu0 0
    %1187 = vmatpush1.bf16.xpose.msra.mxu0 0
    %1188 = vmatprep.subr.bf16.mxu0 0
    %1189 = vmatpush1.bf16.xpose.msra.mxu0 0
    %1190 = vmatprep.subr.bf16.mxu0 0
    %1191 = vmatpush1.bf16.xpose.msra.mxu0 0
    %1192 = vmatprep.mubr.bf16.mxu0 0
    %1193 = vmatmul.mubr.bf16.gmra.mrb[0].mxu0 %v1158
    %v1194 = vpop.f32.mrb[0].mxu0
    %v1195 = vadd.f32 %v107, %v1194
    %v1196 = vpop.f32.mrb[0].mxu0
    %v1197 = vpop.f32.mrb[0].mxu0
    %v1198 = vpop.f32.mrb[0].mxu0
    %1199 = vdwg.mxu0
    %v1200 = vsel %vm791, %v1195, -inf
    %1201 = vmax.xlane.f32.xlu0 %v1200
    %v1202 = vpop.xlane.xlu0 %1201
    %v1203 = vsub.f32 %v1195, %v1202
    %v1204 = vmul.f32 %v1203, 1.442695
    %v1205 = vpow.pop %v1204
    %v1206 = vsel %vm791, %v1205, 0.0
    %1207 = vadd.xlane.f32.xlu0 %v1206
    %v1208 = vpop.xlane.xlu0 %1207
    %v1209 = vrcp.pop %v1208
    %v1210 = vmul.f32 %v1205, %v1209
    %v1211 = vadd.f32 %v1210, %v1101
    %v1212 = vpack.c.bf16 %v1211, %v1211
    %v1213 = vpack.c.bf16 %v711, %v711
    %v1215 = vsel %vm791, %v1212, 0
    %v1218 = vsel %vm918, %v1213, 0
    %1220 = vmatprep.subr.bf16.mxu0 0
    %1221 = vmatpush1.bf16.msra.mxu0 %v1218
    %1222 = vmatprep.subr.bf16.mxu0 0
    %1223 = vmatpush1.bf16.msra.mxu0 0
    %1224 = vmatprep.subr.bf16.mxu0 0
    %1225 = vmatpush1.bf16.msra.mxu0 0
    %1226 = vmatprep.subr.bf16.mxu0 0
    %1227 = vmatpush1.bf16.msra.mxu0 0
    %1228 = vmatprep.subr.bf16.mxu0 0
    %1229 = vmatpush1.bf16.msra.mxu0 0
    %1230 = vmatprep.subr.bf16.mxu0 0
    %1231 = vmatpush1.bf16.msra.mxu0 0
    %1232 = vmatprep.subr.bf16.mxu0 0
    %1233 = vmatpush1.bf16.msra.mxu0 0
    %1234 = vmatprep.subr.bf16.mxu0 0
    %1235 = vmatpush1.bf16.msra.mxu0 0
    %1236 = vmatprep.subr.bf16.mxu0 0
    %1237 = vmatpush1.bf16.msra.mxu0 0
    %1238 = vmatprep.subr.bf16.mxu0 0
    %1239 = vmatpush1.bf16.msra.mxu0 0
    %1240 = vmatprep.subr.bf16.mxu0 0
    %1241 = vmatpush1.bf16.msra.mxu0 0
    %1242 = vmatprep.subr.bf16.mxu0 0
    %1243 = vmatpush1.bf16.msra.mxu0 0
    %1244 = vmatprep.subr.bf16.mxu0 0
    %1245 = vmatpush1.bf16.msra.mxu0 0
    %1246 = vmatprep.subr.bf16.mxu0 0
    %1247 = vmatpush1.bf16.msra.mxu0 0
    %1248 = vmatprep.subr.bf16.mxu0 0
    %1249 = vmatpush1.bf16.msra.mxu0 0
    %1250 = vmatprep.subr.bf16.mxu0 0
    %1251 = vmatpush1.bf16.msra.mxu0 0
    %1252 = vmatprep.mubr.bf16.mxu0 0
    %1253 = vmatmul.mubr.bf16.gmra.mrb[0].mxu0 %v1215
    %v1254 = vpop.f32.mrb[0].mxu0
    %v1255 = vadd.f32 0.0, %v1254
    %v1256 = vpop.f32.mrb[0].mxu0
    %v1257 = vpop.f32.mrb[0].mxu0
    %v1258 = vpop.f32.mrb[0].mxu0
    %1259 = vdwg.mxu0
    %v1261 = vsel %vm791, %v1156, 0
    %v1264 = vsel %vm918, %v1157, 0
    %1266 = vmatprep.subr.bf16.mxu0 0
    %1267 = vmatpush1.bf16.msra.mxu0 %v1264
    %1268 = vmatprep.subr.bf16.mxu0 0
    %1269 = vmatpush1.bf16.msra.mxu0 0
    %1270 = vmatprep.subr.bf16.mxu0 0
    %1271 = vmatpush1.bf16.msra.mxu0 0
    %1272 = vmatprep.subr.bf16.mxu0 0
    %1273 = vmatpush1.bf16.msra.mxu0 0
    %1274 = vmatprep.subr.bf16.mxu0 0
    %1275 = vmatpush1.bf16.msra.mxu0 0
    %1276 = vmatprep.subr.bf16.mxu0 0
    %1277 = vmatpush1.bf16.msra.mxu0 0
    %1278 = vmatprep.subr.bf16.mxu0 0
    %1279 = vmatpush1.bf16.msra.mxu0 0
    %1280 = vmatprep.subr.bf16.mxu0 0
    %1281 = vmatpush1.bf16.msra.mxu0 0
    %1282 = vmatprep.subr.bf16.mxu0 0
    %1283 = vmatpush1.bf16.msra.mxu0 0
    %1284 = vmatprep.subr.bf16.mxu0 0
    %1285 = vmatpush1.bf16.msra.mxu0 0
    %1286 = vmatprep.subr.bf16.mxu0 0
    %1287 = vmatpush1.bf16.msra.mxu0 0
    %1288 = vmatprep.subr.bf16.mxu0 0
    %1289 = vmatpush1.bf16.msra.mxu0 0
    %1290 = vmatprep.subr.bf16.mxu0 0
    %1291 = vmatpush1.bf16.msra.mxu0 0
    %1292 = vmatprep.subr.bf16.mxu0 0
    %1293 = vmatpush1.bf16.msra.mxu0 0
    %1294 = vmatprep.subr.bf16.mxu0 0
    %1295 = vmatpush1.bf16.msra.mxu0 0
    %1296 = vmatprep.subr.bf16.mxu0 0
    %1297 = vmatpush1.bf16.msra.mxu0 0
    %1298 = vmatprep.mubr.bf16.mxu0 0
    %1299 = vmatmul.mubr.bf16.gmra.mrb[0].mxu0 %v1261
    %v1300 = vpop.f32.mrb[0].mxu0
    %v1301 = vadd.f32 %v1255, %v1300
    %v1302 = vpop.f32.mrb[0].mxu0
    %v1303 = vpop.f32.mrb[0].mxu0
    %v1304 = vpop.f32.mrb[0].mxu0
    %1305 = vdwg.mxu0
    %v1306 = vpack.c.bf16 %v1301, %v1003
    %v1307 = vld [vmem:[#allocation10 + $0x18] sm:$0xf]
    %v1308 = vld [vmem:[#allocation10 + $0x34] sm:$0xf]
    %v1309 = vld [vmem:[#allocation10 + $0x50] sm:$0xf]
    %v1310 = vld [vmem:[#allocation10 + $0x6c] sm:$0xf]
    %v1311 = vld [vmem:[#allocation10 + $0x88] sm:$0xf]
    %v1312 = vld [vmem:[#allocation10 + $0xa4] sm:$0xf]
    %v1313 = vld [vmem:[#allocation10 + $0xc0] sm:$0xf]
    %v1314 = vld [vmem:[#allocation10 + $0xdc] sm:$0xf]
    %v1315 = vld [vmem:[#allocation10 + $0xf8] sm:$0xf]
    %v1316 = vld [vmem:[#allocation10 + $0x114] sm:$0xf]
    %v1317 = vld [vmem:[#allocation10 + $0x130] sm:$0xf]
    %v1318 = vld [vmem:[#allocation10 + $0x14c] sm:$0xf]
    %v1319 = vld [vmem:[#allocation10 + $0x168] sm:$0xf]
    %v1320 = vld [vmem:[#allocation10 + $0x184] sm:$0xf]
    %v1321 = vld [vmem:[#allocation10 + $0x1a0] sm:$0xf]
    %v1322 = vld [vmem:[#allocation10 + $0x1bc] sm:$0xf]
    %v1323 = vlaneseq
    %v1324 = vshrl.u32 %v1323, 7
    %v1325 = vsub.s32 6, %v1324
    %v1326 = vrot.slane %v100, %v1325
    %v1343 = vunpack.c.l.b16 %v1307
    %v1344 = vunpack.c.l.b16 %v1308
    %v1345 = vunpack.c.l.b16 %v1309
    %v1346 = vunpack.c.l.b16 %v1310
    %v1347 = vunpack.c.l.b16 %v1311
    %v1348 = vunpack.c.l.b16 %v1312
    %v1349 = vunpack.c.l.b16 %v1313
    %v1350 = vunpack.c.l.b16 %v1314
    %v1351 = vunpack.c.l.b16 %v1315
    %v1352 = vunpack.c.l.b16 %v1316
    %v1353 = vunpack.c.l.b16 %v1317
    %v1354 = vunpack.c.l.b16 %v1318
    %v1355 = vunpack.c.l.b16 %v1319
    %v1356 = vunpack.c.l.b16 %v1320
    %v1357 = vunpack.c.l.b16 %v1321
    %v1358 = vunpack.c.l.b16 %v1322
    %v1359 = vpack.c.b16 %v1344, %v1343
    %v1360 = vpack.c.b16 %v1346, %v1345
    %v1361 = vpack.c.b16 %v1348, %v1347
    %v1362 = vpack.c.b16 %v1350, %v1349
    %v1363 = vpack.c.b16 %v1352, %v1351
    %v1364 = vpack.c.b16 %v1354, %v1353
    %v1365 = vpack.c.b16 %v1356, %v1355
    %v1366 = vpack.c.b16 %v1358, %v1357
    %1375 = vmatprep.subr.bf16.mxu0 0
    %1376 = vmatpush1.bf16.msra.mxu0 %v1359
    %1377 = vmatprep.subr.bf16.mxu0 0
    %1378 = vmatpush1.bf16.msra.mxu0 %v1360
    %1379 = vmatprep.subr.bf16.mxu0 0
    %1380 = vmatpush1.bf16.msra.mxu0 %v1361
    %1381 = vmatprep.subr.bf16.mxu0 0
    %1382 = vmatpush1.bf16.msra.mxu0 %v1362
    %1383 = vmatprep.subr.bf16.mxu0 0
    %1384 = vmatpush1.bf16.msra.mxu0 %v1363
    %1385 = vmatprep.subr.bf16.mxu0 0
    %1386 = vmatpush1.bf16.msra.mxu0 %v1364
    %1387 = vmatprep.subr.bf16.mxu0 0
    %1388 = vmatpush1.bf16.msra.mxu0 %v1365
    %1389 = vmatprep.subr.bf16.mxu0 0
    %1390 = vmatpush1.bf16.msra.mxu0 %v1366
    %1391 = vmatprep.subr.bf16.mxu0 0
    %1392 = vmatpush1.bf16.msra.mxu0 0
    %1393 = vmatprep.subr.bf16.mxu0 0
    %1394 = vmatpush1.bf16.msra.mxu0 0
    %1395 = vmatprep.subr.bf16.mxu0 0
    %1396 = vmatpush1.bf16.msra.mxu0 0
    %1397 = vmatprep.subr.bf16.mxu0 0
    %1398 = vmatpush1.bf16.msra.mxu0 0
    %1399 = vmatprep.subr.bf16.mxu0 0
    %1400 = vmatpush1.bf16.msra.mxu0 0
    %1401 = vmatprep.subr.bf16.mxu0 0
    %1402 = vmatpush1.bf16.msra.mxu0 0
    %1403 = vmatprep.subr.bf16.mxu0 0
    %1404 = vmatpush1.bf16.msra.mxu0 0
    %1405 = vmatprep.subr.bf16.mxu0 0
    %1406 = vmatpush1.bf16.msra.mxu0 0
    %1407 = vmatprep.mubr.bf16.mxu0 0
    %1408 = vmatmul.mubr.bf16.gmra.mrb[0].mxu0 %v1306
    %v1409 = vpop.f32.mrb[0].mxu0
    %v1410 = vadd.f32 %v1326, %v1409
    %v1411 = vpop.f32.mrb[0].mxu0
    %v1412 = vpop.f32.mrb[0].mxu0
    %v1413 = vadd.f32 %v1326, %v1412
    %v1414 = vpop.f32.mrb[0].mxu0
    %1415 = vdwg.mxu0
    %v1416 = vld [vmem:[%s3] sm:$0xff]
    %v1417 = vld [vmem:[%s3 + $0x8] sm:$0xff]
    %v1418 = vadd.f32 %v1410, %v1416
    %v1419 = vadd.f32 %v1413, %v1417
    %v1420 = vmul.f32 %v1418, %v106
    %v1421 = vmul.f32 %v1419, %v106
    %1422 = vadd.xlane.f32.xlu0 %v1420
    %v1423 = vpop.xlane.xlu0 %1422
    %1424 = vadd.xlane.f32.xlu0 %v1421
    %v1425 = vpop.xlane.xlu0 %1424
    %v1426 = vmul.f32 %v1423, 0.03125
    %v1427 = vmul.f32 %v1425, 0.03125
    %v1428 = vsub.f32 %v1418, %v1426
    %v1429 = vsub.f32 %v1419, %v1427
    %v1430 = vmul.f32 %v1428, %v106
    %v1431 = vmul.f32 %v1429, %v106
    %v1432 = vmul.f32 %v1430, %v1430
    %v1433 = vmul.f32 %v1431, %v1431
    %1434 = vadd.xlane.f32.xlu0 %v1432
    %v1435 = vpop.xlane.xlu0 %1434
    %1436 = vadd.xlane.f32.xlu0 %v1433
    %v1437 = vpop.xlane.xlu0 %1436
    %v1438 = vmul.f32 %v1435, 0.03125
    %v1439 = vmul.f32 %v1437, 0.03125
    %v1440 = vadd.f32 %v1438, 1e-08
    %v1441 = vadd.f32 %v1439, 1e-08
    %v1442 = vrsqrt.pop %v1440
    %v1443 = vrsqrt.pop %v1441
    %v1444 = vmul.f32 %v1430, %v1442
    %v1445 = vmul.f32 %v1431, %v1443
    %v1446 = vlaneseq
    %v1447 = vshrl.u32 %v1446, 7
    %v1448 = vsub.s32 3, %v1447
    %v1449 = vrot.slane %v101, %v1448
    %v1450 = vmul.f32 %v1444, %v1449
    %v1451 = vmul.f32 %v1445, %v1449
    %v1452 = vlaneseq
    %v1453 = vshrl.u32 %v1452, 7
    %v1454 = vsub.s32 4, %v1453
    %v1455 = vrot.slane %v101, %v1454
    %v1456 = vadd.f32 %v1450, %v1455
    %v1457 = vadd.f32 %v1451, %v1455
    %1458 = vst [vmem:[#allocation12] sm:$0xff] %v1456
    %1459 = vst [vmem:[#allocation12 + $0x8] sm:$0xff] %v1457
    // Predicated region
    $region58: #{tpu_custom_call.1} parent=1 // pred_check
      _
    $region59: #{tpu_custom_call.1} parent=1 // pred_check_branch
      %1461 = sbr.rel (0) target = $region61
    $region60: #{tpu_custom_call.1} parent=1 // pred_region
      %s1463 = ssub.s32 256, 256
      %1464 = vsyncadd [#allocation4], %s1463
      %s1465 = sshll.u32 [#allocation12], 4
      %s1466 = int_to_ptr.vmem [resolvable:$true] %s1465
      %1471 = dma.vmem_to_hbm [thread:$0]  %s1466, 256, %s9, [#allocation4], 128, 128, 8
    $region61: #{tpu_custom_call.1} parent=1 // pred_fallthru
      _
    // Predicated region
    $region62: #{tpu_custom_call.1} parent=1 // pred_check
      _
    $region63: #{tpu_custom_call.1} parent=1 // pred_check_branch
      %1473 = sbr.rel (0) target = $region65
    $region64: #{tpu_custom_call.1} parent=1 // pred_region
      %1474 = dma.done [#allocation4], 256
    $region65: #{tpu_custom_call.1} parent=1 // pred_fallthru
      _
    %1475 = vsyncpa [#allocation3], 1
    %1476 = vsyncpa [#allocation8], 1
    %1477 = vsyncpa [#allocation11], 1
    %1478 = vsyncpa [#allocation4], 1
    %1479 = vsyncpa [#allocation5], 1

</llo_original>
